<compile_context>
chip_gen: v5e
topology: v5e:2x2
jax: 0.10.0
libtpu: 0.0.40
codegen_flags: <defaults>
</compile_context>

<pallas_src>
import functools
import math

import jax
import jax.numpy as jnp
import numpy as np
from jax.experimental import pallas as pl
from jax.experimental.pallas import tpu as pltpu


def _ggnn_kernel(n_steps,
                 J_ref, b_ref,
                 w1hihi_ref, w1hj_ref, w1misc_ref,
                 w2blk_ref, b2b2_ref,
                 ws2_ref, whbot_ref, grumisc_ref,
                 wr1b1_ref, wr2b2_ref, wr3b3_ref,
                 out_ref):
    f32 = jnp.float32
    bf16 = jnp.bfloat16
    n = J_ref.shape[0]
    nh = n // 2
    H = w1misc_ref.shape[1]          # hidden_unit_message_dim
    H2 = 2 * H
    S = whbot_ref.shape[0]           # state_dim
    Hr = wr1b1_ref.shape[1]          # hidden_unit_readout_dim

    # ------------- hoisted, step-invariant work (done once) -------------
    J = J_ref[...]                               # (n, n)
    bvec = b_ref[...]                            # (n, 1)
    mask2d = (J != 0.0).astype(f32)              # (n, n) graph edges
    deg = jnp.sum(mask2d, axis=1, keepdims=True)  # (n, 1) neighbour count

    w1_J = w1misc_ref[0:1, :]                    # (1, H)
    w1_bi = w1misc_ref[1:2, :]                   # (1, H)
    w1_bj = w1misc_ref[2:3, :]                   # (1, H)
    b1 = w1misc_ref[3:4, :]                      # (1, H)

    # Half-split lane packing: column j pairs with column j + n/2, so every
    # (·, H)-wide intermediate becomes (·, 2H)=128-lane dense.
    def packpair(a):                             # (n, n, H) -> (n, nh, 2H)
        return jnp.concatenate([a[:, :nh, :], a[:, nh:, :]], axis=-1)

    # Step-invariant part of the 1st message-layer pre-activation:
    # contribution of the [J[i,j], b[i], b[j]] features plus the layer bias.
    tb_i = bvec * w1_bi                          # (n, H)
    tb_j = bvec * w1_bj                          # (n, H)
    const_pre = (J[:, :, None] * w1_J.reshape(1, 1, H)
                 + tb_i[:, None, :] + tb_j[None, :, :]
                 + b1.reshape(1, 1, H))          # (n, n, H)
    const_prep = packpair(const_pre)             # (n, nh, 2H)
    maskp = packpair(jnp.broadcast_to(mask2d[:, :, None], (n, n, H)))

    w1hihi = w1hihi_ref[...]                     # (S, 2H)  bf16  [w1_hi | w1_hi]
    w1hj = w1hj_ref[...]                         # (S, H)   bf16
    w2blk = w2blk_ref[...]                       # (2H, 2H) bf16  blockdiag(W2, W2)
    b2row = b2b2_ref[...]                        # (1, 2H)  f32   [b2 | b2]
    ws2 = ws2_ref[...]                           # (2H, 4S) f32   [[W3@[Wih|0]]; [W3@[Wih|0]]]
    whbot = whbot_ref[...]                       # (S, 4S)  f32   [Whh_r|Whh_z|0|Whh_n]
    # per-node GRU constant: deg * (b3 @ [Wih|0]) + fused gate bias row
    gru_const = deg * grumisc_ref[1:2, :] + grumisc_ref[0:1, :]   # (n, 4S)

    def step(_, h):
        hb = h.astype(bf16)
        # 1st message layer, hidden-state part (both endpoints), lane-dense.
        ti2 = jnp.dot(hb, w1hihi, preferred_element_type=f32)     # (n, 2H)
        tj = jnp.dot(hb, w1hj, preferred_element_type=f32)        # (n, H)
        tj2 = jnp.concatenate([tj[:nh, :], tj[nh:, :]], axis=1)   # (nh, 2H)
        pre = ti2[:, None, :] + tj2[None, :, :] + const_prep      # (n, nh, 2H)
        x = jnp.maximum(pre, 0.0).reshape(n * nh, H2)
        # 2nd layer: one native (128,128)@(128,128) bf16 MXU tile.
        x = jnp.maximum(jnp.dot(x.astype(bf16), w2blk,
                                preferred_element_type=f32) + b2row, 0.0)
        # Masked neighbour sum BEFORE the (folded) 3rd layer — exact by
        # linearity, replaces the (n,n,M) msg tensor of the torch spmm.
        s2 = jnp.sum(maskp * x.reshape(n, nh, H2), axis=1)        # (n, 2H)

        # GRUCell(message_dim -> state_dim), PyTorch gate order (r, z, n);
        # W3/b3 already folded into ws2 / gru_const.
        gb = (jnp.dot(s2, ws2, preferred_element_type=f32)
              + jnp.dot(h, whbot, preferred_element_type=f32)
              + gru_const)                                        # (n, 4S)
        rz = jax.nn.sigmoid(gb[:, :2 * S])
        r = rz[:, :S]
        z = rz[:, S:]
        nt = jnp.tanh(gb[:, 2 * S:3 * S] + r * gb[:, 3 * S:])
        return (1.0 - z) * nt + z * h

    h0 = jnp.zeros((n, S), f32)
    # n_steps is static -> fully unroll so the LLO scheduler can overlap
    # MXU / VPU / EUP / XLU work across adjacent steps.
    h = jax.lax.fori_loop(0, n_steps, step, h0, unroll=True)

    # ---------------- readout MLP (f32); softmax lives in the wrapper ------
    wr1 = wr1b1_ref[:S, :]
    br1 = wr1b1_ref[S:S + 1, :]
    wr2 = wr2b2_ref[:Hr, :]
    br2 = wr2b2_ref[Hr:Hr + 1, :]
    wr3 = wr3b3_ref[:Hr, :]
    br3 = wr3b3_ref[Hr:Hr + 1, :]

    x = jnp.maximum(jnp.dot(h, wr1, preferred_element_type=f32) + br1, 0.0)
    x = jnp.maximum(jnp.dot(x, wr2, preferred_element_type=f32) + br2, 0.0)
    out_ref[...] = jnp.dot(x, wr3, preferred_element_type=f32) + br3   # (n, 2)


def ggnn_forward(J, b, packed_params, *, n_steps):
    n = J.shape[0]
    assert n % 2 == 0, "half-split lane packing assumes an even node count"
    kern = functools.partial(_ggnn_kernel, n_steps)
    vmem = pl.BlockSpec(memory_space=pltpu.MemorySpace.VMEM)
    inputs = (J.astype(jnp.float32),
              b.reshape(n, 1).astype(jnp.float32)) + tuple(packed_params)
    # Single (J, b) instance -> no grid (everything is VMEM resident).
    # TODO(synk): for batched graphs add a leading "parallel" grid axis with
    # per-graph BlockSpecs so both v7x TensorCores are used.
    logits = pl.pallas_call(
        kern,
        out_shape=jax.ShapeDtypeStruct((n, 2), jnp.float32),
        in_specs=[vmem] * len(inputs),
        out_specs=vmem,
    )(*inputs)
    probs = jax.nn.softmax(logits, axis=1)   # exact softmax, outside the kernel
    return probs, logits


def init_params(key, S, M, Hm, Hr):
    """Deterministic parameter init matching GGNN._initialization:
    Linear weights ~ N(0, 0.1), Linear biases = 0; GRUCell default U(-k, k).
    All weights stored [in, out] (transpose of torch's [out, in])."""
    ks = jax.random.split(key, 10)

    def lin_w(k, shape):
        return (0.1 * jax.random.normal(k, shape)).astype(jnp.float32)

    kg = 1.0 / math.sqrt(S)

    def gru(k, shape):
        return jax.random.uniform(k, shape, jnp.float32, -kg, kg)

    z = lambda shape: jnp.zeros(shape, jnp.float32)
    return dict(
        W1=lin_w(ks[0], (2 * S + 3, Hm)), b1=z((1, Hm)),
        W2=lin_w(ks[1], (Hm, Hm)),        b2=z((1, Hm)),
        W3=lin_w(ks[2], (Hm, M)),         b3=z((1, M)),
        Wih=gru(ks[3], (M, 3 * S)),       Whh=gru(ks[4], (S, 3 * S)),
        bih=gru(ks[5], (1, 3 * S)),       bhh=gru(ks[6], (1, 3 * S)),
        Wr1=lin_w(ks[7], (S, Hr)),        br1=z((1, Hr)),
        Wr2=lin_w(ks[8], (Hr, Hr)),       br2=z((1, Hr)),
        Wr3=lin_w(ks[9], (Hr, 2)),        br3=z((1, 2)),
    )


def pack_params(p, S):
    """Pack / pre-fold parameters into a few VMEM slabs (folds done in float64).
    All in-kernel slices land on 8-sublane-aligned offsets or are single rows."""
    f32, bf16 = jnp.float32, jnp.bfloat16
    P = {k: np.asarray(v, np.float64) for k, v in p.items()}
    W1, W2, W3 = P["W1"], P["W2"], P["W3"]
    Wih, Whh = P["Wih"], P["Whh"]
    H = W2.shape[0]
    M = Wih.shape[0]

    # 1st message layer: hidden-state weights (endpoint i duplicated for the
    # lane-packed layout) + the scalar-feature rows [J, b_i, b_j, bias].
    w1_hi, w1_hj = W1[:S], W1[S:2 * S]
    w1hihi = jnp.asarray(np.concatenate([w1_hi, w1_hi], axis=1), bf16)   # (S, 2H)
    w1hj = jnp.asarray(w1_hj, bf16)                                      # (S, H)
    w1misc = jnp.asarray(np.concatenate(
        [W1[2 * S:2 * S + 1], W1[2 * S + 1:2 * S + 2],
         W1[2 * S + 2:2 * S + 3], P["b1"]], axis=0), f32)                # (4, H)

    # 2nd layer as a block-diagonal (2H, 2H) weight acting on lane-packed rows.
    w2blk_np = np.zeros((2 * H, 2 * H))
    w2blk_np[:H, :H] = W2
    w2blk_np[H:, H:] = W2
    w2blk = jnp.asarray(w2blk_np, bf16)                                  # (2H, 2H)
    b2b2 = jnp.asarray(np.concatenate([P["b2"], P["b2"]], axis=1), f32)  # (1, 2H)

    # Fold 3rd message layer (W3, b3) into the GRU input weights:
    #   Wtop = [Wih_r | Wih_z | Wih_n | 0],  Ws = W3 @ Wtop,
    #   Ws2  = [[Ws]; [Ws]]  so that  s2 @ Ws2 == (sum of both lane halves) @ Ws.
    Wtop = np.concatenate([Wih, np.zeros((M, S))], axis=1)               # (M, 4S)
    Ws = W3 @ Wtop                                                       # (H, 4S)
    ws2 = jnp.asarray(np.concatenate([Ws, Ws], axis=0), f32)             # (2H, 4S)
    whbot = jnp.asarray(np.concatenate(
        [Whh[:, :2 * S], np.zeros((S, S)), Whh[:, 2 * S:]], axis=1), f32)  # (S, 4S)
    bgru = np.concatenate([P["bih"][:, :2 * S] + P["bhh"][:, :2 * S],
                           P["bih"][:, 2 * S:], P["bhh"][:, 2 * S:]], axis=1)  # (1,4S)
    b3Wtop = P["b3"] @ Wtop                                              # (1, 4S)
    grumisc = jnp.asarray(np.concatenate([bgru, b3Wtop], axis=0), f32)   # (2, 4S)

    wr1b1 = jnp.asarray(np.concatenate([P["Wr1"], P["br1"]], axis=0), f32)
    wr2b2 = jnp.asarray(np.concatenate([P["Wr2"], P["br2"]], axis=0), f32)
    wr3b3 = jnp.asarray(np.concatenate([P["Wr3"], P["br3"]], axis=0), f32)
    return (w1hihi, w1hj, w1misc, w2blk, b2b2,
            ws2, whbot, grumisc, wr1b1, wr2b2, wr3b3)


def reference_numpy(J, b, p, n_steps, S, M):
    """Edge-list reference mirroring the torch code (nonzero + sparse row-sum)."""
    Jn = np.asarray(J, np.float64)
    bn = np.asarray(b, np.float64)
    P = {k: np.asarray(v, np.float64) for k, v in p.items()}
    n = Jn.shape[0]
    row, col = np.nonzero(Jn)
    h = np.zeros((n, S))
    sig = lambda x: 1.0 / (1.0 + np.exp(-x))
    for _ in range(n_steps):
        feat = np.concatenate([h[row], h[col],
                               Jn[row, col][:, None],
                               bn[row][:, None], bn[col][:, None]], axis=1)
        x = np.maximum(feat @ P["W1"] + P["b1"], 0.0)
        x = np.maximum(x @ P["W2"] + P["b2"], 0.0)
        msg = x @ P["W3"] + P["b3"]                # (E, M)
        node_msg = np.zeros((n, M))
        np.add.at(node_msg, row, msg)              # sparse spmm with ones(n,1)
        gi = node_msg @ P["Wih"] + P["bih"]
        gh = h @ P["Whh"] + P["bhh"]
        r = sig(gi[:, :S] + gh[:, :S])
        z = sig(gi[:, S:2 * S] + gh[:, S:2 * S])
        nt = np.tanh(gi[:, 2 * S:] + r * gh[:, 2 * S:])
        h = (1.0 - z) * nt + z * h
    x = np.maximum(h @ P["Wr1"] + P["br1"], 0.0)
    x = np.maximum(x @ P["Wr2"] + P["br2"], 0.0)
    logits = x @ P["Wr3"] + P["br3"]
    e = np.exp(logits - logits.max(axis=1, keepdims=True))
    return e / e.sum(axis=1, keepdims=True), logits


if __name__ == "__main__":
    n_nodes = 16
    state_dim = 32
    message_dim = 32
    hidden_unit_message_dim = 64
    hidden_unit_readout_dim = 64
    n_steps = 5

    key = jax.random.PRNGKey(0)
    kJ, kb, kp = jax.random.split(key, 3)

    # Symmetric sparse coupling matrix J with zero diagonal, and field b.
    A = jax.random.normal(kJ, (n_nodes, n_nodes), jnp.float32)
    A = 0.5 * (A + A.T)
    J = jnp.where(jnp.abs(A) > 0.8, A, 0.0)
    J = J * (1.0 - jnp.eye(n_nodes, dtype=jnp.float32))
    b = jax.random.normal(kb, (n_nodes,), jnp.float32)

    params = init_params(kp, state_dim, message_dim,
                         hidden_unit_message_dim, hidden_unit_readout_dim)
    packed = pack_params(params, state_dim)

    probs, logits = ggnn_forward(J, b, packed, n_steps=n_steps)
    jax.block_until_ready((probs, logits))

    ref_probs, ref_logits = reference_numpy(J, b, params, n_steps,
                                            state_dim, message_dim)
    assert np.allclose(np.asarray(probs), ref_probs, rtol=2e-2, atol=2e-2)
    assert np.allclose(np.asarray(logits), ref_logits, rtol=2e-2, atol=2e-2)
    # softmax is now exact (computed in the wrapper)
    assert np.allclose(np.asarray(probs).sum(axis=1), 1.0, atol=1e-5)
    print("KERNEL_OK")
</pallas_src>

<mosaic_0001>
module attributes {stable_mosaic.version = 11 : i64} {
  func.func @_ggnn_kernel(%arg0: memref<16x16xf32, #tpu.memory_space<vmem>>, %arg1: memref<16x1xf32, #tpu.memory_space<vmem>>, %arg2: memref<32x128xbf16, #tpu.memory_space<vmem>>, %arg3: memref<32x64xbf16, #tpu.memory_space<vmem>>, %arg4: memref<4x64xf32, #tpu.memory_space<vmem>>, %arg5: memref<128x128xbf16, #tpu.memory_space<vmem>>, %arg6: memref<1x128xf32, #tpu.memory_space<vmem>>, %arg7: memref<128x128xf32, #tpu.memory_space<vmem>>, %arg8: memref<32x128xf32, #tpu.memory_space<vmem>>, %arg9: memref<2x128xf32, #tpu.memory_space<vmem>>, %arg10: memref<33x64xf32, #tpu.memory_space<vmem>>, %arg11: memref<65x64xf32, #tpu.memory_space<vmem>>, %arg12: memref<65x2xf32, #tpu.memory_space<vmem>>, %arg13: memref<16x2xf32, #tpu.memory_space<vmem>>) attributes {dimension_semantics = [], scalar_prefetch = 0 : i64, scratch_operands = 0 : i64, tpu.core_type = #tpu.core_type<tc>} {
    %c0 = arith.constant 0 : index
    %c0_0 = arith.constant 0 : index
    %0 = vector.load %arg0[%c0, %c0_0] : memref<16x16xf32, #tpu.memory_space<vmem>>, vector<16x16xf32>
    %c0_1 = arith.constant 0 : index
    %c0_2 = arith.constant 0 : index
    %1 = vector.load %arg1[%c0_1, %c0_2] : memref<16x1xf32, #tpu.memory_space<vmem>>, vector<16x1xf32>
    %cst = arith.constant 0.000000e+00 : f32
    %2 = vector.broadcast %cst : f32 to vector<16x16xf32>
    %3 = arith.cmpf one, %0, %2 : vector<16x16xf32>
    %4 = arith.extui %3 : vector<16x16xi1> to vector<16x16xi32>
    %5 = arith.sitofp %4 : vector<16x16xi32> to vector<16x16xf32>
    %cst_3 = arith.constant dense<0.000000e+00> : vector<16xf32>
    %6 = vector.multi_reduction <add>, %5, %cst_3 [1] : vector<16x16xf32> to vector<16xf32>
    %7 = vector.shape_cast %6 : vector<16xf32> to vector<16x1xf32>
    %c0_4 = arith.constant 0 : index
    %c0_5 = arith.constant 0 : index
    %8 = vector.load %arg4[%c0_4, %c0_5] : memref<4x64xf32, #tpu.memory_space<vmem>>, vector<1x64xf32>
    %c1 = arith.constant 1 : index
    %c0_6 = arith.constant 0 : index
    %9 = vector.load %arg4[%c1, %c0_6] : memref<4x64xf32, #tpu.memory_space<vmem>>, vector<1x64xf32>
    %c2 = arith.constant 2 : index
    %c0_7 = arith.constant 0 : index
    %10 = vector.load %arg4[%c2, %c0_7] : memref<4x64xf32, #tpu.memory_space<vmem>>, vector<1x64xf32>
    %c3 = arith.constant 3 : index
    %c0_8 = arith.constant 0 : index
    %11 = vector.load %arg4[%c3, %c0_8] : memref<4x64xf32, #tpu.memory_space<vmem>>, vector<1x64xf32>
    %12 = vector.broadcast %1 : vector<16x1xf32> to vector<16x64xf32>
    %13 = vector.broadcast %9 : vector<1x64xf32> to vector<16x64xf32>
    %14 = arith.mulf %12, %13 : vector<16x64xf32>
    %15 = vector.broadcast %1 : vector<16x1xf32> to vector<16x64xf32>
    %16 = vector.broadcast %10 : vector<1x64xf32> to vector<16x64xf32>
    %17 = arith.mulf %15, %16 : vector<16x64xf32>
    %18 = vector.shape_cast %0 : vector<16x16xf32> to vector<16x16x1xf32>
    %19 = vector.shape_cast %8 : vector<1x64xf32> to vector<1x1x64xf32>
    %20 = vector.broadcast %18 : vector<16x16x1xf32> to vector<16x16x64xf32>
    %21 = vector.broadcast %19 : vector<1x1x64xf32> to vector<16x16x64xf32>
    %22 = arith.mulf %20, %21 : vector<16x16x64xf32>
    %23 = vector.shape_cast %14 : vector<16x64xf32> to vector<16x1x64xf32>
    %24 = vector.broadcast %23 : vector<16x1x64xf32> to vector<16x16x64xf32>
    %25 = arith.addf %22, %24 : vector<16x16x64xf32>
    %26 = vector.shape_cast %17 : vector<16x64xf32> to vector<1x16x64xf32>
    %27 = vector.broadcast %26 : vector<1x16x64xf32> to vector<16x16x64xf32>
    %28 = arith.addf %25, %27 : vector<16x16x64xf32>
    %29 = vector.shape_cast %11 : vector<1x64xf32> to vector<1x1x64xf32>
    %30 = vector.broadcast %29 : vector<1x1x64xf32> to vector<16x16x64xf32>
    %31 = arith.addf %28, %30 : vector<16x16x64xf32>
    %32 = vector.extract_strided_slice %31 {offsets = [0, 0, 0], sizes = [16, 8, 64], strides = [1, 1, 1]} : vector<16x16x64xf32> to vector<16x8x64xf32>
    %33 = vector.extract_strided_slice %31 {offsets = [0, 8, 0], sizes = [16, 8, 64], strides = [1, 1, 1]} : vector<16x16x64xf32> to vector<16x8x64xf32>
    %34 = tpu.concatenate %32, %33 in 2 : vector<16x8x64xf32>, vector<16x8x64xf32> -> vector<16x8x128xf32>
    %35 = vector.shape_cast %5 : vector<16x16xf32> to vector<16x16x1xf32>
    %36 = vector.shape_cast %35 : vector<16x16x1xf32> to vector<16x16x1xf32>
    %37 = vector.broadcast %36 : vector<16x16x1xf32> to vector<16x16x64xf32>
    %38 = vector.extract_strided_slice %37 {offsets = [0, 0, 0], sizes = [16, 8, 64], strides = [1, 1, 1]} : vector<16x16x64xf32> to vector<16x8x64xf32>
    %39 = vector.extract_strided_slice %37 {offsets = [0, 8, 0], sizes = [16, 8, 64], strides = [1, 1, 1]} : vector<16x16x64xf32> to vector<16x8x64xf32>
    %40 = tpu.concatenate %38, %39 in 2 : vector<16x8x64xf32>, vector<16x8x64xf32> -> vector<16x8x128xf32>
    %c0_9 = arith.constant 0 : index
    %c0_10 = arith.constant 0 : index
    %41 = vector.load %arg2[%c0_9, %c0_10] : memref<32x128xbf16, #tpu.memory_space<vmem>>, vector<32x128xbf16>
    %c0_11 = arith.constant 0 : index
    %c0_12 = arith.constant 0 : index
    %42 = vector.load %arg3[%c0_11, %c0_12] : memref<32x64xbf16, #tpu.memory_space<vmem>>, vector<32x64xbf16>
    %c0_13 = arith.constant 0 : index
    %c0_14 = arith.constant 0 : index
    %43 = vector.load %arg5[%c0_13, %c0_14] : memref<128x128xbf16, #tpu.memory_space<vmem>>, vector<128x128xbf16>
    %c0_15 = arith.constant 0 : index
    %c0_16 = arith.constant 0 : index
    %44 = vector.load %arg6[%c0_15, %c0_16] : memref<1x128xf32, #tpu.memory_space<vmem>>, vector<1x128xf32>
    %c0_17 = arith.constant 0 : index
    %c0_18 = arith.constant 0 : index
    %45 = vector.load %arg7[%c0_17, %c0_18] : memref<128x128xf32, #tpu.memory_space<vmem>>, vector<128x128xf32>
    %c0_19 = arith.constant 0 : index
    %c0_20 = arith.constant 0 : index
    %46 = vector.load %arg8[%c0_19, %c0_20] : memref<32x128xf32, #tpu.memory_space<vmem>>, vector<32x128xf32>
    %c1_21 = arith.constant 1 : index
    %c0_22 = arith.constant 0 : index
    %47 = vector.load %arg9[%c1_21, %c0_22] : memref<2x128xf32, #tpu.memory_space<vmem>>, vector<1x128xf32>
    %48 = vector.broadcast %7 : vector<16x1xf32> to vector<16x128xf32>
    %49 = vector.broadcast %47 : vector<1x128xf32> to vector<16x128xf32>
    %50 = arith.mulf %48, %49 : vector<16x128xf32>
    %c0_23 = arith.constant 0 : index
    %c0_24 = arith.constant 0 : index
    %51 = vector.load %arg9[%c0_23, %c0_24] : memref<2x128xf32, #tpu.memory_space<vmem>>, vector<1x128xf32>
    %52 = vector.broadcast %51 : vector<1x128xf32> to vector<16x128xf32>
    %53 = arith.addf %50, %52 : vector<16x128xf32>
    %cst_25 = arith.constant 0.000000e+00 : f32
    %54 = vector.broadcast %cst_25 : f32 to vector<16x32xf32>
    %c0_i32 = arith.constant 0 : i32
    %55 = arith.truncf %54 : vector<16x32xf32> to vector<16x32xbf16>
    %cst_26 = arith.constant dense<0.000000e+00> : vector<16x128xf32>
    %56 = tpu.matmul %55, %41, %cst_26 {dimension_numbers = #tpu.dot_dimension_numbers<[1], [0], [0], [1], [0, 0, 1, 1], [], []>} : vector<16x32xbf16>, vector<32x128xbf16>, vector<16x128xf32> -> vector<16x128xf32>
    %cst_27 = arith.constant dense<0.000000e+00> : vector<16x64xf32>
    %57 = tpu.matmul %55, %42, %cst_27 {dimension_numbers = #tpu.dot_dimension_numbers<[1], [0], [0], [1], [0, 0, 1, 1], [], []>} : vector<16x32xbf16>, vector<32x64xbf16>, vector<16x64xf32> -> vector<16x64xf32>
    %58 = vector.extract_strided_slice %57 {offsets = [0, 0], sizes = [8, 64], strides = [1, 1]} : vector<16x64xf32> to vector<8x64xf32>
    %59 = vector.extract_strided_slice %57 {offsets = [8, 0], sizes = [8, 64], strides = [1, 1]} : vector<16x64xf32> to vector<8x64xf32>
    %60 = tpu.concatenate %58, %59 in 1 : vector<8x64xf32>, vector<8x64xf32> -> vector<8x128xf32>
    %61 = vector.shape_cast %56 : vector<16x128xf32> to vector<16x1x128xf32>
    %62 = vector.shape_cast %60 : vector<8x128xf32> to vector<1x8x128xf32>
    %63 = vector.broadcast %61 : vector<16x1x128xf32> to vector<16x8x128xf32>
    %64 = vector.broadcast %62 : vector<1x8x128xf32> to vector<16x8x128xf32>
    %65 = arith.addf %63, %64 : vector<16x8x128xf32>
    %66 = arith.addf %65, %34 : vector<16x8x128xf32>
    %cst_28 = arith.constant 0.000000e+00 : f32
    %67 = vector.broadcast %cst_28 : f32 to vector<16x8x128xf32>
    %68 = arith.maximumf %66, %67 : vector<16x8x128xf32>
    %69 = vector.shape_cast %68 : vector<16x8x128xf32> to vector<128x128xf32>
    %70 = arith.truncf %69 : vector<128x128xf32> to vector<128x128xbf16>
    %cst_29 = arith.constant dense<0.000000e+00> : vector<128x128xf32>
    %71 = tpu.matmul %70, %43, %cst_29 {dimension_numbers = #tpu.dot_dimension_numbers<[1], [0], [0], [1], [0, 0, 1, 1], [], []>} : vector<128x128xbf16>, vector<128x128xbf16>, vector<128x128xf32> -> vector<128x128xf32>
    %72 = vector.broadcast %44 : vector<1x128xf32> to vector<128x128xf32>
    %73 = arith.addf %71, %72 : vector<128x128xf32>
    %cst_30 = arith.constant 0.000000e+00 : f32
    %74 = vector.broadcast %cst_30 : f32 to vector<128x128xf32>
    %75 = arith.maximumf %73, %74 : vector<128x128xf32>
    %76 = vector.shape_cast %75 : vector<128x128xf32> to vector<16x8x128xf32>
    %77 = arith.mulf %40, %76 : vector<16x8x128xf32>
    %cst_31 = arith.constant dense<0.000000e+00> : vector<16x128xf32>
    %78 = vector.multi_reduction <add>, %77, %cst_31 [1] : vector<16x8x128xf32> to vector<16x128xf32>
    %cst_32 = arith.constant dense<0.000000e+00> : vector<16x128xf32>
    %79 = tpu.matmul %78, %45, %cst_32 {dimension_numbers = #tpu.dot_dimension_numbers<[1], [0], [0], [1], [0, 0, 1, 1], [], []>} : vector<16x128xf32>, vector<128x128xf32>, vector<16x128xf32> -> vector<16x128xf32>
    %cst_33 = arith.constant dense<0.000000e+00> : vector<16x128xf32>
    %80 = tpu.matmul %54, %46, %cst_33 {dimension_numbers = #tpu.dot_dimension_numbers<[1], [0], [0], [1], [0, 0, 1, 1], [], []>} : vector<16x32xf32>, vector<32x128xf32>, vector<16x128xf32> -> vector<16x128xf32>
    %81 = arith.addf %79, %80 : vector<16x128xf32>
    %82 = arith.addf %81, %53 : vector<16x128xf32>
    %83 = vector.extract_strided_slice %82 {offsets = [0, 0], sizes = [16, 64], strides = [1, 1]} : vector<16x128xf32> to vector<16x64xf32>
    %84 = arith.negf %83 : vector<16x64xf32>
    %85 = math.exp %84 : vector<16x64xf32>
    %cst_34 = arith.constant 1.000000e+00 : f32
    %86 = vector.broadcast %cst_34 : f32 to vector<16x64xf32>
    %87 = arith.addf %86, %85 : vector<16x64xf32>
    %88 = arith.divf %86, %87 : vector<16x64xf32>
    %89 = vector.extract_strided_slice %88 {offsets = [0, 0], sizes = [16, 32], strides = [1, 1]} : vector<16x64xf32> to vector<16x32xf32>
    %90 = vector.extract_strided_slice %88 {offsets = [0, 32], sizes = [16, 32], strides = [1, 1]} : vector<16x64xf32> to vector<16x32xf32>
    %91 = vector.extract_strided_slice %82 {offsets = [0, 64], sizes = [16, 32], strides = [1, 1]} : vector<16x128xf32> to vector<16x32xf32>
    %92 = vector.extract_strided_slice %82 {offsets = [0, 96], sizes = [16, 32], strides = [1, 1]} : vector<16x128xf32> to vector<16x32xf32>
    %93 = arith.mulf %89, %92 : vector<16x32xf32>
    %94 = arith.addf %91, %93 : vector<16x32xf32>
    %95 = math.tanh %94 : vector<16x32xf32>
    %cst_35 = arith.constant 1.000000e+00 : f32
    %96 = vector.broadcast %cst_35 : f32 to vector<16x32xf32>
    %97 = arith.subf %96, %90 : vector<16x32xf32>
    %98 = arith.mulf %97, %95 : vector<16x32xf32>
    %99 = arith.mulf %90, %54 : vector<16x32xf32>
    %100 = arith.addf %98, %99 : vector<16x32xf32>
    %c1_i32 = arith.constant 1 : i32
    %101 = arith.truncf %100 : vector<16x32xf32> to vector<16x32xbf16>
    %cst_36 = arith.constant dense<0.000000e+00> : vector<16x128xf32>
    %102 = tpu.matmul %101, %41, %cst_36 {dimension_numbers = #tpu.dot_dimension_numbers<[1], [0], [0], [1], [0, 0, 1, 1], [], []>} : vector<16x32xbf16>, vector<32x128xbf16>, vector<16x128xf32> -> vector<16x128xf32>
    %cst_37 = arith.constant dense<0.000000e+00> : vector<16x64xf32>
    %103 = tpu.matmul %101, %42, %cst_37 {dimension_numbers = #tpu.dot_dimension_numbers<[1], [0], [0], [1], [0, 0, 1, 1], [], []>} : vector<16x32xbf16>, vector<32x64xbf16>, vector<16x64xf32> -> vector<16x64xf32>
    %104 = vector.extract_strided_slice %103 {offsets = [0, 0], sizes = [8, 64], strides = [1, 1]} : vector<16x64xf32> to vector<8x64xf32>
    %105 = vector.extract_strided_slice %103 {offsets = [8, 0], sizes = [8, 64], strides = [1, 1]} : vector<16x64xf32> to vector<8x64xf32>
    %106 = tpu.concatenate %104, %105 in 1 : vector<8x64xf32>, vector<8x64xf32> -> vector<8x128xf32>
    %107 = vector.shape_cast %102 : vector<16x128xf32> to vector<16x1x128xf32>
    %108 = vector.shape_cast %106 : vector<8x128xf32> to vector<1x8x128xf32>
    %109 = vector.broadcast %107 : vector<16x1x128xf32> to vector<16x8x128xf32>
    %110 = vector.broadcast %108 : vector<1x8x128xf32> to vector<16x8x128xf32>
    %111 = arith.addf %109, %110 : vector<16x8x128xf32>
    %112 = arith.addf %111, %34 : vector<16x8x128xf32>
    %cst_38 = arith.constant 0.000000e+00 : f32
    %113 = vector.broadcast %cst_38 : f32 to vector<16x8x128xf32>
    %114 = arith.maximumf %112, %113 : vector<16x8x128xf32>
    %115 = vector.shape_cast %114 : vector<16x8x128xf32> to vector<128x128xf32>
    %116 = arith.truncf %115 : vector<128x128xf32> to vector<128x128xbf16>
    %cst_39 = arith.constant dense<0.000000e+00> : vector<128x128xf32>
    %117 = tpu.matmul %116, %43, %cst_39 {dimension_numbers = #tpu.dot_dimension_numbers<[1], [0], [0], [1], [0, 0, 1, 1], [], []>} : vector<128x128xbf16>, vector<128x128xbf16>, vector<128x128xf32> -> vector<128x128xf32>
    %118 = vector.broadcast %44 : vector<1x128xf32> to vector<128x128xf32>
    %119 = arith.addf %117, %118 : vector<128x128xf32>
    %cst_40 = arith.constant 0.000000e+00 : f32
    %120 = vector.broadcast %cst_40 : f32 to vector<128x128xf32>
    %121 = arith.maximumf %119, %120 : vector<128x128xf32>
    %122 = vector.shape_cast %121 : vector<128x128xf32> to vector<16x8x128xf32>
    %123 = arith.mulf %40, %122 : vector<16x8x128xf32>
    %cst_41 = arith.constant dense<0.000000e+00> : vector<16x128xf32>
    %124 = vector.multi_reduction <add>, %123, %cst_41 [1] : vector<16x8x128xf32> to vector<16x128xf32>
    %cst_42 = arith.constant dense<0.000000e+00> : vector<16x128xf32>
    %125 = tpu.matmul %124, %45, %cst_42 {dimension_numbers = #tpu.dot_dimension_numbers<[1], [0], [0], [1], [0, 0, 1, 1], [], []>} : vector<16x128xf32>, vector<128x128xf32>, vector<16x128xf32> -> vector<16x128xf32>
    %cst_43 = arith.constant dense<0.000000e+00> : vector<16x128xf32>
    %126 = tpu.matmul %100, %46, %cst_43 {dimension_numbers = #tpu.dot_dimension_numbers<[1], [0], [0], [1], [0, 0, 1, 1], [], []>} : vector<16x32xf32>, vector<32x128xf32>, vector<16x128xf32> -> vector<16x128xf32>
    %127 = arith.addf %125, %126 : vector<16x128xf32>
    %128 = arith.addf %127, %53 : vector<16x128xf32>
    %129 = vector.extract_strided_slice %128 {offsets = [0, 0], sizes = [16, 64], strides = [1, 1]} : vector<16x128xf32> to vector<16x64xf32>
    %130 = arith.negf %129 : vector<16x64xf32>
    %131 = math.exp %130 : vector<16x64xf32>
    %cst_44 = arith.constant 1.000000e+00 : f32
    %132 = vector.broadcast %cst_44 : f32 to vector<16x64xf32>
    %133 = arith.addf %132, %131 : vector<16x64xf32>
    %134 = arith.divf %132, %133 : vector<16x64xf32>
    %135 = vector.extract_strided_slice %134 {offsets = [0, 0], sizes = [16, 32], strides = [1, 1]} : vector<16x64xf32> to vector<16x32xf32>
    %136 = vector.extract_strided_slice %134 {offsets = [0, 32], sizes = [16, 32], strides = [1, 1]} : vector<16x64xf32> to vector<16x32xf32>
    %137 = vector.extract_strided_slice %128 {offsets = [0, 64], sizes = [16, 32], strides = [1, 1]} : vector<16x128xf32> to vector<16x32xf32>
    %138 = vector.extract_strided_slice %128 {offsets = [0, 96], sizes = [16, 32], strides = [1, 1]} : vector<16x128xf32> to vector<16x32xf32>
    %139 = arith.mulf %135, %138 : vector<16x32xf32>
    %140 = arith.addf %137, %139 : vector<16x32xf32>
    %141 = math.tanh %140 : vector<16x32xf32>
    %cst_45 = arith.constant 1.000000e+00 : f32
    %142 = vector.broadcast %cst_45 : f32 to vector<16x32xf32>
    %143 = arith.subf %142, %136 : vector<16x32xf32>
    %144 = arith.mulf %143, %141 : vector<16x32xf32>
    %145 = arith.mulf %136, %100 : vector<16x32xf32>
    %146 = arith.addf %144, %145 : vector<16x32xf32>
    %c2_i32 = arith.constant 2 : i32
    %147 = arith.truncf %146 : vector<16x32xf32> to vector<16x32xbf16>
    %cst_46 = arith.constant dense<0.000000e+00> : vector<16x128xf32>
    %148 = tpu.matmul %147, %41, %cst_46 {dimension_numbers = #tpu.dot_dimension_numbers<[1], [0], [0], [1], [0, 0, 1, 1], [], []>} : vector<16x32xbf16>, vector<32x128xbf16>, vector<16x128xf32> -> vector<16x128xf32>
    %cst_47 = arith.constant dense<0.000000e+00> : vector<16x64xf32>
    %149 = tpu.matmul %147, %42, %cst_47 {dimension_numbers = #tpu.dot_dimension_numbers<[1], [0], [0], [1], [0, 0, 1, 1], [], []>} : vector<16x32xbf16>, vector<32x64xbf16>, vector<16x64xf32> -> vector<16x64xf32>
    %150 = vector.extract_strided_slice %149 {offsets = [0, 0], sizes = [8, 64], strides = [1, 1]} : vector<16x64xf32> to vector<8x64xf32>
    %151 = vector.extract_strided_slice %149 {offsets = [8, 0], sizes = [8, 64], strides = [1, 1]} : vector<16x64xf32> to vector<8x64xf32>
    %152 = tpu.concatenate %150, %151 in 1 : vector<8x64xf32>, vector<8x64xf32> -> vector<8x128xf32>
    %153 = vector.shape_cast %148 : vector<16x128xf32> to vector<16x1x128xf32>
    %154 = vector.shape_cast %152 : vector<8x128xf32> to vector<1x8x128xf32>
    %155 = vector.broadcast %153 : vector<16x1x128xf32> to vector<16x8x128xf32>
    %156 = vector.broadcast %154 : vector<1x8x128xf32> to vector<16x8x128xf32>
    %157 = arith.addf %155, %156 : vector<16x8x128xf32>
    %158 = arith.addf %157, %34 : vector<16x8x128xf32>
    %cst_48 = arith.constant 0.000000e+00 : f32
    %159 = vector.broadcast %cst_48 : f32 to vector<16x8x128xf32>
    %160 = arith.maximumf %158, %159 : vector<16x8x128xf32>
    %161 = vector.shape_cast %160 : vector<16x8x128xf32> to vector<128x128xf32>
    %162 = arith.truncf %161 : vector<128x128xf32> to vector<128x128xbf16>
    %cst_49 = arith.constant dense<0.000000e+00> : vector<128x128xf32>
    %163 = tpu.matmul %162, %43, %cst_49 {dimension_numbers = #tpu.dot_dimension_numbers<[1], [0], [0], [1], [0, 0, 1, 1], [], []>} : vector<128x128xbf16>, vector<128x128xbf16>, vector<128x128xf32> -> vector<128x128xf32>
    %164 = vector.broadcast %44 : vector<1x128xf32> to vector<128x128xf32>
    %165 = arith.addf %163, %164 : vector<128x128xf32>
    %cst_50 = arith.constant 0.000000e+00 : f32
    %166 = vector.broadcast %cst_50 : f32 to vector<128x128xf32>
    %167 = arith.maximumf %165, %166 : vector<128x128xf32>
    %168 = vector.shape_cast %167 : vector<128x128xf32> to vector<16x8x128xf32>
    %169 = arith.mulf %40, %168 : vector<16x8x128xf32>
    %cst_51 = arith.constant dense<0.000000e+00> : vector<16x128xf32>
    %170 = vector.multi_reduction <add>, %169, %cst_51 [1] : vector<16x8x128xf32> to vector<16x128xf32>
    %cst_52 = arith.constant dense<0.000000e+00> : vector<16x128xf32>
    %171 = tpu.matmul %170, %45, %cst_52 {dimension_numbers = #tpu.dot_dimension_numbers<[1], [0], [0], [1], [0, 0, 1, 1], [], []>} : vector<16x128xf32>, vector<128x128xf32>, vector<16x128xf32> -> vector<16x128xf32>
    %cst_53 = arith.constant dense<0.000000e+00> : vector<16x128xf32>
    %172 = tpu.matmul %146, %46, %cst_53 {dimension_numbers = #tpu.dot_dimension_numbers<[1], [0], [0], [1], [0, 0, 1, 1], [], []>} : vector<16x32xf32>, vector<32x128xf32>, vector<16x128xf32> -> vector<16x128xf32>
    %173 = arith.addf %171, %172 : vector<16x128xf32>
    %174 = arith.addf %173, %53 : vector<16x128xf32>
    %175 = vector.extract_strided_slice %174 {offsets = [0, 0], sizes = [16, 64], strides = [1, 1]} : vector<16x128xf32> to vector<16x64xf32>
    %176 = arith.negf %175 : vector<16x64xf32>
    %177 = math.exp %176 : vector<16x64xf32>
    %cst_54 = arith.constant 1.000000e+00 : f32
    %178 = vector.broadcast %cst_54 : f32 to vector<16x64xf32>
    %179 = arith.addf %178, %177 : vector<16x64xf32>
    %180 = arith.divf %178, %179 : vector<16x64xf32>
    %181 = vector.extract_strided_slice %180 {offsets = [0, 0], sizes = [16, 32], strides = [1, 1]} : vector<16x64xf32> to vector<16x32xf32>
    %182 = vector.extract_strided_slice %180 {offsets = [0, 32], sizes = [16, 32], strides = [1, 1]} : vector<16x64xf32> to vector<16x32xf32>
    %183 = vector.extract_strided_slice %174 {offsets = [0, 64], sizes = [16, 32], strides = [1, 1]} : vector<16x128xf32> to vector<16x32xf32>
    %184 = vector.extract_strided_slice %174 {offsets = [0, 96], sizes = [16, 32], strides = [1, 1]} : vector<16x128xf32> to vector<16x32xf32>
    %185 = arith.mulf %181, %184 : vector<16x32xf32>
    %186 = arith.addf %183, %185 : vector<16x32xf32>
    %187 = math.tanh %186 : vector<16x32xf32>
    %cst_55 = arith.constant 1.000000e+00 : f32
    %188 = vector.broadcast %cst_55 : f32 to vector<16x32xf32>
    %189 = arith.subf %188, %182 : vector<16x32xf32>
    %190 = arith.mulf %189, %187 : vector<16x32xf32>
    %191 = arith.mulf %182, %146 : vector<16x32xf32>
    %192 = arith.addf %190, %191 : vector<16x32xf32>
    %c3_i32 = arith.constant 3 : i32
    %193 = arith.truncf %192 : vector<16x32xf32> to vector<16x32xbf16>
    %cst_56 = arith.constant dense<0.000000e+00> : vector<16x128xf32>
    %194 = tpu.matmul %193, %41, %cst_56 {dimension_numbers = #tpu.dot_dimension_numbers<[1], [0], [0], [1], [0, 0, 1, 1], [], []>} : vector<16x32xbf16>, vector<32x128xbf16>, vector<16x128xf32> -> vector<16x128xf32>
    %cst_57 = arith.constant dense<0.000000e+00> : vector<16x64xf32>
    %195 = tpu.matmul %193, %42, %cst_57 {dimension_numbers = #tpu.dot_dimension_numbers<[1], [0], [0], [1], [0, 0, 1, 1], [], []>} : vector<16x32xbf16>, vector<32x64xbf16>, vector<16x64xf32> -> vector<16x64xf32>
    %196 = vector.extract_strided_slice %195 {offsets = [0, 0], sizes = [8, 64], strides = [1, 1]} : vector<16x64xf32> to vector<8x64xf32>
    %197 = vector.extract_strided_slice %195 {offsets = [8, 0], sizes = [8, 64], strides = [1, 1]} : vector<16x64xf32> to vector<8x64xf32>
    %198 = tpu.concatenate %196, %197 in 1 : vector<8x64xf32>, vector<8x64xf32> -> vector<8x128xf32>
    %199 = vector.shape_cast %194 : vector<16x128xf32> to vector<16x1x128xf32>
    %200 = vector.shape_cast %198 : vector<8x128xf32> to vector<1x8x128xf32>
    %201 = vector.broadcast %199 : vector<16x1x128xf32> to vector<16x8x128xf32>
    %202 = vector.broadcast %200 : vector<1x8x128xf32> to vector<16x8x128xf32>
    %203 = arith.addf %201, %202 : vector<16x8x128xf32>
    %204 = arith.addf %203, %34 : vector<16x8x128xf32>
    %cst_58 = arith.constant 0.000000e+00 : f32
    %205 = vector.broadcast %cst_58 : f32 to vector<16x8x128xf32>
    %206 = arith.maximumf %204, %205 : vector<16x8x128xf32>
    %207 = vector.shape_cast %206 : vector<16x8x128xf32> to vector<128x128xf32>
    %208 = arith.truncf %207 : vector<128x128xf32> to vector<128x128xbf16>
    %cst_59 = arith.constant dense<0.000000e+00> : vector<128x128xf32>
    %209 = tpu.matmul %208, %43, %cst_59 {dimension_numbers = #tpu.dot_dimension_numbers<[1], [0], [0], [1], [0, 0, 1, 1], [], []>} : vector<128x128xbf16>, vector<128x128xbf16>, vector<128x128xf32> -> vector<128x128xf32>
    %210 = vector.broadcast %44 : vector<1x128xf32> to vector<128x128xf32>
    %211 = arith.addf %209, %210 : vector<128x128xf32>
    %cst_60 = arith.constant 0.000000e+00 : f32
    %212 = vector.broadcast %cst_60 : f32 to vector<128x128xf32>
    %213 = arith.maximumf %211, %212 : vector<128x128xf32>
    %214 = vector.shape_cast %213 : vector<128x128xf32> to vector<16x8x128xf32>
    %215 = arith.mulf %40, %214 : vector<16x8x128xf32>
    %cst_61 = arith.constant dense<0.000000e+00> : vector<16x128xf32>
    %216 = vector.multi_reduction <add>, %215, %cst_61 [1] : vector<16x8x128xf32> to vector<16x128xf32>
    %cst_62 = arith.constant dense<0.000000e+00> : vector<16x128xf32>
    %217 = tpu.matmul %216, %45, %cst_62 {dimension_numbers = #tpu.dot_dimension_numbers<[1], [0], [0], [1], [0, 0, 1, 1], [], []>} : vector<16x128xf32>, vector<128x128xf32>, vector<16x128xf32> -> vector<16x128xf32>
    %cst_63 = arith.constant dense<0.000000e+00> : vector<16x128xf32>
    %218 = tpu.matmul %192, %46, %cst_63 {dimension_numbers = #tpu.dot_dimension_numbers<[1], [0], [0], [1], [0, 0, 1, 1], [], []>} : vector<16x32xf32>, vector<32x128xf32>, vector<16x128xf32> -> vector<16x128xf32>
    %219 = arith.addf %217, %218 : vector<16x128xf32>
    %220 = arith.addf %219, %53 : vector<16x128xf32>
    %221 = vector.extract_strided_slice %220 {offsets = [0, 0], sizes = [16, 64], strides = [1, 1]} : vector<16x128xf32> to vector<16x64xf32>
    %222 = arith.negf %221 : vector<16x64xf32>
    %223 = math.exp %222 : vector<16x64xf32>
    %cst_64 = arith.constant 1.000000e+00 : f32
    %224 = vector.broadcast %cst_64 : f32 to vector<16x64xf32>
    %225 = arith.addf %224, %223 : vector<16x64xf32>
    %226 = arith.divf %224, %225 : vector<16x64xf32>
    %227 = vector.extract_strided_slice %226 {offsets = [0, 0], sizes = [16, 32], strides = [1, 1]} : vector<16x64xf32> to vector<16x32xf32>
    %228 = vector.extract_strided_slice %226 {offsets = [0, 32], sizes = [16, 32], strides = [1, 1]} : vector<16x64xf32> to vector<16x32xf32>
    %229 = vector.extract_strided_slice %220 {offsets = [0, 64], sizes = [16, 32], strides = [1, 1]} : vector<16x128xf32> to vector<16x32xf32>
    %230 = vector.extract_strided_slice %220 {offsets = [0, 96], sizes = [16, 32], strides = [1, 1]} : vector<16x128xf32> to vector<16x32xf32>
    %231 = arith.mulf %227, %230 : vector<16x32xf32>
    %232 = arith.addf %229, %231 : vector<16x32xf32>
    %233 = math.tanh %232 : vector<16x32xf32>
    %cst_65 = arith.constant 1.000000e+00 : f32
    %234 = vector.broadcast %cst_65 : f32 to vector<16x32xf32>
    %235 = arith.subf %234, %228 : vector<16x32xf32>
    %236 = arith.mulf %235, %233 : vector<16x32xf32>
    %237 = arith.mulf %228, %192 : vector<16x32xf32>
    %238 = arith.addf %236, %237 : vector<16x32xf32>
    %c4_i32 = arith.constant 4 : i32
    %239 = arith.truncf %238 : vector<16x32xf32> to vector<16x32xbf16>
    %cst_66 = arith.constant dense<0.000000e+00> : vector<16x128xf32>
    %240 = tpu.matmul %239, %41, %cst_66 {dimension_numbers = #tpu.dot_dimension_numbers<[1], [0], [0], [1], [0, 0, 1, 1], [], []>} : vector<16x32xbf16>, vector<32x128xbf16>, vector<16x128xf32> -> vector<16x128xf32>
    %cst_67 = arith.constant dense<0.000000e+00> : vector<16x64xf32>
    %241 = tpu.matmul %239, %42, %cst_67 {dimension_numbers = #tpu.dot_dimension_numbers<[1], [0], [0], [1], [0, 0, 1, 1], [], []>} : vector<16x32xbf16>, vector<32x64xbf16>, vector<16x64xf32> -> vector<16x64xf32>
    %242 = vector.extract_strided_slice %241 {offsets = [0, 0], sizes = [8, 64], strides = [1, 1]} : vector<16x64xf32> to vector<8x64xf32>
    %243 = vector.extract_strided_slice %241 {offsets = [8, 0], sizes = [8, 64], strides = [1, 1]} : vector<16x64xf32> to vector<8x64xf32>
    %244 = tpu.concatenate %242, %243 in 1 : vector<8x64xf32>, vector<8x64xf32> -> vector<8x128xf32>
    %245 = vector.shape_cast %240 : vector<16x128xf32> to vector<16x1x128xf32>
    %246 = vector.shape_cast %244 : vector<8x128xf32> to vector<1x8x128xf32>
    %247 = vector.broadcast %245 : vector<16x1x128xf32> to vector<16x8x128xf32>
    %248 = vector.broadcast %246 : vector<1x8x128xf32> to vector<16x8x128xf32>
    %249 = arith.addf %247, %248 : vector<16x8x128xf32>
    %250 = arith.addf %249, %34 : vector<16x8x128xf32>
    %cst_68 = arith.constant 0.000000e+00 : f32
    %251 = vector.broadcast %cst_68 : f32 to vector<16x8x128xf32>
    %252 = arith.maximumf %250, %251 : vector<16x8x128xf32>
    %253 = vector.shape_cast %252 : vector<16x8x128xf32> to vector<128x128xf32>
    %254 = arith.truncf %253 : vector<128x128xf32> to vector<128x128xbf16>
    %cst_69 = arith.constant dense<0.000000e+00> : vector<128x128xf32>
    %255 = tpu.matmul %254, %43, %cst_69 {dimension_numbers = #tpu.dot_dimension_numbers<[1], [0], [0], [1], [0, 0, 1, 1], [], []>} : vector<128x128xbf16>, vector<128x128xbf16>, vector<128x128xf32> -> vector<128x128xf32>
    %256 = vector.broadcast %44 : vector<1x128xf32> to vector<128x128xf32>
    %257 = arith.addf %255, %256 : vector<128x128xf32>
    %cst_70 = arith.constant 0.000000e+00 : f32
    %258 = vector.broadcast %cst_70 : f32 to vector<128x128xf32>
    %259 = arith.maximumf %257, %258 : vector<128x128xf32>
    %260 = vector.shape_cast %259 : vector<128x128xf32> to vector<16x8x128xf32>
    %261 = arith.mulf %40, %260 : vector<16x8x128xf32>
    %cst_71 = arith.constant dense<0.000000e+00> : vector<16x128xf32>
    %262 = vector.multi_reduction <add>, %261, %cst_71 [1] : vector<16x8x128xf32> to vector<16x128xf32>
    %cst_72 = arith.constant dense<0.000000e+00> : vector<16x128xf32>
    %263 = tpu.matmul %262, %45, %cst_72 {dimension_numbers = #tpu.dot_dimension_numbers<[1], [0], [0], [1], [0, 0, 1, 1], [], []>} : vector<16x128xf32>, vector<128x128xf32>, vector<16x128xf32> -> vector<16x128xf32>
    %cst_73 = arith.constant dense<0.000000e+00> : vector<16x128xf32>
    %264 = tpu.matmul %238, %46, %cst_73 {dimension_numbers = #tpu.dot_dimension_numbers<[1], [0], [0], [1], [0, 0, 1, 1], [], []>} : vector<16x32xf32>, vector<32x128xf32>, vector<16x128xf32> -> vector<16x128xf32>
    %265 = arith.addf %263, %264 : vector<16x128xf32>
    %266 = arith.addf %265, %53 : vector<16x128xf32>
    %267 = vector.extract_strided_slice %266 {offsets = [0, 0], sizes = [16, 64], strides = [1, 1]} : vector<16x128xf32> to vector<16x64xf32>
    %268 = arith.negf %267 : vector<16x64xf32>
    %269 = math.exp %268 : vector<16x64xf32>
    %cst_74 = arith.constant 1.000000e+00 : f32
    %270 = vector.broadcast %cst_74 : f32 to vector<16x64xf32>
    %271 = arith.addf %270, %269 : vector<16x64xf32>
    %272 = arith.divf %270, %271 : vector<16x64xf32>
    %273 = vector.extract_strided_slice %272 {offsets = [0, 0], sizes = [16, 32], strides = [1, 1]} : vector<16x64xf32> to vector<16x32xf32>
    %274 = vector.extract_strided_slice %272 {offsets = [0, 32], sizes = [16, 32], strides = [1, 1]} : vector<16x64xf32> to vector<16x32xf32>
    %275 = vector.extract_strided_slice %266 {offsets = [0, 64], sizes = [16, 32], strides = [1, 1]} : vector<16x128xf32> to vector<16x32xf32>
    %276 = vector.extract_strided_slice %266 {offsets = [0, 96], sizes = [16, 32], strides = [1, 1]} : vector<16x128xf32> to vector<16x32xf32>
    %277 = arith.mulf %273, %276 : vector<16x32xf32>
    %278 = arith.addf %275, %277 : vector<16x32xf32>
    %279 = math.tanh %278 : vector<16x32xf32>
    %cst_75 = arith.constant 1.000000e+00 : f32
    %280 = vector.broadcast %cst_75 : f32 to vector<16x32xf32>
    %281 = arith.subf %280, %274 : vector<16x32xf32>
    %282 = arith.mulf %281, %279 : vector<16x32xf32>
    %283 = arith.mulf %274, %238 : vector<16x32xf32>
    %284 = arith.addf %282, %283 : vector<16x32xf32>
    %c0_76 = arith.constant 0 : index
    %c0_77 = arith.constant 0 : index
    %285 = vector.load %arg10[%c0_76, %c0_77] : memref<33x64xf32, #tpu.memory_space<vmem>>, vector<32x64xf32>
    %c32 = arith.constant 32 : index
    %c0_78 = arith.constant 0 : index
    %286 = vector.load %arg10[%c32, %c0_78] : memref<33x64xf32, #tpu.memory_space<vmem>>, vector<1x64xf32>
    %c0_79 = arith.constant 0 : index
    %c0_80 = arith.constant 0 : index
    %287 = vector.load %arg11[%c0_79, %c0_80] : memref<65x64xf32, #tpu.memory_space<vmem>>, vector<64x64xf32>
    %c64 = arith.constant 64 : index
    %c0_81 = arith.constant 0 : index
    %288 = vector.load %arg11[%c64, %c0_81] : memref<65x64xf32, #tpu.memory_space<vmem>>, vector<1x64xf32>
    %c0_82 = arith.constant 0 : index
    %c0_83 = arith.constant 0 : index
    %289 = vector.load %arg12[%c0_82, %c0_83] : memref<65x2xf32, #tpu.memory_space<vmem>>, vector<64x2xf32>
    %c64_84 = arith.constant 64 : index
    %c0_85 = arith.constant 0 : index
    %290 = vector.load %arg12[%c64_84, %c0_85] : memref<65x2xf32, #tpu.memory_space<vmem>>, vector<1x2xf32>
    %cst_86 = arith.constant dense<0.000000e+00> : vector<16x64xf32>
    %291 = tpu.matmul %284, %285, %cst_86 {dimension_numbers = #tpu.dot_dimension_numbers<[1], [0], [0], [1], [0, 0, 1, 1], [], []>} : vector<16x32xf32>, vector<32x64xf32>, vector<16x64xf32> -> vector<16x64xf32>
    %292 = vector.broadcast %286 : vector<1x64xf32> to vector<16x64xf32>
    %293 = arith.addf %291, %292 : vector<16x64xf32>
    %cst_87 = arith.constant 0.000000e+00 : f32
    %294 = vector.broadcast %cst_87 : f32 to vector<16x64xf32>
    %295 = arith.maximumf %293, %294 : vector<16x64xf32>
    %cst_88 = arith.constant dense<0.000000e+00> : vector<16x64xf32>
    %296 = tpu.matmul %295, %287, %cst_88 {dimension_numbers = #tpu.dot_dimension_numbers<[1], [0], [0], [1], [0, 0, 1, 1], [], []>} : vector<16x64xf32>, vector<64x64xf32>, vector<16x64xf32> -> vector<16x64xf32>
    %297 = vector.broadcast %288 : vector<1x64xf32> to vector<16x64xf32>
    %298 = arith.addf %296, %297 : vector<16x64xf32>
    %cst_89 = arith.constant 0.000000e+00 : f32
    %299 = vector.broadcast %cst_89 : f32 to vector<16x64xf32>
    %300 = arith.maximumf %298, %299 : vector<16x64xf32>
    %cst_90 = arith.constant dense<0.000000e+00> : vector<16x2xf32>
    %301 = tpu.matmul %300, %289, %cst_90 {dimension_numbers = #tpu.dot_dimension_numbers<[1], [0], [0], [1], [0, 0, 1, 1], [], []>} : vector<16x64xf32>, vector<64x2xf32>, vector<16x2xf32> -> vector<16x2xf32>
    %302 = vector.broadcast %290 : vector<1x2xf32> to vector<16x2xf32>
    %303 = arith.addf %301, %302 : vector<16x2xf32>
    %c0_91 = arith.constant 0 : index
    %c0_92 = arith.constant 0 : index
    %304 = vector.load %arg13[%c0_91, %c0_92] : memref<16x2xf32, #tpu.memory_space<vmem>>, vector<16x2xf32>
    tpu.vector_store %arg13[%c0_91, %c0_92], %303 {strides = array<i32>} : memref<16x2xf32, #tpu.memory_space<vmem>>, vector<16x2xf32>,
    return
  }
}

</mosaic_0001>

<llo_original>
// kernel: tpu_custom_call.1
$region0: #{tpu_custom_call.1}
  #allocation0 [shape = 'u32[]', space=smem, size = 0x4, offset = 0x4, fixed_abs, tag = 'smem constant byte address 0x4 - core index']
  #allocation1 [shape = 'u32[72,128]{1,0:T(1,128)}', space=vmem, size = 0x9000, scoped, tag = 'internal scratch']
  %s0 = inlined_call_operand.hbm [shape: f32[16,16], index: 0, kind: input, shape index: {}]
  %s1 = inlined_call_operand.vmem [shape: f32[16,1], index: 1, kind: input, shape index: {}]
  %s2 = inlined_call_operand.hbm [shape: bf16[32,128], index: 2, kind: input, shape index: {}]
  %s3 = inlined_call_operand.hbm [shape: bf16[32,64], index: 3, kind: input, shape index: {}]
  %s4 = inlined_call_operand.vmem [shape: f32[4,64], index: 4, kind: input, shape index: {}]
  %s5 = inlined_call_operand.vmem [shape: bf16[128,128], index: 5, kind: input, shape index: {}]
  %s6 = inlined_call_operand.vmem [shape: f32[1,128], index: 6, kind: input, shape index: {}]
  %s7 = inlined_call_operand.vmem [shape: f32[128,128], index: 7, kind: input, shape index: {}]
  %s8 = inlined_call_operand.vmem [shape: f32[32,128], index: 8, kind: input, shape index: {}]
  %s9 = inlined_call_operand.vmem [shape: f32[2,128], index: 9, kind: input, shape index: {}]
  %s10 = inlined_call_operand.hbm [shape: f32[33,64], index: 10, kind: input, shape index: {}]
  %s11 = inlined_call_operand.vmem [shape: f32[65,64], index: 11, kind: input, shape index: {}]
  %s12 = inlined_call_operand.vmem [shape: f32[65,2], index: 12, kind: input, shape index: {}]
  %s13 = inlined_call_operand.vmem [shape: f32[16,2], index: 13, kind: output, shape index: {}]
  %s14 = sld [smem:[#allocation0]]
  $region78: #{tpu_custom_call.1} parent=0
    _
  %s16 = ssub.s32 1, %s14
  %s17 = scalar_select 0, %s16, %s14
  $region1: #{tpu_custom_call.1} parent=0
    #allocation2 [shape = 'u8[8192]{0}', space=vmem, size = 0x2000, scoped, tag = 'input window, operand 0, single buffered']
    #allocation3 [shape = 's32[1]{0}', space=sflag, size = 0x4, scoped, tag = 'scoped memory for tpu_custom_call.1']
    #allocation4 [shape = 'u8[8192]{0}', space=vmem, size = 0x2000, scoped, tag = 'input window, operand 2, single buffered']
    #allocation5 [shape = 's32[1]{0}', space=sflag, size = 0x4, scoped, tag = 'scoped memory for tpu_custom_call.1']
    #allocation6 [shape = 'u8[8192]{0}', space=vmem, size = 0x2000, scoped, tag = 'input window, operand 3, single buffered']
    #allocation7 [shape = 'u8[20480]{0}', space=vmem, size = 0x5000, scoped, tag = 'input window, operand 10, single buffered']
    #allocation8 [shape = 's32[1]{0}', space=sflag, size = 0x4, scoped, tag = 'scoped memory for tpu_custom_call.1']
    %18 = vsyncpa [#allocation3], 0
    %19 = vsyncpa [#allocation5], 0
    %20 = vsyncpa [#allocation8], 0
    // Predicated region
    $region2: #{tpu_custom_call.1} parent=1 // pred_check
      _
    $region3: #{tpu_custom_call.1} parent=1 // pred_check_branch
      %22 = sbr.rel (0) target = $region5
    $region4: #{tpu_custom_call.1} parent=1 // pred_region
      %24 = vsyncadd [#allocation3], 0
      %s25 = sshll.u32 %s0, 4
      %s26 = int_to_ptr.hbm [resolvable:$true] %s25
      %s27 = sshll.u32 [#allocation2], 4
      %s28 = int_to_ptr.vmem [resolvable:$true] %s27
      %33 = dma.hbm_to_vmem [thread:$0]  %s26, 256, %s28, [#allocation3], 128, 128, 8
    $region5: #{tpu_custom_call.1} parent=1 // pred_fallthru
      _
    // Predicated region
    $region6: #{tpu_custom_call.1} parent=1 // pred_check
      _
    $region7: #{tpu_custom_call.1} parent=1 // pred_check_branch
      %35 = sbr.rel (0) target = $region9
    $region8: #{tpu_custom_call.1} parent=1 // pred_region
      _
    $region9: #{tpu_custom_call.1} parent=1 // pred_fallthru
      _
    // Predicated region
    $region10: #{tpu_custom_call.1} parent=1 // pred_check
      _
    $region11: #{tpu_custom_call.1} parent=1 // pred_check_branch
      %37 = sbr.rel (0) target = $region13
    $region12: #{tpu_custom_call.1} parent=1 // pred_region
      %39 = vsyncadd [#allocation5], 0
      %s40 = sshll.u32 %s2, 4
      %s41 = int_to_ptr.hbm [resolvable:$true] %s40
      %s42 = sshll.u32 [#allocation4], 4
      %s43 = int_to_ptr.vmem [resolvable:$true] %s42
      %48 = dma.hbm_to_vmem [thread:$0]  %s41, 256, %s43, [#allocation5], 64, 64, 4
    $region13: #{tpu_custom_call.1} parent=1 // pred_fallthru
      _
    // Predicated region
    $region14: #{tpu_custom_call.1} parent=1 // pred_check
      _
    $region15: #{tpu_custom_call.1} parent=1 // pred_check_branch
      %50 = sbr.rel (0) target = $region17
    $region16: #{tpu_custom_call.1} parent=1 // pred_region
      %52 = vsyncadd [#allocation5], 0
      %s53 = sshll.u32 %s3, 4
      %s54 = int_to_ptr.hbm [resolvable:$true] %s53
      %s55 = sshll.u32 [#allocation6], 4
      %s56 = int_to_ptr.vmem [resolvable:$true] %s55
      %61 = dma.hbm_to_vmem [thread:$0]  %s54, 256, %s56, [#allocation5], 64, 64, 4
    $region17: #{tpu_custom_call.1} parent=1 // pred_fallthru
      _
    // Predicated region
    $region18: #{tpu_custom_call.1} parent=1 // pred_check
      _
    $region19: #{tpu_custom_call.1} parent=1 // pred_check_branch
      %63 = sbr.rel (0) target = $region21
    $region20: #{tpu_custom_call.1} parent=1 // pred_region
      _
    $region21: #{tpu_custom_call.1} parent=1 // pred_fallthru
      _
    // Predicated region
    $region22: #{tpu_custom_call.1} parent=1 // pred_check
      _
    $region23: #{tpu_custom_call.1} parent=1 // pred_check_branch
      %65 = sbr.rel (0) target = $region25
    $region24: #{tpu_custom_call.1} parent=1 // pred_region
      _
    $region25: #{tpu_custom_call.1} parent=1 // pred_fallthru
      _
    // Predicated region
    $region26: #{tpu_custom_call.1} parent=1 // pred_check
      _
    $region27: #{tpu_custom_call.1} parent=1 // pred_check_branch
      %67 = sbr.rel (0) target = $region29
    $region28: #{tpu_custom_call.1} parent=1 // pred_region
      _
    $region29: #{tpu_custom_call.1} parent=1 // pred_fallthru
      _
    // Predicated region
    $region30: #{tpu_custom_call.1} parent=1 // pred_check
      _
    $region31: #{tpu_custom_call.1} parent=1 // pred_check_branch
      %69 = sbr.rel (0) target = $region33
    $region32: #{tpu_custom_call.1} parent=1 // pred_region
      _
    $region33: #{tpu_custom_call.1} parent=1 // pred_fallthru
      _
    // Predicated region
    $region34: #{tpu_custom_call.1} parent=1 // pred_check
      _
    $region35: #{tpu_custom_call.1} parent=1 // pred_check_branch
      %71 = sbr.rel (0) target = $region37
    $region36: #{tpu_custom_call.1} parent=1 // pred_region
      _
    $region37: #{tpu_custom_call.1} parent=1 // pred_fallthru
      _
    // Predicated region
    $region38: #{tpu_custom_call.1} parent=1 // pred_check
      _
    $region39: #{tpu_custom_call.1} parent=1 // pred_check_branch
      %73 = sbr.rel (0) target = $region41
    $region40: #{tpu_custom_call.1} parent=1 // pred_region
      _
    $region41: #{tpu_custom_call.1} parent=1 // pred_fallthru
      _
    // Predicated region
    $region42: #{tpu_custom_call.1} parent=1 // pred_check
      _
    $region43: #{tpu_custom_call.1} parent=1 // pred_check_branch
      %75 = sbr.rel (0) target = $region45
    $region44: #{tpu_custom_call.1} parent=1 // pred_region
      %77 = vsyncadd [#allocation8], 0
      %s78 = sshll.u32 %s10, 4
      %s79 = int_to_ptr.hbm [resolvable:$true] %s78
      %s80 = sshll.u32 [#allocation7], 4
      %s81 = int_to_ptr.vmem [resolvable:$true] %s80
      %86 = dma.hbm_to_vmem [thread:$0]  %s79, 640, %s81, [#allocation8], 128, 128, 8
    $region45: #{tpu_custom_call.1} parent=1 // pred_fallthru
      _
    // Predicated region
    $region46: #{tpu_custom_call.1} parent=1 // pred_check
      _
    $region47: #{tpu_custom_call.1} parent=1 // pred_check_branch
      %88 = sbr.rel (0) target = $region49
    $region48: #{tpu_custom_call.1} parent=1 // pred_region
      _
    $region49: #{tpu_custom_call.1} parent=1 // pred_fallthru
      _
    // Predicated region
    $region50: #{tpu_custom_call.1} parent=1 // pred_check
      _
    $region51: #{tpu_custom_call.1} parent=1 // pred_check_branch
      %90 = sbr.rel (0) target = $region53
    $region52: #{tpu_custom_call.1} parent=1 // pred_region
      _
    $region53: #{tpu_custom_call.1} parent=1 // pred_fallthru
      _
    // Predicated region
    $region54: #{tpu_custom_call.1} parent=1 // pred_check
      _
    $region55: #{tpu_custom_call.1} parent=1 // pred_check_branch
      %92 = sbr.rel (0) target = $region57
    $region56: #{tpu_custom_call.1} parent=1 // pred_region
      %94 = dma.done [#allocation3], 256
    $region57: #{tpu_custom_call.1} parent=1 // pred_fallthru
      _
    // Predicated region
    $region58: #{tpu_custom_call.1} parent=1 // pred_check
      _
    $region59: #{tpu_custom_call.1} parent=1 // pred_check_branch
      %96 = sbr.rel (0) target = $region61
    $region60: #{tpu_custom_call.1} parent=1 // pred_region
      %98 = dma.done [#allocation5], 256
    $region61: #{tpu_custom_call.1} parent=1 // pred_fallthru
      _
    // Predicated region
    $region62: #{tpu_custom_call.1} parent=1 // pred_check
      _
    $region63: #{tpu_custom_call.1} parent=1 // pred_check_branch
      %100 = sbr.rel (0) target = $region65
    $region64: #{tpu_custom_call.1} parent=1 // pred_region
      %102 = dma.done [#allocation5], 256
    $region65: #{tpu_custom_call.1} parent=1 // pred_fallthru
      _
    // Predicated region
    $region66: #{tpu_custom_call.1} parent=1 // pred_check
      _
    $region67: #{tpu_custom_call.1} parent=1 // pred_check_branch
      %104 = sbr.rel (0) target = $region69
    $region68: #{tpu_custom_call.1} parent=1 // pred_region
      %106 = dma.done [#allocation8], 640
    $region69: #{tpu_custom_call.1} parent=1 // pred_fallthru
      _
    %v108 = vld [vmem:[#allocation2] sm:$0xff]
    %v109 = vld [vmem:[#allocation2 + $0x8] sm:$0xff]
    %v110 = vld [vmem:[%s1] sm:$0xff]
    %v111 = vld [vmem:[%s1 + $0x8] sm:$0xff]
    %vm112 = vcmp.ne.f32.partialorder %v108, 0.0
    %vm113 = vcmp.ne.f32.partialorder %v109, 0.0
    %v114 = vsel %vm112, 1, 0
    %v115 = vsel %vm113, 1, 0
    %v116 = vcvt.s32.f32 %v114
    %v117 = vcvt.s32.f32 %v115
    %vm118 = vcmask 130048
    %v119 = vsel %vm118, %v116, 0.0
    %120 = vadd.xlane.f32.xlu0 %v119
    %v121 = vpop.xlane.xlu0 %120
    %v122 = vsel %vm118, %v117, 0.0
    %123 = vadd.xlane.f32.xlu0 %v122
    %v124 = vpop.xlane.xlu0 %123
    %v125 = vld [vmem:[%s4] sm:$0x1]
    %v126 = vld [vmem:[%s4 + $0x1] sm:$0x1]
    %v127 = vld [vmem:[%s4 + $0x2] sm:$0x1]
    %v128 = vld [vmem:[%s4 + $0x3] sm:$0x1]
    %130 = vset.pattern.permute.xlu0 0
    %131 = vperm.xlu0 %130, %v110
    %v132 = vpop.permute.xlu0 %131
    %135 = vset.pattern.permute.xlu0 0
    %136 = vperm.xlu0 %135, %v111
    %v137 = vpop.permute.xlu0 %136
    %v139 = vperm.slane %v126, 0
    %v140 = vmul.f32 %v132, %v139
    %v141 = vmul.f32 %v137, %v139
    %v142 = vperm.slane %v127, 0
    %v143 = vmul.f32 %v132, %v142
    %v144 = vmul.f32 %v137, %v142
    %v145 = vperm.slane %v108, 0
    %v146 = vlaneseq
    %v147 = vshrl.u32 %v146, 7
    %149 = vset.pattern.permute.xlu0 %v147
    %150 = vperm.xlu0 %149, %v145
    %v151 = vpop.permute.xlu0 %150
    %v152 = vlaneseq
    %v153 = vshrl.u32 %v152, 7
    %v154 = vadd.s32 %v153, 8
    %155 = vset.pattern.permute.xlu0 %v154
    %156 = vperm.xlu0 %155, %v145
    %v157 = vpop.permute.xlu0 %156
    %v158 = vperm.slane %v108, 1
    %v159 = vlaneseq
    %v160 = vshrl.u32 %v159, 7
    %162 = vset.pattern.permute.xlu0 %v160
    %163 = vperm.xlu0 %162, %v158
    %v164 = vpop.permute.xlu0 %163
    %v165 = vlaneseq
    %v166 = vshrl.u32 %v165, 7
    %v167 = vadd.s32 %v166, 8
    %168 = vset.pattern.permute.xlu0 %v167
    %169 = vperm.xlu0 %168, %v158
    %v170 = vpop.permute.xlu0 %169
    %v171 = vperm.slane %v108, 2
    %v172 = vlaneseq
    %v173 = vshrl.u32 %v172, 7
    %175 = vset.pattern.permute.xlu0 %v173
    %176 = vperm.xlu0 %175, %v171
    %v177 = vpop.permute.xlu0 %176
    %v178 = vlaneseq
    %v179 = vshrl.u32 %v178, 7
    %v180 = vadd.s32 %v179, 8
    %181 = vset.pattern.permute.xlu0 %v180
    %182 = vperm.xlu0 %181, %v171
    %v183 = vpop.permute.xlu0 %182
    %v184 = vperm.slane %v108, 3
    %v185 = vlaneseq
    %v186 = vshrl.u32 %v185, 7
    %188 = vset.pattern.permute.xlu0 %v186
    %189 = vperm.xlu0 %188, %v184
    %v190 = vpop.permute.xlu0 %189
    %v191 = vlaneseq
    %v192 = vshrl.u32 %v191, 7
    %v193 = vadd.s32 %v192, 8
    %194 = vset.pattern.permute.xlu0 %v193
    %195 = vperm.xlu0 %194, %v184
    %v196 = vpop.permute.xlu0 %195
    %v197 = vperm.slane %v108, 4
    %v198 = vlaneseq
    %v199 = vshrl.u32 %v198, 7
    %201 = vset.pattern.permute.xlu0 %v199
    %202 = vperm.xlu0 %201, %v197
    %v203 = vpop.permute.xlu0 %202
    %v204 = vlaneseq
    %v205 = vshrl.u32 %v204, 7
    %v206 = vadd.s32 %v205, 8
    %207 = vset.pattern.permute.xlu0 %v206
    %208 = vperm.xlu0 %207, %v197
    %v209 = vpop.permute.xlu0 %208
    %v210 = vperm.slane %v108, 5
    %v211 = vlaneseq
    %v212 = vshrl.u32 %v211, 7
    %214 = vset.pattern.permute.xlu0 %v212
    %215 = vperm.xlu0 %214, %v210
    %v216 = vpop.permute.xlu0 %215
    %v217 = vlaneseq
    %v218 = vshrl.u32 %v217, 7
    %v219 = vadd.s32 %v218, 8
    %220 = vset.pattern.permute.xlu0 %v219
    %221 = vperm.xlu0 %220, %v210
    %v222 = vpop.permute.xlu0 %221
    %v223 = vperm.slane %v108, 6
    %v224 = vlaneseq
    %v225 = vshrl.u32 %v224, 7
    %227 = vset.pattern.permute.xlu0 %v225
    %228 = vperm.xlu0 %227, %v223
    %v229 = vpop.permute.xlu0 %228
    %v230 = vlaneseq
    %v231 = vshrl.u32 %v230, 7
    %v232 = vadd.s32 %v231, 8
    %233 = vset.pattern.permute.xlu0 %v232
    %234 = vperm.xlu0 %233, %v223
    %v235 = vpop.permute.xlu0 %234
    %v236 = vperm.slane %v108, 7
    %v237 = vlaneseq
    %v238 = vshrl.u32 %v237, 7
    %240 = vset.pattern.permute.xlu0 %v238
    %241 = vperm.xlu0 %240, %v236
    %v242 = vpop.permute.xlu0 %241
    %v243 = vlaneseq
    %v244 = vshrl.u32 %v243, 7
    %v245 = vadd.s32 %v244, 8
    %246 = vset.pattern.permute.xlu0 %v245
    %247 = vperm.xlu0 %246, %v236
    %v248 = vpop.permute.xlu0 %247
    %v249 = vperm.slane %v109, 0
    %v250 = vlaneseq
    %v251 = vshrl.u32 %v250, 7
    %253 = vset.pattern.permute.xlu0 %v251
    %254 = vperm.xlu0 %253, %v249
    %v255 = vpop.permute.xlu0 %254
    %v256 = vlaneseq
    %v257 = vshrl.u32 %v256, 7
    %v258 = vadd.s32 %v257, 8
    %259 = vset.pattern.permute.xlu0 %v258
    %260 = vperm.xlu0 %259, %v249
    %v261 = vpop.permute.xlu0 %260
    %v262 = vperm.slane %v109, 1
    %v263 = vlaneseq
    %v264 = vshrl.u32 %v263, 7
    %266 = vset.pattern.permute.xlu0 %v264
    %267 = vperm.xlu0 %266, %v262
    %v268 = vpop.permute.xlu0 %267
    %v269 = vlaneseq
    %v270 = vshrl.u32 %v269, 7
    %v271 = vadd.s32 %v270, 8
    %272 = vset.pattern.permute.xlu0 %v271
    %273 = vperm.xlu0 %272, %v262
    %v274 = vpop.permute.xlu0 %273
    %v275 = vperm.slane %v109, 2
    %v276 = vlaneseq
    %v277 = vshrl.u32 %v276, 7
    %279 = vset.pattern.permute.xlu0 %v277
    %280 = vperm.xlu0 %279, %v275
    %v281 = vpop.permute.xlu0 %280
    %v282 = vlaneseq
    %v283 = vshrl.u32 %v282, 7
    %v284 = vadd.s32 %v283, 8
    %285 = vset.pattern.permute.xlu0 %v284
    %286 = vperm.xlu0 %285, %v275
    %v287 = vpop.permute.xlu0 %286
    %v288 = vperm.slane %v109, 3
    %v289 = vlaneseq
    %v290 = vshrl.u32 %v289, 7
    %292 = vset.pattern.permute.xlu0 %v290
    %293 = vperm.xlu0 %292, %v288
    %v294 = vpop.permute.xlu0 %293
    %v295 = vlaneseq
    %v296 = vshrl.u32 %v295, 7
    %v297 = vadd.s32 %v296, 8
    %298 = vset.pattern.permute.xlu0 %v297
    %299 = vperm.xlu0 %298, %v288
    %v300 = vpop.permute.xlu0 %299
    %v301 = vperm.slane %v109, 4
    %v302 = vlaneseq
    %v303 = vshrl.u32 %v302, 7
    %305 = vset.pattern.permute.xlu0 %v303
    %306 = vperm.xlu0 %305, %v301
    %v307 = vpop.permute.xlu0 %306
    %v308 = vlaneseq
    %v309 = vshrl.u32 %v308, 7
    %v310 = vadd.s32 %v309, 8
    %311 = vset.pattern.permute.xlu0 %v310
    %312 = vperm.xlu0 %311, %v301
    %v313 = vpop.permute.xlu0 %312
    %v314 = vperm.slane %v109, 5
    %v315 = vlaneseq
    %v316 = vshrl.u32 %v315, 7
    %318 = vset.pattern.permute.xlu0 %v316
    %319 = vperm.xlu0 %318, %v314
    %v320 = vpop.permute.xlu0 %319
    %v321 = vlaneseq
    %v322 = vshrl.u32 %v321, 7
    %v323 = vadd.s32 %v322, 8
    %324 = vset.pattern.permute.xlu0 %v323
    %325 = vperm.xlu0 %324, %v314
    %v326 = vpop.permute.xlu0 %325
    %v327 = vperm.slane %v109, 6
    %v328 = vlaneseq
    %v329 = vshrl.u32 %v328, 7
    %331 = vset.pattern.permute.xlu0 %v329
    %332 = vperm.xlu0 %331, %v327
    %v333 = vpop.permute.xlu0 %332
    %v334 = vlaneseq
    %v335 = vshrl.u32 %v334, 7
    %v336 = vadd.s32 %v335, 8
    %337 = vset.pattern.permute.xlu0 %v336
    %338 = vperm.xlu0 %337, %v327
    %v339 = vpop.permute.xlu0 %338
    %v340 = vperm.slane %v109, 7
    %v341 = vlaneseq
    %v342 = vshrl.u32 %v341, 7
    %344 = vset.pattern.permute.xlu0 %v342
    %345 = vperm.xlu0 %344, %v340
    %v346 = vpop.permute.xlu0 %345
    %v347 = vlaneseq
    %v348 = vshrl.u32 %v347, 7
    %v349 = vadd.s32 %v348, 8
    %350 = vset.pattern.permute.xlu0 %v349
    %351 = vperm.xlu0 %350, %v340
    %v352 = vpop.permute.xlu0 %351
    %v353 = vperm.slane %v125, 0
    %v354 = vmul.f32 %v151, %v353
    %v355 = vmul.f32 %v157, %v353
    %v356 = vmul.f32 %v164, %v353
    %v357 = vmul.f32 %v170, %v353
    %v358 = vmul.f32 %v177, %v353
    %v359 = vmul.f32 %v183, %v353
    %v360 = vmul.f32 %v190, %v353
    %v361 = vmul.f32 %v196, %v353
    %v362 = vmul.f32 %v203, %v353
    %v363 = vmul.f32 %v209, %v353
    %v364 = vmul.f32 %v216, %v353
    %v365 = vmul.f32 %v222, %v353
    %v366 = vmul.f32 %v229, %v353
    %v367 = vmul.f32 %v235, %v353
    %v368 = vmul.f32 %v242, %v353
    %v369 = vmul.f32 %v248, %v353
    %v370 = vmul.f32 %v255, %v353
    %v371 = vmul.f32 %v261, %v353
    %v372 = vmul.f32 %v268, %v353
    %v373 = vmul.f32 %v274, %v353
    %v374 = vmul.f32 %v281, %v353
    %v375 = vmul.f32 %v287, %v353
    %v376 = vmul.f32 %v294, %v353
    %v377 = vmul.f32 %v300, %v353
    %v378 = vmul.f32 %v307, %v353
    %v379 = vmul.f32 %v313, %v353
    %v380 = vmul.f32 %v320, %v353
    %v381 = vmul.f32 %v326, %v353
    %v382 = vmul.f32 %v333, %v353
    %v383 = vmul.f32 %v339, %v353
    %v384 = vmul.f32 %v346, %v353
    %v385 = vmul.f32 %v352, %v353
    %v388 = vrot.slane %v140, 1
    %v389 = vrot.slane %v140, 2
    %v390 = vrot.slane %v140, 3
    %v391 = vrot.slane %v140, 4
    %v392 = vrot.slane %v140, 5
    %v393 = vrot.slane %v140, 6
    %v394 = vrot.slane %v140, 7
    %v395 = vrot.slane %v141, 1
    %v396 = vrot.slane %v141, 2
    %v397 = vrot.slane %v141, 3
    %v398 = vrot.slane %v141, 4
    %v399 = vrot.slane %v141, 5
    %v400 = vrot.slane %v141, 6
    %v401 = vrot.slane %v141, 7
    %v402 = vperm.slane %v140, 0
    %v403 = vperm.slane %v388, 0
    %v404 = vperm.slane %v389, 0
    %v405 = vperm.slane %v390, 0
    %v406 = vperm.slane %v391, 0
    %v407 = vperm.slane %v392, 0
    %v408 = vperm.slane %v393, 0
    %v409 = vperm.slane %v394, 0
    %v410 = vperm.slane %v141, 0
    %v411 = vperm.slane %v395, 0
    %v412 = vperm.slane %v396, 0
    %v413 = vperm.slane %v397, 0
    %v414 = vperm.slane %v398, 0
    %v415 = vperm.slane %v399, 0
    %v416 = vperm.slane %v400, 0
    %v417 = vperm.slane %v401, 0
    %v434 = vadd.f32 %v354, %v402
    %v435 = vadd.f32 %v355, %v402
    %v436 = vadd.f32 %v356, %v403
    %v437 = vadd.f32 %v357, %v403
    %v438 = vadd.f32 %v358, %v404
    %v439 = vadd.f32 %v359, %v404
    %v440 = vadd.f32 %v360, %v405
    %v441 = vadd.f32 %v361, %v405
    %v442 = vadd.f32 %v362, %v406
    %v443 = vadd.f32 %v363, %v406
    %v444 = vadd.f32 %v364, %v407
    %v445 = vadd.f32 %v365, %v407
    %v446 = vadd.f32 %v366, %v408
    %v447 = vadd.f32 %v367, %v408
    %v448 = vadd.f32 %v368, %v409
    %v449 = vadd.f32 %v369, %v409
    %v450 = vadd.f32 %v370, %v410
    %v451 = vadd.f32 %v371, %v410
    %v452 = vadd.f32 %v372, %v411
    %v453 = vadd.f32 %v373, %v411
    %v454 = vadd.f32 %v374, %v412
    %v455 = vadd.f32 %v375, %v412
    %v456 = vadd.f32 %v376, %v413
    %v457 = vadd.f32 %v377, %v413
    %v458 = vadd.f32 %v378, %v414
    %v459 = vadd.f32 %v379, %v414
    %v460 = vadd.f32 %v380, %v415
    %v461 = vadd.f32 %v381, %v415
    %v462 = vadd.f32 %v382, %v416
    %v463 = vadd.f32 %v383, %v416
    %v464 = vadd.f32 %v384, %v417
    %v465 = vadd.f32 %v385, %v417
    %v466 = vadd.f32 %v434, %v143
    %v467 = vadd.f32 %v435, %v144
    %v468 = vadd.f32 %v436, %v143
    %v469 = vadd.f32 %v437, %v144
    %v470 = vadd.f32 %v438, %v143
    %v471 = vadd.f32 %v439, %v144
    %v472 = vadd.f32 %v440, %v143
    %v473 = vadd.f32 %v441, %v144
    %v474 = vadd.f32 %v442, %v143
    %v475 = vadd.f32 %v443, %v144
    %v476 = vadd.f32 %v444, %v143
    %v477 = vadd.f32 %v445, %v144
    %v478 = vadd.f32 %v446, %v143
    %v479 = vadd.f32 %v447, %v144
    %v480 = vadd.f32 %v448, %v143
    %v481 = vadd.f32 %v449, %v144
    %v482 = vadd.f32 %v450, %v143
    %v483 = vadd.f32 %v451, %v144
    %v484 = vadd.f32 %v452, %v143
    %v485 = vadd.f32 %v453, %v144
    %v486 = vadd.f32 %v454, %v143
    %v487 = vadd.f32 %v455, %v144
    %v488 = vadd.f32 %v456, %v143
    %v489 = vadd.f32 %v457, %v144
    %v490 = vadd.f32 %v458, %v143
    %v491 = vadd.f32 %v459, %v144
    %v492 = vadd.f32 %v460, %v143
    %v493 = vadd.f32 %v461, %v144
    %v494 = vadd.f32 %v462, %v143
    %v495 = vadd.f32 %v463, %v144
    %v496 = vadd.f32 %v464, %v143
    %v497 = vadd.f32 %v465, %v144
    %v498 = vperm.slane %v128, 0
    %v499 = vadd.f32 %v466, %v498
    %v500 = vadd.f32 %v467, %v498
    %v501 = vadd.f32 %v468, %v498
    %v502 = vadd.f32 %v469, %v498
    %v503 = vadd.f32 %v470, %v498
    %v504 = vadd.f32 %v471, %v498
    %v505 = vadd.f32 %v472, %v498
    %v506 = vadd.f32 %v473, %v498
    %v507 = vadd.f32 %v474, %v498
    %v508 = vadd.f32 %v475, %v498
    %v509 = vadd.f32 %v476, %v498
    %v510 = vadd.f32 %v477, %v498
    %v511 = vadd.f32 %v478, %v498
    %v512 = vadd.f32 %v479, %v498
    %v513 = vadd.f32 %v480, %v498
    %v514 = vadd.f32 %v481, %v498
    %v515 = vadd.f32 %v482, %v498
    %v516 = vadd.f32 %v483, %v498
    %v517 = vadd.f32 %v484, %v498
    %v518 = vadd.f32 %v485, %v498
    %v519 = vadd.f32 %v486, %v498
    %v520 = vadd.f32 %v487, %v498
    %v521 = vadd.f32 %v488, %v498
    %v522 = vadd.f32 %v489, %v498
    %v523 = vadd.f32 %v490, %v498
    %v524 = vadd.f32 %v491, %v498
    %v525 = vadd.f32 %v492, %v498
    %v526 = vadd.f32 %v493, %v498
    %v527 = vadd.f32 %v494, %v498
    %v528 = vadd.f32 %v495, %v498
    %v529 = vadd.f32 %v496, %v498
    %v530 = vadd.f32 %v497, %v498
    %547 = vrot.lane.b32.xlu0 %v500, 64
    %v548 = vpop.permute.xlu0 %547
    %549 = vrot.lane.b32.xlu0 %v502, 64
    %v550 = vpop.permute.xlu0 %549
    %551 = vrot.lane.b32.xlu0 %v504, 64
    %v552 = vpop.permute.xlu0 %551
    %553 = vrot.lane.b32.xlu0 %v506, 64
    %v554 = vpop.permute.xlu0 %553
    %555 = vrot.lane.b32.xlu0 %v508, 64
    %v556 = vpop.permute.xlu0 %555
    %557 = vrot.lane.b32.xlu0 %v510, 64
    %v558 = vpop.permute.xlu0 %557
    %559 = vrot.lane.b32.xlu0 %v512, 64
    %v560 = vpop.permute.xlu0 %559
    %561 = vrot.lane.b32.xlu0 %v514, 64
    %v562 = vpop.permute.xlu0 %561
    %563 = vrot.lane.b32.xlu0 %v516, 64
    %v564 = vpop.permute.xlu0 %563
    %565 = vrot.lane.b32.xlu0 %v518, 64
    %v566 = vpop.permute.xlu0 %565
    %567 = vrot.lane.b32.xlu0 %v520, 64
    %v568 = vpop.permute.xlu0 %567
    %569 = vrot.lane.b32.xlu0 %v522, 64
    %v570 = vpop.permute.xlu0 %569
    %571 = vrot.lane.b32.xlu0 %v524, 64
    %v572 = vpop.permute.xlu0 %571
    %573 = vrot.lane.b32.xlu0 %v526, 64
    %v574 = vpop.permute.xlu0 %573
    %575 = vrot.lane.b32.xlu0 %v528, 64
    %v576 = vpop.permute.xlu0 %575
    %577 = vrot.lane.b32.xlu0 %v530, 64
    %v578 = vpop.permute.xlu0 %577
    %vm595 = vcmask 523264
    %v596 = vsel %vm595, %v499, %v548
    %v597 = vsel %vm595, %v501, %v550
    %v598 = vsel %vm595, %v503, %v552
    %v599 = vsel %vm595, %v505, %v554
    %v600 = vsel %vm595, %v507, %v556
    %v601 = vsel %vm595, %v509, %v558
    %v602 = vsel %vm595, %v511, %v560
    %v603 = vsel %vm595, %v513, %v562
    %v604 = vsel %vm595, %v515, %v564
    %v605 = vsel %vm595, %v517, %v566
    %v606 = vsel %vm595, %v519, %v568
    %v607 = vsel %vm595, %v521, %v570
    %v608 = vsel %vm595, %v523, %v572
    %v609 = vsel %vm595, %v525, %v574
    %v610 = vsel %vm595, %v527, %v576
    %v611 = vsel %vm595, %v529, %v578
    %v612 = vperm.slane %v116, 0
    %v613 = vlaneseq
    %v614 = vshrl.u32 %v613, 7
    %616 = vset.pattern.permute.xlu0 %v614
    %617 = vperm.xlu0 %616, %v612
    %v618 = vpop.permute.xlu0 %617
    %v619 = vlaneseq
    %v620 = vshrl.u32 %v619, 7
    %v621 = vadd.s32 %v620, 8
    %622 = vset.pattern.permute.xlu0 %v621
    %623 = vperm.xlu0 %622, %v612
    %v624 = vpop.permute.xlu0 %623
    %v625 = vperm.slane %v116, 1
    %v626 = vlaneseq
    %v627 = vshrl.u32 %v626, 7
    %629 = vset.pattern.permute.xlu0 %v627
    %630 = vperm.xlu0 %629, %v625
    %v631 = vpop.permute.xlu0 %630
    %v632 = vlaneseq
    %v633 = vshrl.u32 %v632, 7
    %v634 = vadd.s32 %v633, 8
    %635 = vset.pattern.permute.xlu0 %v634
    %636 = vperm.xlu0 %635, %v625
    %v637 = vpop.permute.xlu0 %636
    %v638 = vperm.slane %v116, 2
    %v639 = vlaneseq
    %v640 = vshrl.u32 %v639, 7
    %642 = vset.pattern.permute.xlu0 %v640
    %643 = vperm.xlu0 %642, %v638
    %v644 = vpop.permute.xlu0 %643
    %v645 = vlaneseq
    %v646 = vshrl.u32 %v645, 7
    %v647 = vadd.s32 %v646, 8
    %648 = vset.pattern.permute.xlu0 %v647
    %649 = vperm.xlu0 %648, %v638
    %v650 = vpop.permute.xlu0 %649
    %v651 = vperm.slane %v116, 3
    %v652 = vlaneseq
    %v653 = vshrl.u32 %v652, 7
    %655 = vset.pattern.permute.xlu0 %v653
    %656 = vperm.xlu0 %655, %v651
    %v657 = vpop.permute.xlu0 %656
    %v658 = vlaneseq
    %v659 = vshrl.u32 %v658, 7
    %v660 = vadd.s32 %v659, 8
    %661 = vset.pattern.permute.xlu0 %v660
    %662 = vperm.xlu0 %661, %v651
    %v663 = vpop.permute.xlu0 %662
    %v664 = vperm.slane %v116, 4
    %v665 = vlaneseq
    %v666 = vshrl.u32 %v665, 7
    %668 = vset.pattern.permute.xlu0 %v666
    %669 = vperm.xlu0 %668, %v664
    %v670 = vpop.permute.xlu0 %669
    %v671 = vlaneseq
    %v672 = vshrl.u32 %v671, 7
    %v673 = vadd.s32 %v672, 8
    %674 = vset.pattern.permute.xlu0 %v673
    %675 = vperm.xlu0 %674, %v664
    %v676 = vpop.permute.xlu0 %675
    %v677 = vperm.slane %v116, 5
    %v678 = vlaneseq
    %v679 = vshrl.u32 %v678, 7
    %681 = vset.pattern.permute.xlu0 %v679
    %682 = vperm.xlu0 %681, %v677
    %v683 = vpop.permute.xlu0 %682
    %v684 = vlaneseq
    %v685 = vshrl.u32 %v684, 7
    %v686 = vadd.s32 %v685, 8
    %687 = vset.pattern.permute.xlu0 %v686
    %688 = vperm.xlu0 %687, %v677
    %v689 = vpop.permute.xlu0 %688
    %v690 = vperm.slane %v116, 6
    %v691 = vlaneseq
    %v692 = vshrl.u32 %v691, 7
    %694 = vset.pattern.permute.xlu0 %v692
    %695 = vperm.xlu0 %694, %v690
    %v696 = vpop.permute.xlu0 %695
    %v697 = vlaneseq
    %v698 = vshrl.u32 %v697, 7
    %v699 = vadd.s32 %v698, 8
    %700 = vset.pattern.permute.xlu0 %v699
    %701 = vperm.xlu0 %700, %v690
    %v702 = vpop.permute.xlu0 %701
    %v703 = vperm.slane %v116, 7
    %v704 = vlaneseq
    %v705 = vshrl.u32 %v704, 7
    %707 = vset.pattern.permute.xlu0 %v705
    %708 = vperm.xlu0 %707, %v703
    %v709 = vpop.permute.xlu0 %708
    %v710 = vlaneseq
    %v711 = vshrl.u32 %v710, 7
    %v712 = vadd.s32 %v711, 8
    %713 = vset.pattern.permute.xlu0 %v712
    %714 = vperm.xlu0 %713, %v703
    %v715 = vpop.permute.xlu0 %714
    %v716 = vperm.slane %v117, 0
    %v717 = vlaneseq
    %v718 = vshrl.u32 %v717, 7
    %720 = vset.pattern.permute.xlu0 %v718
    %721 = vperm.xlu0 %720, %v716
    %v722 = vpop.permute.xlu0 %721
    %v723 = vlaneseq
    %v724 = vshrl.u32 %v723, 7
    %v725 = vadd.s32 %v724, 8
    %726 = vset.pattern.permute.xlu0 %v725
    %727 = vperm.xlu0 %726, %v716
    %v728 = vpop.permute.xlu0 %727
    %v729 = vperm.slane %v117, 1
    %v730 = vlaneseq
    %v731 = vshrl.u32 %v730, 7
    %733 = vset.pattern.permute.xlu0 %v731
    %734 = vperm.xlu0 %733, %v729
    %v735 = vpop.permute.xlu0 %734
    %v736 = vlaneseq
    %v737 = vshrl.u32 %v736, 7
    %v738 = vadd.s32 %v737, 8
    %739 = vset.pattern.permute.xlu0 %v738
    %740 = vperm.xlu0 %739, %v729
    %v741 = vpop.permute.xlu0 %740
    %v742 = vperm.slane %v117, 2
    %v743 = vlaneseq
    %v744 = vshrl.u32 %v743, 7
    %746 = vset.pattern.permute.xlu0 %v744
    %747 = vperm.xlu0 %746, %v742
    %v748 = vpop.permute.xlu0 %747
    %v749 = vlaneseq
    %v750 = vshrl.u32 %v749, 7
    %v751 = vadd.s32 %v750, 8
    %752 = vset.pattern.permute.xlu0 %v751
    %753 = vperm.xlu0 %752, %v742
    %v754 = vpop.permute.xlu0 %753
    %v755 = vperm.slane %v117, 3
    %v756 = vlaneseq
    %v757 = vshrl.u32 %v756, 7
    %759 = vset.pattern.permute.xlu0 %v757
    %760 = vperm.xlu0 %759, %v755
    %v761 = vpop.permute.xlu0 %760
    %v762 = vlaneseq
    %v763 = vshrl.u32 %v762, 7
    %v764 = vadd.s32 %v763, 8
    %765 = vset.pattern.permute.xlu0 %v764
    %766 = vperm.xlu0 %765, %v755
    %v767 = vpop.permute.xlu0 %766
    %v768 = vperm.slane %v117, 4
    %v769 = vlaneseq
    %v770 = vshrl.u32 %v769, 7
    %772 = vset.pattern.permute.xlu0 %v770
    %773 = vperm.xlu0 %772, %v768
    %v774 = vpop.permute.xlu0 %773
    %v775 = vlaneseq
    %v776 = vshrl.u32 %v775, 7
    %v777 = vadd.s32 %v776, 8
    %778 = vset.pattern.permute.xlu0 %v777
    %779 = vperm.xlu0 %778, %v768
    %v780 = vpop.permute.xlu0 %779
    %v781 = vperm.slane %v117, 5
    %v782 = vlaneseq
    %v783 = vshrl.u32 %v782, 7
    %785 = vset.pattern.permute.xlu0 %v783
    %786 = vperm.xlu0 %785, %v781
    %v787 = vpop.permute.xlu0 %786
    %v788 = vlaneseq
    %v789 = vshrl.u32 %v788, 7
    %v790 = vadd.s32 %v789, 8
    %791 = vset.pattern.permute.xlu0 %v790
    %792 = vperm.xlu0 %791, %v781
    %v793 = vpop.permute.xlu0 %792
    %v794 = vperm.slane %v117, 6
    %v795 = vlaneseq
    %v796 = vshrl.u32 %v795, 7
    %798 = vset.pattern.permute.xlu0 %v796
    %799 = vperm.xlu0 %798, %v794
    %v800 = vpop.permute.xlu0 %799
    %v801 = vlaneseq
    %v802 = vshrl.u32 %v801, 7
    %v803 = vadd.s32 %v802, 8
    %804 = vset.pattern.permute.xlu0 %v803
    %805 = vperm.xlu0 %804, %v794
    %v806 = vpop.permute.xlu0 %805
    %v807 = vperm.slane %v117, 7
    %v808 = vlaneseq
    %v809 = vshrl.u32 %v808, 7
    %811 = vset.pattern.permute.xlu0 %v809
    %812 = vperm.xlu0 %811, %v807
    %v813 = vpop.permute.xlu0 %812
    %v814 = vlaneseq
    %v815 = vshrl.u32 %v814, 7
    %v816 = vadd.s32 %v815, 8
    %817 = vset.pattern.permute.xlu0 %v816
    %818 = vperm.xlu0 %817, %v807
    %v819 = vpop.permute.xlu0 %818
    %v820 = vsel %vm595, %v618, %v624
    %v821 = vsel %vm595, %v631, %v637
    %v822 = vsel %vm595, %v644, %v650
    %v823 = vsel %vm595, %v657, %v663
    %v824 = vsel %vm595, %v670, %v676
    %v825 = vsel %vm595, %v683, %v689
    %v826 = vsel %vm595, %v696, %v702
    %v827 = vsel %vm595, %v709, %v715
    %v828 = vsel %vm595, %v722, %v728
    %v829 = vsel %vm595, %v735, %v741
    %v830 = vsel %vm595, %v748, %v754
    %v831 = vsel %vm595, %v761, %v767
    %v832 = vsel %vm595, %v774, %v780
    %v833 = vsel %vm595, %v787, %v793
    %v834 = vsel %vm595, %v800, %v806
    %v835 = vsel %vm595, %v813, %v819
    %v836 = vld [vmem:[#allocation4] sm:$0xf]
    %v837 = vld [vmem:[#allocation4 + $0x4] sm:$0xf]
    %v838 = vld [vmem:[#allocation4 + $0x8] sm:$0xf]
    %v839 = vld [vmem:[#allocation4 + $0xc] sm:$0xf]
    %v840 = vld [vmem:[#allocation6] sm:$0xf]
    %v841 = vld [vmem:[#allocation6 + $0x4] sm:$0xf]
    %v842 = vld [vmem:[#allocation6 + $0x8] sm:$0xf]
    %v843 = vld [vmem:[#allocation6 + $0xc] sm:$0xf]
    %v844 = vld [vmem:[%s5] sm:$0xf]
    %v845 = vld [vmem:[%s5 + $0x4] sm:$0xf]
    %v846 = vld [vmem:[%s5 + $0x8] sm:$0xf]
    %v847 = vld [vmem:[%s5 + $0xc] sm:$0xf]
    %v848 = vld [vmem:[%s5 + $0x10] sm:$0xf]
    %v849 = vld [vmem:[%s5 + $0x14] sm:$0xf]
    %v850 = vld [vmem:[%s5 + $0x18] sm:$0xf]
    %v851 = vld [vmem:[%s5 + $0x1c] sm:$0xf]
    %v852 = vld [vmem:[%s5 + $0x20] sm:$0xf]
    %v853 = vld [vmem:[%s5 + $0x24] sm:$0xf]
    %v854 = vld [vmem:[%s5 + $0x28] sm:$0xf]
    %v855 = vld [vmem:[%s5 + $0x2c] sm:$0xf]
    %v856 = vld [vmem:[%s5 + $0x30] sm:$0xf]
    %v857 = vld [vmem:[%s5 + $0x34] sm:$0xf]
    %v858 = vld [vmem:[%s5 + $0x38] sm:$0xf]
    %v859 = vld [vmem:[%s5 + $0x3c] sm:$0xf]
    %v860 = vld [vmem:[%s6] sm:$0x1]
    %v861 = vld [vmem:[%s7] sm:$0xff]
    %v862 = vld [vmem:[%s7 + $0x8] sm:$0xff]
    %v863 = vld [vmem:[%s7 + $0x10] sm:$0xff]
    %v864 = vld [vmem:[%s7 + $0x18] sm:$0xff]
    %v865 = vld [vmem:[%s7 + $0x20] sm:$0xff]
    %v866 = vld [vmem:[%s7 + $0x28] sm:$0xff]
    %v867 = vld [vmem:[%s7 + $0x30] sm:$0xff]
    %v868 = vld [vmem:[%s7 + $0x38] sm:$0xff]
    %v869 = vld [vmem:[%s7 + $0x40] sm:$0xff]
    %v870 = vld [vmem:[%s7 + $0x48] sm:$0xff]
    %v871 = vld [vmem:[%s7 + $0x50] sm:$0xff]
    %v872 = vld [vmem:[%s7 + $0x58] sm:$0xff]
    %v873 = vld [vmem:[%s7 + $0x60] sm:$0xff]
    %v874 = vld [vmem:[%s7 + $0x68] sm:$0xff]
    %v875 = vld [vmem:[%s7 + $0x70] sm:$0xff]
    %v876 = vld [vmem:[%s7 + $0x78] sm:$0xff]
    %v877 = vld [vmem:[%s8] sm:$0xff]
    %v878 = vld [vmem:[%s8 + $0x8] sm:$0xff]
    %v879 = vld [vmem:[%s8 + $0x10] sm:$0xff]
    %v880 = vld [vmem:[%s8 + $0x18] sm:$0xff]
    %v881 = vld [vmem:[%s9 + $0x1] sm:$0x1]
    %v882 = vperm.slane %v881, 0
    %v883 = vmul.f32 %v121, %v882
    %v884 = vmul.f32 %v124, %v882
    %v885 = vld [vmem:[%s9] sm:$0x1]
    %v886 = vperm.slane %v885, 0
    %v887 = vadd.f32 %v883, %v886
    %v888 = vadd.f32 %v884, %v886
    %v893 = vunpack.c.l.b16 %v836
    %v894 = vunpack.c.l.b16 %v837
    %v895 = vunpack.c.l.b16 %v838
    %v896 = vunpack.c.l.b16 %v839
    %v897 = vpack.c.b16 %v894, %v893
    %v898 = vpack.c.b16 %v896, %v895
    %vm901 = vcmask 261120
    %v903 = vsel %vm901, 0, 0
    %905 = vmatpush.bf16.msra.mxu0 0
    %906 = vmatpush.bf16.msra.mxu0 0
    %907 = vmatpush.bf16.msra.mxu0 0
    %908 = vmatpush.bf16.msra.mxu0 0
    %909 = vmatpush.bf16.msra.mxu0 0
    %910 = vmatpush.bf16.msra.mxu0 0
    %911 = vmatpush.bf16.msra.mxu0 %v898
    %912 = vmatpush.bf16.msra.mxu0 %v897
    %913 = vmatmul.bf16.gmra.mxu0 %v903
    %v914 = vpop.f32.mrf.mxu0
    %v915 = vadd.f32 0.0, %v914
    %v916 = vpop.f32.mrf.mxu0
    %v917 = vadd.f32 0.0, %v916
    %918 = vdwg.mxu0
    %v923 = vunpack.c.l.b16 %v840
    %v924 = vunpack.c.l.b16 %v841
    %v925 = vunpack.c.l.b16 %v842
    %v926 = vunpack.c.l.b16 %v843
    %v927 = vpack.c.b16 %v924, %v923
    %v928 = vpack.c.b16 %v926, %v925
    %931 = vmatpush.bf16.msra.mxu0 0
    %932 = vmatpush.bf16.msra.mxu0 0
    %933 = vmatpush.bf16.msra.mxu0 0
    %934 = vmatpush.bf16.msra.mxu0 0
    %935 = vmatpush.bf16.msra.mxu0 0
    %936 = vmatpush.bf16.msra.mxu0 0
    %937 = vmatpush.bf16.msra.mxu0 %v928
    %938 = vmatpush.bf16.msra.mxu0 %v927
    %939 = vmatmul.bf16.gmra.mxu0 %v903
    %v940 = vpop.f32.mrf.mxu0
    %v941 = vadd.f32 0.0, %v940
    %v942 = vpop.f32.mrf.mxu0
    %v943 = vadd.f32 0.0, %v942
    %944 = vdwg.mxu0
    %946 = vrot.lane.b32.xlu0 %v943, 64
    %v947 = vpop.permute.xlu0 %946
    %v949 = vsel %vm595, %v941, %v947
    %v952 = vrot.slane %v915, 1
    %v953 = vrot.slane %v915, 2
    %v954 = vrot.slane %v915, 3
    %v955 = vrot.slane %v915, 4
    %v956 = vrot.slane %v915, 5
    %v957 = vrot.slane %v915, 6
    %v958 = vrot.slane %v915, 7
    %v959 = vrot.slane %v917, 1
    %v960 = vrot.slane %v917, 2
    %v961 = vrot.slane %v917, 3
    %v962 = vrot.slane %v917, 4
    %v963 = vrot.slane %v917, 5
    %v964 = vrot.slane %v917, 6
    %v965 = vrot.slane %v917, 7
    %v966 = vperm.slane %v915, 0
    %v967 = vperm.slane %v952, 0
    %v968 = vperm.slane %v953, 0
    %v969 = vperm.slane %v954, 0
    %v970 = vperm.slane %v955, 0
    %v971 = vperm.slane %v956, 0
    %v972 = vperm.slane %v957, 0
    %v973 = vperm.slane %v958, 0
    %v974 = vperm.slane %v917, 0
    %v975 = vperm.slane %v959, 0
    %v976 = vperm.slane %v960, 0
    %v977 = vperm.slane %v961, 0
    %v978 = vperm.slane %v962, 0
    %v979 = vperm.slane %v963, 0
    %v980 = vperm.slane %v964, 0
    %v981 = vperm.slane %v965, 0
    %v998 = vadd.f32 %v966, %v949
    %v999 = vadd.f32 %v967, %v949
    %v1000 = vadd.f32 %v968, %v949
    %v1001 = vadd.f32 %v969, %v949
    %v1002 = vadd.f32 %v970, %v949
    %v1003 = vadd.f32 %v971, %v949
    %v1004 = vadd.f32 %v972, %v949
    %v1005 = vadd.f32 %v973, %v949
    %v1006 = vadd.f32 %v974, %v949
    %v1007 = vadd.f32 %v975, %v949
    %v1008 = vadd.f32 %v976, %v949
    %v1009 = vadd.f32 %v977, %v949
    %v1010 = vadd.f32 %v978, %v949
    %v1011 = vadd.f32 %v979, %v949
    %v1012 = vadd.f32 %v980, %v949
    %v1013 = vadd.f32 %v981, %v949
    %v1014 = vadd.f32 %v998, %v596
    %v1015 = vadd.f32 %v999, %v597
    %v1016 = vadd.f32 %v1000, %v598
    %v1017 = vadd.f32 %v1001, %v599
    %v1018 = vadd.f32 %v1002, %v600
    %v1019 = vadd.f32 %v1003, %v601
    %v1020 = vadd.f32 %v1004, %v602
    %v1021 = vadd.f32 %v1005, %v603
    %v1022 = vadd.f32 %v1006, %v604
    %v1023 = vadd.f32 %v1007, %v605
    %v1024 = vadd.f32 %v1008, %v606
    %v1025 = vadd.f32 %v1009, %v607
    %v1026 = vadd.f32 %v1010, %v608
    %v1027 = vadd.f32 %v1011, %v609
    %v1028 = vadd.f32 %v1012, %v610
    %v1029 = vadd.f32 %v1013, %v611
    %v1030 = vmax.f32 %v1014, 0.0
    %v1031 = vmax.f32 %v1015, 0.0
    %v1032 = vmax.f32 %v1016, 0.0
    %v1033 = vmax.f32 %v1017, 0.0
    %v1034 = vmax.f32 %v1018, 0.0
    %v1035 = vmax.f32 %v1019, 0.0
    %v1036 = vmax.f32 %v1020, 0.0
    %v1037 = vmax.f32 %v1021, 0.0
    %v1038 = vmax.f32 %v1022, 0.0
    %v1039 = vmax.f32 %v1023, 0.0
    %v1040 = vmax.f32 %v1024, 0.0
    %v1041 = vmax.f32 %v1025, 0.0
    %v1042 = vmax.f32 %v1026, 0.0
    %v1043 = vmax.f32 %v1027, 0.0
    %v1044 = vmax.f32 %v1028, 0.0
    %v1045 = vmax.f32 %v1029, 0.0
    %v1046 = vpack.c.bf16 %v1031, %v1030
    %v1047 = vpack.c.bf16 %v1033, %v1032
    %v1048 = vpack.c.bf16 %v1035, %v1034
    %v1049 = vpack.c.bf16 %v1037, %v1036
    %v1050 = vpack.c.bf16 %v1039, %v1038
    %v1051 = vpack.c.bf16 %v1041, %v1040
    %v1052 = vpack.c.bf16 %v1043, %v1042
    %v1053 = vpack.c.bf16 %v1045, %v1044
    %v1055 = vperm.slane %v860, 0
    %v1073 = vunpack.c.l.b16 %v844
    %v1074 = vunpack.c.l.b16 %v845
    %v1075 = vunpack.c.l.b16 %v846
    %v1076 = vunpack.c.l.b16 %v847
    %v1077 = vunpack.c.l.b16 %v848
    %v1078 = vunpack.c.l.b16 %v849
    %v1079 = vunpack.c.l.b16 %v850
    %v1080 = vunpack.c.l.b16 %v851
    %v1081 = vunpack.c.l.b16 %v852
    %v1082 = vunpack.c.l.b16 %v853
    %v1083 = vunpack.c.l.b16 %v854
    %v1084 = vunpack.c.l.b16 %v855
    %v1085 = vunpack.c.l.b16 %v856
    %v1086 = vunpack.c.l.b16 %v857
    %v1087 = vunpack.c.l.b16 %v858
    %v1088 = vunpack.c.l.b16 %v859
    %v1089 = vpack.c.b16 %v1074, %v1073
    %v1090 = vpack.c.b16 %v1076, %v1075
    %v1091 = vpack.c.b16 %v1078, %v1077
    %v1092 = vpack.c.b16 %v1080, %v1079
    %v1093 = vpack.c.b16 %v1082, %v1081
    %v1094 = vpack.c.b16 %v1084, %v1083
    %v1095 = vpack.c.b16 %v1086, %v1085
    %v1096 = vpack.c.b16 %v1088, %v1087
    %1105 = vmatpush.bf16.msra.mxu0 %v1096
    %1106 = vmatpush.bf16.msra.mxu0 %v1095
    %1107 = vmatpush.bf16.msra.mxu0 %v1094
    %1108 = vmatpush.bf16.msra.mxu0 %v1093
    %1109 = vmatpush.bf16.msra.mxu0 %v1092
    %1110 = vmatpush.bf16.msra.mxu0 %v1091
    %1111 = vmatpush.bf16.msra.mxu0 %v1090
    %1112 = vmatpush.bf16.msra.mxu0 %v1089
    %1113 = vmatmul.bf16.gmra.mxu0 %v1046
    %v1114 = vpop.f32.mrf.mxu0
    %v1115 = vadd.f32 %v1055, %v1114
    %v1116 = vpop.f32.mrf.mxu0
    %v1117 = vadd.f32 %v1055, %v1116
    %1118 = vmatmul.bf16.gmra.mxu0 %v1047
    %v1119 = vpop.f32.mrf.mxu0
    %v1120 = vadd.f32 %v1055, %v1119
    %v1121 = vpop.f32.mrf.mxu0
    %v1122 = vadd.f32 %v1055, %v1121
    %1123 = vmatmul.bf16.gmra.mxu0 %v1048
    %v1124 = vpop.f32.mrf.mxu0
    %v1125 = vadd.f32 %v1055, %v1124
    %v1126 = vpop.f32.mrf.mxu0
    %v1127 = vadd.f32 %v1055, %v1126
    %1128 = vmatmul.bf16.gmra.mxu0 %v1049
    %v1129 = vpop.f32.mrf.mxu0
    %v1130 = vadd.f32 %v1055, %v1129
    %v1131 = vpop.f32.mrf.mxu0
    %v1132 = vadd.f32 %v1055, %v1131
    %1133 = vmatmul.bf16.gmra.mxu0 %v1050
    %v1134 = vpop.f32.mrf.mxu0
    %v1135 = vadd.f32 %v1055, %v1134
    %v1136 = vpop.f32.mrf.mxu0
    %v1137 = vadd.f32 %v1055, %v1136
    %1138 = vmatmul.bf16.gmra.mxu0 %v1051
    %v1139 = vpop.f32.mrf.mxu0
    %v1140 = vadd.f32 %v1055, %v1139
    %v1141 = vpop.f32.mrf.mxu0
    %v1142 = vadd.f32 %v1055, %v1141
    %1143 = vmatmul.bf16.gmra.mxu0 %v1052
    %v1144 = vpop.f32.mrf.mxu0
    %v1145 = vadd.f32 %v1055, %v1144
    %v1146 = vpop.f32.mrf.mxu0
    %v1147 = vadd.f32 %v1055, %v1146
    %1148 = vmatmul.bf16.gmra.mxu0 %v1053
    %v1149 = vpop.f32.mrf.mxu0
    %v1150 = vadd.f32 %v1055, %v1149
    %v1151 = vpop.f32.mrf.mxu0
    %v1152 = vadd.f32 %v1055, %v1151
    %1153 = vdwg.mxu0
    %v1154 = vmax.f32 %v1115, 0.0
    %v1155 = vmax.f32 %v1117, 0.0
    %v1156 = vmax.f32 %v1120, 0.0
    %v1157 = vmax.f32 %v1122, 0.0
    %v1158 = vmax.f32 %v1125, 0.0
    %v1159 = vmax.f32 %v1127, 0.0
    %v1160 = vmax.f32 %v1130, 0.0
    %v1161 = vmax.f32 %v1132, 0.0
    %v1162 = vmax.f32 %v1135, 0.0
    %v1163 = vmax.f32 %v1137, 0.0
    %v1164 = vmax.f32 %v1140, 0.0
    %v1165 = vmax.f32 %v1142, 0.0
    %v1166 = vmax.f32 %v1145, 0.0
    %v1167 = vmax.f32 %v1147, 0.0
    %v1168 = vmax.f32 %v1150, 0.0
    %v1169 = vmax.f32 %v1152, 0.0
    %v1170 = vmul.f32 %v820, %v1154
    %v1171 = vmul.f32 %v821, %v1155
    %v1172 = vmul.f32 %v822, %v1156
    %v1173 = vmul.f32 %v823, %v1157
    %v1174 = vmul.f32 %v824, %v1158
    %v1175 = vmul.f32 %v825, %v1159
    %v1176 = vmul.f32 %v826, %v1160
    %v1177 = vmul.f32 %v827, %v1161
    %v1178 = vmul.f32 %v828, %v1162
    %v1179 = vmul.f32 %v829, %v1163
    %v1180 = vmul.f32 %v830, %v1164
    %v1181 = vmul.f32 %v831, %v1165
    %v1182 = vmul.f32 %v832, %v1166
    %v1183 = vmul.f32 %v833, %v1167
    %v1184 = vmul.f32 %v834, %v1168
    %v1185 = vmul.f32 %v835, %v1169
    %v1186 = vrot.slane %v1170, 4
    %v1187 = vadd.f32 %v1170, %v1186
    %v1188 = vrot.slane %v1187, 2
    %v1189 = vadd.f32 %v1187, %v1188
    %v1190 = vrot.slane %v1189, 1
    %v1191 = vadd.f32 %v1189, %v1190
    %v1192 = vrot.slane %v1171, 4
    %v1193 = vadd.f32 %v1171, %v1192
    %v1194 = vrot.slane %v1193, 2
    %v1195 = vadd.f32 %v1193, %v1194
    %v1196 = vrot.slane %v1195, 1
    %v1197 = vadd.f32 %v1195, %v1196
    %v1198 = vrot.slane %v1172, 4
    %v1199 = vadd.f32 %v1172, %v1198
    %v1200 = vrot.slane %v1199, 2
    %v1201 = vadd.f32 %v1199, %v1200
    %v1202 = vrot.slane %v1201, 1
    %v1203 = vadd.f32 %v1201, %v1202
    %v1204 = vrot.slane %v1173, 4
    %v1205 = vadd.f32 %v1173, %v1204
    %v1206 = vrot.slane %v1205, 2
    %v1207 = vadd.f32 %v1205, %v1206
    %v1208 = vrot.slane %v1207, 1
    %v1209 = vadd.f32 %v1207, %v1208
    %v1210 = vrot.slane %v1174, 4
    %v1211 = vadd.f32 %v1174, %v1210
    %v1212 = vrot.slane %v1211, 2
    %v1213 = vadd.f32 %v1211, %v1212
    %v1214 = vrot.slane %v1213, 1
    %v1215 = vadd.f32 %v1213, %v1214
    %v1216 = vrot.slane %v1175, 4
    %v1217 = vadd.f32 %v1175, %v1216
    %v1218 = vrot.slane %v1217, 2
    %v1219 = vadd.f32 %v1217, %v1218
    %v1220 = vrot.slane %v1219, 1
    %v1221 = vadd.f32 %v1219, %v1220
    %v1222 = vrot.slane %v1176, 4
    %v1223 = vadd.f32 %v1176, %v1222
    %v1224 = vrot.slane %v1223, 2
    %v1225 = vadd.f32 %v1223, %v1224
    %v1226 = vrot.slane %v1225, 1
    %v1227 = vadd.f32 %v1225, %v1226
    %v1228 = vrot.slane %v1177, 4
    %v1229 = vadd.f32 %v1177, %v1228
    %v1230 = vrot.slane %v1229, 2
    %v1231 = vadd.f32 %v1229, %v1230
    %v1232 = vrot.slane %v1231, 1
    %v1233 = vadd.f32 %v1231, %v1232
    %v1234 = vrot.slane %v1178, 4
    %v1235 = vadd.f32 %v1178, %v1234
    %v1236 = vrot.slane %v1235, 2
    %v1237 = vadd.f32 %v1235, %v1236
    %v1238 = vrot.slane %v1237, 1
    %v1239 = vadd.f32 %v1237, %v1238
    %v1240 = vrot.slane %v1179, 4
    %v1241 = vadd.f32 %v1179, %v1240
    %v1242 = vrot.slane %v1241, 2
    %v1243 = vadd.f32 %v1241, %v1242
    %v1244 = vrot.slane %v1243, 1
    %v1245 = vadd.f32 %v1243, %v1244
    %v1246 = vrot.slane %v1180, 4
    %v1247 = vadd.f32 %v1180, %v1246
    %v1248 = vrot.slane %v1247, 2
    %v1249 = vadd.f32 %v1247, %v1248
    %v1250 = vrot.slane %v1249, 1
    %v1251 = vadd.f32 %v1249, %v1250
    %v1252 = vrot.slane %v1181, 4
    %v1253 = vadd.f32 %v1181, %v1252
    %v1254 = vrot.slane %v1253, 2
    %v1255 = vadd.f32 %v1253, %v1254
    %v1256 = vrot.slane %v1255, 1
    %v1257 = vadd.f32 %v1255, %v1256
    %v1258 = vrot.slane %v1182, 4
    %v1259 = vadd.f32 %v1182, %v1258
    %v1260 = vrot.slane %v1259, 2
    %v1261 = vadd.f32 %v1259, %v1260
    %v1262 = vrot.slane %v1261, 1
    %v1263 = vadd.f32 %v1261, %v1262
    %v1264 = vrot.slane %v1183, 4
    %v1265 = vadd.f32 %v1183, %v1264
    %v1266 = vrot.slane %v1265, 2
    %v1267 = vadd.f32 %v1265, %v1266
    %v1268 = vrot.slane %v1267, 1
    %v1269 = vadd.f32 %v1267, %v1268
    %v1270 = vrot.slane %v1184, 4
    %v1271 = vadd.f32 %v1184, %v1270
    %v1272 = vrot.slane %v1271, 2
    %v1273 = vadd.f32 %v1271, %v1272
    %v1274 = vrot.slane %v1273, 1
    %v1275 = vadd.f32 %v1273, %v1274
    %v1276 = vrot.slane %v1185, 4
    %v1277 = vadd.f32 %v1185, %v1276
    %v1278 = vrot.slane %v1277, 2
    %v1279 = vadd.f32 %v1277, %v1278
    %v1280 = vrot.slane %v1279, 1
    %v1281 = vadd.f32 %v1279, %v1280
    %v1283 = vsel %vm901, 0.0, 0
    %1285 = vmatpush.msra.mxu0 0.0
    %1286 = vmatpush.msra.mxu0 0.0
    %1287 = vmatpush.msra.mxu0 0.0
    %1288 = vmatpush.msra.mxu0 0.0
    %1289 = vmatpush.msra.mxu0 0.0
    %1290 = vmatpush.msra.mxu0 0.0
    %1291 = vmatpush.msra.mxu0 0.0
    %1292 = vmatpush.msra.mxu0 0.0
    %1293 = vmatpush.msra.mxu0 0.0
    %1294 = vmatpush.msra.mxu0 0.0
    %1295 = vmatpush.msra.mxu0 0.0
    %1296 = vmatpush.msra.mxu0 0.0
    %1297 = vmatpush.msra.mxu0 %v880
    %1298 = vmatpush.msra.mxu0 %v879
    %1299 = vmatpush.msra.mxu0 %v878
    %1300 = vmatpush.msra.mxu0 %v877
    %1301 = vmatmul.f32.gmra.mxu0 %v1283
    %v1302 = vpop.f32.mrf.mxu0
    %v1303 = vadd.f32 0.0, %v1302
    %1304 = vmatmul.f32.gmra.mxu0 %v1283
    %v1305 = vpop.f32.mrf.mxu0
    %v1306 = vadd.f32 0.0, %v1305
    %1307 = vdwg.mxu0
    %vm1324 = vcmask 1041409
    %v1325 = vsel %vm1324, %v1197, %v1191
    %vm1326 = vcmask 1042434
    %v1327 = vsel %vm1326, %v1203, %v1325
    %vm1328 = vcmask 1043459
    %v1329 = vsel %vm1328, %v1209, %v1327
    %vm1330 = vcmask 1044484
    %v1331 = vsel %vm1330, %v1215, %v1329
    %vm1332 = vcmask 1045509
    %v1333 = vsel %vm1332, %v1221, %v1331
    %vm1334 = vcmask 1046534
    %v1335 = vsel %vm1334, %v1227, %v1333
    %vm1336 = vcmask 1047559
    %v1337 = vsel %vm1336, %v1233, %v1335
    %v1338 = vsel %vm1324, %v1245, %v1239
    %v1339 = vsel %vm1326, %v1251, %v1338
    %v1340 = vsel %vm1328, %v1257, %v1339
    %v1341 = vsel %vm1330, %v1263, %v1340
    %v1342 = vsel %vm1332, %v1269, %v1341
    %v1343 = vsel %vm1334, %v1275, %v1342
    %v1344 = vsel %vm1336, %v1281, %v1343
    %1347 = vmatpush.msra.mxu0 %v876
    %1348 = vmatpush.msra.mxu0 %v875
    %1349 = vmatpush.msra.mxu0 %v874
    %1350 = vmatpush.msra.mxu0 %v873
    %1351 = vmatpush.msra.mxu0 %v872
    %1352 = vmatpush.msra.mxu0 %v871
    %1353 = vmatpush.msra.mxu0 %v870
    %1354 = vmatpush.msra.mxu0 %v869
    %1355 = vmatpush.msra.mxu0 %v868
    %1356 = vmatpush.msra.mxu0 %v867
    %1357 = vmatpush.msra.mxu0 %v866
    %1358 = vmatpush.msra.mxu0 %v865
    %1359 = vmatpush.msra.mxu0 %v864
    %1360 = vmatpush.msra.mxu0 %v863
    %1361 = vmatpush.msra.mxu0 %v862
    %1362 = vmatpush.msra.mxu0 %v861
    %1363 = vmatmul.f32.gmra.mxu0 %v1337
    %v1364 = vpop.f32.mrf.mxu0
    %v1365 = vadd.f32 %v1303, %v1364
    %1366 = vmatmul.f32.gmra.mxu0 %v1344
    %v1367 = vpop.f32.mrf.mxu0
    %v1368 = vadd.f32 %v1306, %v1367
    %1369 = vdwg.mxu0
    %v1370 = vadd.f32 %v1365, %v887
    %v1371 = vadd.f32 %v1368, %v888
    %v1372 = vxor.u32 %v1370, 2147483648
    %v1373 = vxor.u32 %v1371, 2147483648
    %v1374 = vmul.f32 %v1372, 1.442695
    %v1375 = vpow.pop %v1374
    %v1376 = vmul.f32 %v1373, 1.442695
    %v1377 = vpow.pop %v1376
    %v1378 = vadd.f32 %v1375, 1.0
    %v1379 = vadd.f32 %v1377, 1.0
    %v1380 = vrcp.pop %v1378
    %v1381 = vmul.f32 %v1378, %v1380
    %v1382 = vsub.f32 1.0, %v1381
    %v1383 = vmul.f32 %v1380, %v1382
    %v1384 = vadd.f32 %v1380, %v1383
    %vm1385 = vweird.f32 %v1378
    %vm1386 = vweird.f32 %v1380
    %vm1387 = vmor %vm1385, %vm1386
    %v1388 = vsel %vm1387, %v1380, %v1384
    %v1389 = vand.u32 2147483647, %v1378
    %vm1390 = vcmp.eq.f32.partialorder %v1389, 8.507059e+37
    %v1391 = vand.u32 %v1378, 2147483648
    %v1392 = vor.u32 1.1754944e-38, %v1391
    %v1393 = vsel %vm1390, %v1392, %v1388
    %v1394 = vmul.f32 1.0, %v1393
    %v1395 = vrcp.pop %v1379
    %v1396 = vmul.f32 %v1379, %v1395
    %v1397 = vsub.f32 1.0, %v1396
    %v1398 = vmul.f32 %v1395, %v1397
    %v1399 = vadd.f32 %v1395, %v1398
    %vm1400 = vweird.f32 %v1379
    %vm1401 = vweird.f32 %v1395
    %vm1402 = vmor %vm1400, %vm1401
    %v1403 = vsel %vm1402, %v1395, %v1399
    %v1404 = vand.u32 2147483647, %v1379
    %vm1405 = vcmp.eq.f32.partialorder %v1404, 8.507059e+37
    %v1406 = vand.u32 %v1379, 2147483648
    %v1407 = vor.u32 1.1754944e-38, %v1406
    %v1408 = vsel %vm1405, %v1407, %v1403
    %v1409 = vmul.f32 1.0, %v1408
    %1412 = vrot.lane.b32.xlu0 %v1370, 32
    %v1413 = vpop.permute.xlu0 %1412
    %1414 = vrot.lane.b32.xlu0 %v1371, 32
    %v1415 = vpop.permute.xlu0 %1414
    %v1418 = vmul.f32 %v1394, %v1413
    %v1419 = vmul.f32 %v1409, %v1415
    %1422 = vrot.lane.b32.xlu0 %v1418, 64
    %v1423 = vpop.permute.xlu0 %1422
    %1424 = vrot.lane.b32.xlu0 %v1419, 64
    %v1425 = vpop.permute.xlu0 %1424
    %v1428 = vadd.f32 %v1370, %v1423
    %v1429 = vadd.f32 %v1371, %v1425
    %v1430 = vtanh.pop %v1428
    %v1431 = vtanh.pop %v1429
    %v1432 = vsub.f32 1.0, %v1394
    %v1433 = vsub.f32 1.0, %v1409
    %1436 = vrot.lane.b32.xlu0 %v1430, 96
    %v1437 = vpop.permute.xlu0 %1436
    %1438 = vrot.lane.b32.xlu0 %v1431, 96
    %v1439 = vpop.permute.xlu0 %1438
    %v1442 = vmul.f32 %v1432, %v1437
    %v1443 = vmul.f32 %v1433, %v1439
    %v1444 = vmul.f32 %v1394, 0.0
    %v1445 = vmul.f32 %v1409, 0.0
    %v1446 = vadd.f32 %v1442, %v1444
    %v1447 = vadd.f32 %v1443, %v1445
    %v1448 = vpack.c.bf16 %v1447, %v1446
    %1450 = vrot.lane.b32.xlu0 %v1448, 96
    %v1451 = vpop.permute.xlu0 %1450
    %v1453 = vsel %vm901, %v1451, 0
    %1455 = vmatpush.bf16.msra.mxu0 0
    %1456 = vmatpush.bf16.msra.mxu0 0
    %1457 = vmatpush.bf16.msra.mxu0 0
    %1458 = vmatpush.bf16.msra.mxu0 0
    %1459 = vmatpush.bf16.msra.mxu0 0
    %1460 = vmatpush.bf16.msra.mxu0 0
    %1461 = vmatpush.bf16.msra.mxu0 %v898
    %1462 = vmatpush.bf16.msra.mxu0 %v897
    %1463 = vmatmul.bf16.gmra.mxu0 %v1453
    %v1464 = vpop.f32.mrf.mxu0
    %v1465 = vadd.f32 0.0, %v1464
    %v1466 = vpop.f32.mrf.mxu0
    %v1467 = vadd.f32 0.0, %v1466
    %1468 = vdwg.mxu0
    %1469 = vmatpush.bf16.msra.mxu0 0
    %1470 = vmatpush.bf16.msra.mxu0 0
    %1471 = vmatpush.bf16.msra.mxu0 0
    %1472 = vmatpush.bf16.msra.mxu0 0
    %1473 = vmatpush.bf16.msra.mxu0 0
    %1474 = vmatpush.bf16.msra.mxu0 0
    %1475 = vmatpush.bf16.msra.mxu0 %v928
    %1476 = vmatpush.bf16.msra.mxu0 %v927
    %1477 = vmatmul.bf16.gmra.mxu0 %v1453
    %v1478 = vpop.f32.mrf.mxu0
    %v1479 = vadd.f32 0.0, %v1478
    %v1480 = vpop.f32.mrf.mxu0
    %v1481 = vadd.f32 0.0, %v1480
    %1482 = vdwg.mxu0
    %1484 = vrot.lane.b32.xlu0 %v1481, 64
    %v1485 = vpop.permute.xlu0 %1484
    %v1487 = vsel %vm595, %v1479, %v1485
    %v1490 = vrot.slane %v1465, 1
    %v1491 = vrot.slane %v1465, 2
    %v1492 = vrot.slane %v1465, 3
    %v1493 = vrot.slane %v1465, 4
    %v1494 = vrot.slane %v1465, 5
    %v1495 = vrot.slane %v1465, 6
    %v1496 = vrot.slane %v1465, 7
    %v1497 = vrot.slane %v1467, 1
    %v1498 = vrot.slane %v1467, 2
    %v1499 = vrot.slane %v1467, 3
    %v1500 = vrot.slane %v1467, 4
    %v1501 = vrot.slane %v1467, 5
    %v1502 = vrot.slane %v1467, 6
    %v1503 = vrot.slane %v1467, 7
    %v1504 = vperm.slane %v1465, 0
    %v1505 = vperm.slane %v1490, 0
    %v1506 = vperm.slane %v1491, 0
    %v1507 = vperm.slane %v1492, 0
    %v1508 = vperm.slane %v1493, 0
    %v1509 = vperm.slane %v1494, 0
    %v1510 = vperm.slane %v1495, 0
    %v1511 = vperm.slane %v1496, 0
    %v1512 = vperm.slane %v1467, 0
    %v1513 = vperm.slane %v1497, 0
    %v1514 = vperm.slane %v1498, 0
    %v1515 = vperm.slane %v1499, 0
    %v1516 = vperm.slane %v1500, 0
    %v1517 = vperm.slane %v1501, 0
    %v1518 = vperm.slane %v1502, 0
    %v1519 = vperm.slane %v1503, 0
    %v1536 = vadd.f32 %v1504, %v1487
    %v1537 = vadd.f32 %v1505, %v1487
    %v1538 = vadd.f32 %v1506, %v1487
    %v1539 = vadd.f32 %v1507, %v1487
    %v1540 = vadd.f32 %v1508, %v1487
    %v1541 = vadd.f32 %v1509, %v1487
    %v1542 = vadd.f32 %v1510, %v1487
    %v1543 = vadd.f32 %v1511, %v1487
    %v1544 = vadd.f32 %v1512, %v1487
    %v1545 = vadd.f32 %v1513, %v1487
    %v1546 = vadd.f32 %v1514, %v1487
    %v1547 = vadd.f32 %v1515, %v1487
    %v1548 = vadd.f32 %v1516, %v1487
    %v1549 = vadd.f32 %v1517, %v1487
    %v1550 = vadd.f32 %v1518, %v1487
    %v1551 = vadd.f32 %v1519, %v1487
    %v1552 = vadd.f32 %v1536, %v596
    %v1553 = vadd.f32 %v1537, %v597
    %v1554 = vadd.f32 %v1538, %v598
    %v1555 = vadd.f32 %v1539, %v599
    %v1556 = vadd.f32 %v1540, %v600
    %v1557 = vadd.f32 %v1541, %v601
    %v1558 = vadd.f32 %v1542, %v602
    %v1559 = vadd.f32 %v1543, %v603
    %v1560 = vadd.f32 %v1544, %v604
    %v1561 = vadd.f32 %v1545, %v605
    %v1562 = vadd.f32 %v1546, %v606
    %v1563 = vadd.f32 %v1547, %v607
    %v1564 = vadd.f32 %v1548, %v608
    %v1565 = vadd.f32 %v1549, %v609
    %v1566 = vadd.f32 %v1550, %v610
    %v1567 = vadd.f32 %v1551, %v611
    %v1568 = vmax.f32 %v1552, 0.0
    %v1569 = vmax.f32 %v1553, 0.0
    %v1570 = vmax.f32 %v1554, 0.0
    %v1571 = vmax.f32 %v1555, 0.0
    %v1572 = vmax.f32 %v1556, 0.0
    %v1573 = vmax.f32 %v1557, 0.0
    %v1574 = vmax.f32 %v1558, 0.0
    %v1575 = vmax.f32 %v1559, 0.0
    %v1576 = vmax.f32 %v1560, 0.0
    %v1577 = vmax.f32 %v1561, 0.0
    %v1578 = vmax.f32 %v1562, 0.0
    %v1579 = vmax.f32 %v1563, 0.0
    %v1580 = vmax.f32 %v1564, 0.0
    %v1581 = vmax.f32 %v1565, 0.0
    %v1582 = vmax.f32 %v1566, 0.0
    %v1583 = vmax.f32 %v1567, 0.0
    %v1584 = vpack.c.bf16 %v1569, %v1568
    %v1585 = vpack.c.bf16 %v1571, %v1570
    %v1586 = vpack.c.bf16 %v1573, %v1572
    %v1587 = vpack.c.bf16 %v1575, %v1574
    %v1588 = vpack.c.bf16 %v1577, %v1576
    %v1589 = vpack.c.bf16 %v1579, %v1578
    %v1590 = vpack.c.bf16 %v1581, %v1580
    %v1591 = vpack.c.bf16 %v1583, %v1582
    %1592 = vmatpush.bf16.msra.mxu0 %v1096
    %1593 = vmatpush.bf16.msra.mxu0 %v1095
    %1594 = vmatpush.bf16.msra.mxu0 %v1094
    %1595 = vmatpush.bf16.msra.mxu0 %v1093
    %1596 = vmatpush.bf16.msra.mxu0 %v1092
    %1597 = vmatpush.bf16.msra.mxu0 %v1091
    %1598 = vmatpush.bf16.msra.mxu0 %v1090
    %1599 = vmatpush.bf16.msra.mxu0 %v1089
    %1600 = vmatmul.bf16.gmra.mxu0 %v1584
    %v1601 = vpop.f32.mrf.mxu0
    %v1602 = vadd.f32 %v1055, %v1601
    %v1603 = vpop.f32.mrf.mxu0
    %v1604 = vadd.f32 %v1055, %v1603
    %1605 = vmatmul.bf16.gmra.mxu0 %v1585
    %v1606 = vpop.f32.mrf.mxu0
    %v1607 = vadd.f32 %v1055, %v1606
    %v1608 = vpop.f32.mrf.mxu0
    %v1609 = vadd.f32 %v1055, %v1608
    %1610 = vmatmul.bf16.gmra.mxu0 %v1586
    %v1611 = vpop.f32.mrf.mxu0
    %v1612 = vadd.f32 %v1055, %v1611
    %v1613 = vpop.f32.mrf.mxu0
    %v1614 = vadd.f32 %v1055, %v1613
    %1615 = vmatmul.bf16.gmra.mxu0 %v1587
    %v1616 = vpop.f32.mrf.mxu0
    %v1617 = vadd.f32 %v1055, %v1616
    %v1618 = vpop.f32.mrf.mxu0
    %v1619 = vadd.f32 %v1055, %v1618
    %1620 = vmatmul.bf16.gmra.mxu0 %v1588
    %v1621 = vpop.f32.mrf.mxu0
    %v1622 = vadd.f32 %v1055, %v1621
    %v1623 = vpop.f32.mrf.mxu0
    %v1624 = vadd.f32 %v1055, %v1623
    %1625 = vmatmul.bf16.gmra.mxu0 %v1589
    %v1626 = vpop.f32.mrf.mxu0
    %v1627 = vadd.f32 %v1055, %v1626
    %v1628 = vpop.f32.mrf.mxu0
    %v1629 = vadd.f32 %v1055, %v1628
    %1630 = vmatmul.bf16.gmra.mxu0 %v1590
    %v1631 = vpop.f32.mrf.mxu0
    %v1632 = vadd.f32 %v1055, %v1631
    %v1633 = vpop.f32.mrf.mxu0
    %v1634 = vadd.f32 %v1055, %v1633
    %1635 = vmatmul.bf16.gmra.mxu0 %v1591
    %v1636 = vpop.f32.mrf.mxu0
    %v1637 = vadd.f32 %v1055, %v1636
    %v1638 = vpop.f32.mrf.mxu0
    %v1639 = vadd.f32 %v1055, %v1638
    %1640 = vdwg.mxu0
    %v1641 = vmax.f32 %v1602, 0.0
    %v1642 = vmax.f32 %v1604, 0.0
    %v1643 = vmax.f32 %v1607, 0.0
    %v1644 = vmax.f32 %v1609, 0.0
    %v1645 = vmax.f32 %v1612, 0.0
    %v1646 = vmax.f32 %v1614, 0.0
    %v1647 = vmax.f32 %v1617, 0.0
    %v1648 = vmax.f32 %v1619, 0.0
    %v1649 = vmax.f32 %v1622, 0.0
    %v1650 = vmax.f32 %v1624, 0.0
    %v1651 = vmax.f32 %v1627, 0.0
    %v1652 = vmax.f32 %v1629, 0.0
    %v1653 = vmax.f32 %v1632, 0.0
    %v1654 = vmax.f32 %v1634, 0.0
    %v1655 = vmax.f32 %v1637, 0.0
    %v1656 = vmax.f32 %v1639, 0.0
    %v1657 = vmul.f32 %v820, %v1641
    %v1658 = vmul.f32 %v821, %v1642
    %v1659 = vmul.f32 %v822, %v1643
    %v1660 = vmul.f32 %v823, %v1644
    %v1661 = vmul.f32 %v824, %v1645
    %v1662 = vmul.f32 %v825, %v1646
    %v1663 = vmul.f32 %v826, %v1647
    %v1664 = vmul.f32 %v827, %v1648
    %v1665 = vmul.f32 %v828, %v1649
    %v1666 = vmul.f32 %v829, %v1650
    %v1667 = vmul.f32 %v830, %v1651
    %v1668 = vmul.f32 %v831, %v1652
    %v1669 = vmul.f32 %v832, %v1653
    %v1670 = vmul.f32 %v833, %v1654
    %v1671 = vmul.f32 %v834, %v1655
    %v1672 = vmul.f32 %v835, %v1656
    %v1673 = vrot.slane %v1657, 4
    %v1674 = vadd.f32 %v1657, %v1673
    %v1675 = vrot.slane %v1674, 2
    %v1676 = vadd.f32 %v1674, %v1675
    %v1677 = vrot.slane %v1676, 1
    %v1678 = vadd.f32 %v1676, %v1677
    %v1679 = vrot.slane %v1658, 4
    %v1680 = vadd.f32 %v1658, %v1679
    %v1681 = vrot.slane %v1680, 2
    %v1682 = vadd.f32 %v1680, %v1681
    %v1683 = vrot.slane %v1682, 1
    %v1684 = vadd.f32 %v1682, %v1683
    %v1685 = vrot.slane %v1659, 4
    %v1686 = vadd.f32 %v1659, %v1685
    %v1687 = vrot.slane %v1686, 2
    %v1688 = vadd.f32 %v1686, %v1687
    %v1689 = vrot.slane %v1688, 1
    %v1690 = vadd.f32 %v1688, %v1689
    %v1691 = vrot.slane %v1660, 4
    %v1692 = vadd.f32 %v1660, %v1691
    %v1693 = vrot.slane %v1692, 2
    %v1694 = vadd.f32 %v1692, %v1693
    %v1695 = vrot.slane %v1694, 1
    %v1696 = vadd.f32 %v1694, %v1695
    %v1697 = vrot.slane %v1661, 4
    %v1698 = vadd.f32 %v1661, %v1697
    %v1699 = vrot.slane %v1698, 2
    %v1700 = vadd.f32 %v1698, %v1699
    %v1701 = vrot.slane %v1700, 1
    %v1702 = vadd.f32 %v1700, %v1701
    %v1703 = vrot.slane %v1662, 4
    %v1704 = vadd.f32 %v1662, %v1703
    %v1705 = vrot.slane %v1704, 2
    %v1706 = vadd.f32 %v1704, %v1705
    %v1707 = vrot.slane %v1706, 1
    %v1708 = vadd.f32 %v1706, %v1707
    %v1709 = vrot.slane %v1663, 4
    %v1710 = vadd.f32 %v1663, %v1709
    %v1711 = vrot.slane %v1710, 2
    %v1712 = vadd.f32 %v1710, %v1711
    %v1713 = vrot.slane %v1712, 1
    %v1714 = vadd.f32 %v1712, %v1713
    %v1715 = vrot.slane %v1664, 4
    %v1716 = vadd.f32 %v1664, %v1715
    %v1717 = vrot.slane %v1716, 2
    %v1718 = vadd.f32 %v1716, %v1717
    %v1719 = vrot.slane %v1718, 1
    %v1720 = vadd.f32 %v1718, %v1719
    %v1721 = vrot.slane %v1665, 4
    %v1722 = vadd.f32 %v1665, %v1721
    %v1723 = vrot.slane %v1722, 2
    %v1724 = vadd.f32 %v1722, %v1723
    %v1725 = vrot.slane %v1724, 1
    %v1726 = vadd.f32 %v1724, %v1725
    %v1727 = vrot.slane %v1666, 4
    %v1728 = vadd.f32 %v1666, %v1727
    %v1729 = vrot.slane %v1728, 2
    %v1730 = vadd.f32 %v1728, %v1729
    %v1731 = vrot.slane %v1730, 1
    %v1732 = vadd.f32 %v1730, %v1731
    %v1733 = vrot.slane %v1667, 4
    %v1734 = vadd.f32 %v1667, %v1733
    %v1735 = vrot.slane %v1734, 2
    %v1736 = vadd.f32 %v1734, %v1735
    %v1737 = vrot.slane %v1736, 1
    %v1738 = vadd.f32 %v1736, %v1737
    %v1739 = vrot.slane %v1668, 4
    %v1740 = vadd.f32 %v1668, %v1739
    %v1741 = vrot.slane %v1740, 2
    %v1742 = vadd.f32 %v1740, %v1741
    %v1743 = vrot.slane %v1742, 1
    %v1744 = vadd.f32 %v1742, %v1743
    %v1745 = vrot.slane %v1669, 4
    %v1746 = vadd.f32 %v1669, %v1745
    %v1747 = vrot.slane %v1746, 2
    %v1748 = vadd.f32 %v1746, %v1747
    %v1749 = vrot.slane %v1748, 1
    %v1750 = vadd.f32 %v1748, %v1749
    %v1751 = vrot.slane %v1670, 4
    %v1752 = vadd.f32 %v1670, %v1751
    %v1753 = vrot.slane %v1752, 2
    %v1754 = vadd.f32 %v1752, %v1753
    %v1755 = vrot.slane %v1754, 1
    %v1756 = vadd.f32 %v1754, %v1755
    %v1757 = vrot.slane %v1671, 4
    %v1758 = vadd.f32 %v1671, %v1757
    %v1759 = vrot.slane %v1758, 2
    %v1760 = vadd.f32 %v1758, %v1759
    %v1761 = vrot.slane %v1760, 1
    %v1762 = vadd.f32 %v1760, %v1761
    %v1763 = vrot.slane %v1672, 4
    %v1764 = vadd.f32 %v1672, %v1763
    %v1765 = vrot.slane %v1764, 2
    %v1766 = vadd.f32 %v1764, %v1765
    %v1767 = vrot.slane %v1766, 1
    %v1768 = vadd.f32 %v1766, %v1767
    %1771 = vrot.lane.b32.xlu0 %v1446, 96
    %v1772 = vpop.permute.xlu0 %1771
    %1773 = vrot.lane.b32.xlu0 %v1447, 96
    %v1774 = vpop.permute.xlu0 %1773
    %v1775 = vsel %vm901, %v1772, 0
    %v1777 = vsel %vm901, %v1774, 0
    %1779 = vmatpush.msra.mxu0 0.0
    %1780 = vmatpush.msra.mxu0 0.0
    %1781 = vmatpush.msra.mxu0 0.0
    %1782 = vmatpush.msra.mxu0 0.0
    %1783 = vmatpush.msra.mxu0 0.0
    %1784 = vmatpush.msra.mxu0 0.0
    %1785 = vmatpush.msra.mxu0 0.0
    %1786 = vmatpush.msra.mxu0 0.0
    %1787 = vmatpush.msra.mxu0 0.0
    %1788 = vmatpush.msra.mxu0 0.0
    %1789 = vmatpush.msra.mxu0 0.0
    %1790 = vmatpush.msra.mxu0 0.0
    %1791 = vmatpush.msra.mxu0 %v880
    %1792 = vmatpush.msra.mxu0 %v879
    %1793 = vmatpush.msra.mxu0 %v878
    %1794 = vmatpush.msra.mxu0 %v877
    %1795 = vmatmul.f32.gmra.mxu0 %v1775
    %v1796 = vpop.f32.mrf.mxu0
    %v1797 = vadd.f32 0.0, %v1796
    %1798 = vmatmul.f32.gmra.mxu0 %v1777
    %v1799 = vpop.f32.mrf.mxu0
    %v1800 = vadd.f32 0.0, %v1799
    %1801 = vdwg.mxu0
    %v1818 = vsel %vm1324, %v1684, %v1678
    %v1819 = vsel %vm1326, %v1690, %v1818
    %v1820 = vsel %vm1328, %v1696, %v1819
    %v1821 = vsel %vm1330, %v1702, %v1820
    %v1822 = vsel %vm1332, %v1708, %v1821
    %v1823 = vsel %vm1334, %v1714, %v1822
    %v1824 = vsel %vm1336, %v1720, %v1823
    %v1825 = vsel %vm1324, %v1732, %v1726
    %v1826 = vsel %vm1326, %v1738, %v1825
    %v1827 = vsel %vm1328, %v1744, %v1826
    %v1828 = vsel %vm1330, %v1750, %v1827
    %v1829 = vsel %vm1332, %v1756, %v1828
    %v1830 = vsel %vm1334, %v1762, %v1829
    %v1831 = vsel %vm1336, %v1768, %v1830
    %1834 = vmatpush.msra.mxu0 %v876
    %1835 = vmatpush.msra.mxu0 %v875
    %1836 = vmatpush.msra.mxu0 %v874
    %1837 = vmatpush.msra.mxu0 %v873
    %1838 = vmatpush.msra.mxu0 %v872
    %1839 = vmatpush.msra.mxu0 %v871
    %1840 = vmatpush.msra.mxu0 %v870
    %1841 = vmatpush.msra.mxu0 %v869
    %1842 = vmatpush.msra.mxu0 %v868
    %1843 = vmatpush.msra.mxu0 %v867
    %1844 = vmatpush.msra.mxu0 %v866
    %1845 = vmatpush.msra.mxu0 %v865
    %1846 = vmatpush.msra.mxu0 %v864
    %1847 = vmatpush.msra.mxu0 %v863
    %1848 = vmatpush.msra.mxu0 %v862
    %1849 = vmatpush.msra.mxu0 %v861
    %1850 = vmatmul.f32.gmra.mxu0 %v1824
    %v1851 = vpop.f32.mrf.mxu0
    %v1852 = vadd.f32 %v1797, %v1851
    %1853 = vmatmul.f32.gmra.mxu0 %v1831
    %v1854 = vpop.f32.mrf.mxu0
    %v1855 = vadd.f32 %v1800, %v1854
    %1856 = vdwg.mxu0
    %v1857 = vadd.f32 %v1852, %v887
    %v1858 = vadd.f32 %v1855, %v888
    %v1859 = vxor.u32 %v1857, 2147483648
    %v1860 = vxor.u32 %v1858, 2147483648
    %v1861 = vmul.f32 %v1859, 1.442695
    %v1862 = vpow.pop %v1861
    %v1863 = vmul.f32 %v1860, 1.442695
    %v1864 = vpow.pop %v1863
    %v1865 = vadd.f32 %v1862, 1.0
    %v1866 = vadd.f32 %v1864, 1.0
    %v1867 = vrcp.pop %v1865
    %v1868 = vmul.f32 %v1865, %v1867
    %v1869 = vsub.f32 1.0, %v1868
    %v1870 = vmul.f32 %v1867, %v1869
    %v1871 = vadd.f32 %v1867, %v1870
    %vm1872 = vweird.f32 %v1865
    %vm1873 = vweird.f32 %v1867
    %vm1874 = vmor %vm1872, %vm1873
    %v1875 = vsel %vm1874, %v1867, %v1871
    %v1876 = vand.u32 2147483647, %v1865
    %vm1877 = vcmp.eq.f32.partialorder %v1876, 8.507059e+37
    %v1878 = vand.u32 %v1865, 2147483648
    %v1879 = vor.u32 1.1754944e-38, %v1878
    %v1880 = vsel %vm1877, %v1879, %v1875
    %v1881 = vmul.f32 1.0, %v1880
    %v1882 = vrcp.pop %v1866
    %v1883 = vmul.f32 %v1866, %v1882
    %v1884 = vsub.f32 1.0, %v1883
    %v1885 = vmul.f32 %v1882, %v1884
    %v1886 = vadd.f32 %v1882, %v1885
    %vm1887 = vweird.f32 %v1866
    %vm1888 = vweird.f32 %v1882
    %vm1889 = vmor %vm1887, %vm1888
    %v1890 = vsel %vm1889, %v1882, %v1886
    %v1891 = vand.u32 2147483647, %v1866
    %vm1892 = vcmp.eq.f32.partialorder %v1891, 8.507059e+37
    %v1893 = vand.u32 %v1866, 2147483648
    %v1894 = vor.u32 1.1754944e-38, %v1893
    %v1895 = vsel %vm1892, %v1894, %v1890
    %v1896 = vmul.f32 1.0, %v1895
    %1899 = vrot.lane.b32.xlu0 %v1857, 32
    %v1900 = vpop.permute.xlu0 %1899
    %1901 = vrot.lane.b32.xlu0 %v1858, 32
    %v1902 = vpop.permute.xlu0 %1901
    %v1905 = vmul.f32 %v1881, %v1900
    %v1906 = vmul.f32 %v1896, %v1902
    %1909 = vrot.lane.b32.xlu0 %v1905, 64
    %v1910 = vpop.permute.xlu0 %1909
    %1911 = vrot.lane.b32.xlu0 %v1906, 64
    %v1912 = vpop.permute.xlu0 %1911
    %v1915 = vadd.f32 %v1857, %v1910
    %v1916 = vadd.f32 %v1858, %v1912
    %v1917 = vtanh.pop %v1915
    %v1918 = vtanh.pop %v1916
    %v1919 = vsub.f32 1.0, %v1881
    %v1920 = vsub.f32 1.0, %v1896
    %1923 = vrot.lane.b32.xlu0 %v1917, 96
    %v1924 = vpop.permute.xlu0 %1923
    %1925 = vrot.lane.b32.xlu0 %v1918, 96
    %v1926 = vpop.permute.xlu0 %1925
    %v1929 = vmul.f32 %v1919, %v1924
    %v1930 = vmul.f32 %v1920, %v1926
    %v1931 = vmul.f32 %v1881, %v1446
    %v1932 = vmul.f32 %v1896, %v1447
    %v1933 = vadd.f32 %v1929, %v1931
    %v1934 = vadd.f32 %v1930, %v1932
    %v1935 = vpack.c.bf16 %v1934, %v1933
    %1937 = vrot.lane.b32.xlu0 %v1935, 96
    %v1938 = vpop.permute.xlu0 %1937
    %v1940 = vsel %vm901, %v1938, 0
    %1942 = vmatpush.bf16.msra.mxu0 0
    %1943 = vmatpush.bf16.msra.mxu0 0
    %1944 = vmatpush.bf16.msra.mxu0 0
    %1945 = vmatpush.bf16.msra.mxu0 0
    %1946 = vmatpush.bf16.msra.mxu0 0
    %1947 = vmatpush.bf16.msra.mxu0 0
    %1948 = vmatpush.bf16.msra.mxu0 %v898
    %1949 = vmatpush.bf16.msra.mxu0 %v897
    %1950 = vmatmul.bf16.gmra.mxu0 %v1940
    %v1951 = vpop.f32.mrf.mxu0
    %v1952 = vadd.f32 0.0, %v1951
    %v1953 = vpop.f32.mrf.mxu0
    %v1954 = vadd.f32 0.0, %v1953
    %1955 = vdwg.mxu0
    %1956 = vmatpush.bf16.msra.mxu0 0
    %1957 = vmatpush.bf16.msra.mxu0 0
    %1958 = vmatpush.bf16.msra.mxu0 0
    %1959 = vmatpush.bf16.msra.mxu0 0
    %1960 = vmatpush.bf16.msra.mxu0 0
    %1961 = vmatpush.bf16.msra.mxu0 0
    %1962 = vmatpush.bf16.msra.mxu0 %v928
    %1963 = vmatpush.bf16.msra.mxu0 %v927
    %1964 = vmatmul.bf16.gmra.mxu0 %v1940
    %v1965 = vpop.f32.mrf.mxu0
    %v1966 = vadd.f32 0.0, %v1965
    %v1967 = vpop.f32.mrf.mxu0
    %v1968 = vadd.f32 0.0, %v1967
    %1969 = vdwg.mxu0
    %1971 = vrot.lane.b32.xlu0 %v1968, 64
    %v1972 = vpop.permute.xlu0 %1971
    %v1974 = vsel %vm595, %v1966, %v1972
    %v1977 = vrot.slane %v1952, 1
    %v1978 = vrot.slane %v1952, 2
    %v1979 = vrot.slane %v1952, 3
    %v1980 = vrot.slane %v1952, 4
    %v1981 = vrot.slane %v1952, 5
    %v1982 = vrot.slane %v1952, 6
    %v1983 = vrot.slane %v1952, 7
    %v1984 = vrot.slane %v1954, 1
    %v1985 = vrot.slane %v1954, 2
    %v1986 = vrot.slane %v1954, 3
    %v1987 = vrot.slane %v1954, 4
    %v1988 = vrot.slane %v1954, 5
    %v1989 = vrot.slane %v1954, 6
    %v1990 = vrot.slane %v1954, 7
    %v1991 = vperm.slane %v1952, 0
    %v1992 = vperm.slane %v1977, 0
    %v1993 = vperm.slane %v1978, 0
    %v1994 = vperm.slane %v1979, 0
    %v1995 = vperm.slane %v1980, 0
    %v1996 = vperm.slane %v1981, 0
    %v1997 = vperm.slane %v1982, 0
    %v1998 = vperm.slane %v1983, 0
    %v1999 = vperm.slane %v1954, 0
    %v2000 = vperm.slane %v1984, 0
    %v2001 = vperm.slane %v1985, 0
    %v2002 = vperm.slane %v1986, 0
    %v2003 = vperm.slane %v1987, 0
    %v2004 = vperm.slane %v1988, 0
    %v2005 = vperm.slane %v1989, 0
    %v2006 = vperm.slane %v1990, 0
    %v2023 = vadd.f32 %v1991, %v1974
    %v2024 = vadd.f32 %v1992, %v1974
    %v2025 = vadd.f32 %v1993, %v1974
    %v2026 = vadd.f32 %v1994, %v1974
    %v2027 = vadd.f32 %v1995, %v1974
    %v2028 = vadd.f32 %v1996, %v1974
    %v2029 = vadd.f32 %v1997, %v1974
    %v2030 = vadd.f32 %v1998, %v1974
    %v2031 = vadd.f32 %v1999, %v1974
    %v2032 = vadd.f32 %v2000, %v1974
    %v2033 = vadd.f32 %v2001, %v1974
    %v2034 = vadd.f32 %v2002, %v1974
    %v2035 = vadd.f32 %v2003, %v1974
    %v2036 = vadd.f32 %v2004, %v1974
    %v2037 = vadd.f32 %v2005, %v1974
    %v2038 = vadd.f32 %v2006, %v1974
    %v2039 = vadd.f32 %v2023, %v596
    %v2040 = vadd.f32 %v2024, %v597
    %v2041 = vadd.f32 %v2025, %v598
    %v2042 = vadd.f32 %v2026, %v599
    %v2043 = vadd.f32 %v2027, %v600
    %v2044 = vadd.f32 %v2028, %v601
    %v2045 = vadd.f32 %v2029, %v602
    %v2046 = vadd.f32 %v2030, %v603
    %v2047 = vadd.f32 %v2031, %v604
    %v2048 = vadd.f32 %v2032, %v605
    %v2049 = vadd.f32 %v2033, %v606
    %v2050 = vadd.f32 %v2034, %v607
    %v2051 = vadd.f32 %v2035, %v608
    %v2052 = vadd.f32 %v2036, %v609
    %v2053 = vadd.f32 %v2037, %v610
    %v2054 = vadd.f32 %v2038, %v611
    %v2055 = vmax.f32 %v2039, 0.0
    %v2056 = vmax.f32 %v2040, 0.0
    %v2057 = vmax.f32 %v2041, 0.0
    %v2058 = vmax.f32 %v2042, 0.0
    %v2059 = vmax.f32 %v2043, 0.0
    %v2060 = vmax.f32 %v2044, 0.0
    %v2061 = vmax.f32 %v2045, 0.0
    %v2062 = vmax.f32 %v2046, 0.0
    %v2063 = vmax.f32 %v2047, 0.0
    %v2064 = vmax.f32 %v2048, 0.0
    %v2065 = vmax.f32 %v2049, 0.0
    %v2066 = vmax.f32 %v2050, 0.0
    %v2067 = vmax.f32 %v2051, 0.0
    %v2068 = vmax.f32 %v2052, 0.0
    %v2069 = vmax.f32 %v2053, 0.0
    %v2070 = vmax.f32 %v2054, 0.0
    %v2071 = vpack.c.bf16 %v2056, %v2055
    %v2072 = vpack.c.bf16 %v2058, %v2057
    %v2073 = vpack.c.bf16 %v2060, %v2059
    %v2074 = vpack.c.bf16 %v2062, %v2061
    %v2075 = vpack.c.bf16 %v2064, %v2063
    %v2076 = vpack.c.bf16 %v2066, %v2065
    %v2077 = vpack.c.bf16 %v2068, %v2067
    %v2078 = vpack.c.bf16 %v2070, %v2069
    %2079 = vmatpush.bf16.msra.mxu0 %v1096
    %2080 = vmatpush.bf16.msra.mxu0 %v1095
    %2081 = vmatpush.bf16.msra.mxu0 %v1094
    %2082 = vmatpush.bf16.msra.mxu0 %v1093
    %2083 = vmatpush.bf16.msra.mxu0 %v1092
    %2084 = vmatpush.bf16.msra.mxu0 %v1091
    %2085 = vmatpush.bf16.msra.mxu0 %v1090
    %2086 = vmatpush.bf16.msra.mxu0 %v1089
    %2087 = vmatmul.bf16.gmra.mxu0 %v2071
    %v2088 = vpop.f32.mrf.mxu0
    %v2089 = vadd.f32 %v1055, %v2088
    %v2090 = vpop.f32.mrf.mxu0
    %v2091 = vadd.f32 %v1055, %v2090
    %2092 = vmatmul.bf16.gmra.mxu0 %v2072
    %v2093 = vpop.f32.mrf.mxu0
    %v2094 = vadd.f32 %v1055, %v2093
    %v2095 = vpop.f32.mrf.mxu0
    %v2096 = vadd.f32 %v1055, %v2095
    %2097 = vmatmul.bf16.gmra.mxu0 %v2073
    %v2098 = vpop.f32.mrf.mxu0
    %v2099 = vadd.f32 %v1055, %v2098
    %v2100 = vpop.f32.mrf.mxu0
    %v2101 = vadd.f32 %v1055, %v2100
    %2102 = vmatmul.bf16.gmra.mxu0 %v2074
    %v2103 = vpop.f32.mrf.mxu0
    %v2104 = vadd.f32 %v1055, %v2103
    %v2105 = vpop.f32.mrf.mxu0
    %v2106 = vadd.f32 %v1055, %v2105
    %2107 = vmatmul.bf16.gmra.mxu0 %v2075
    %v2108 = vpop.f32.mrf.mxu0
    %v2109 = vadd.f32 %v1055, %v2108
    %v2110 = vpop.f32.mrf.mxu0
    %v2111 = vadd.f32 %v1055, %v2110
    %2112 = vmatmul.bf16.gmra.mxu0 %v2076
    %v2113 = vpop.f32.mrf.mxu0
    %v2114 = vadd.f32 %v1055, %v2113
    %v2115 = vpop.f32.mrf.mxu0
    %v2116 = vadd.f32 %v1055, %v2115
    %2117 = vmatmul.bf16.gmra.mxu0 %v2077
    %v2118 = vpop.f32.mrf.mxu0
    %v2119 = vadd.f32 %v1055, %v2118
    %v2120 = vpop.f32.mrf.mxu0
    %v2121 = vadd.f32 %v1055, %v2120
    %2122 = vmatmul.bf16.gmra.mxu0 %v2078
    %v2123 = vpop.f32.mrf.mxu0
    %v2124 = vadd.f32 %v1055, %v2123
    %v2125 = vpop.f32.mrf.mxu0
    %v2126 = vadd.f32 %v1055, %v2125
    %2127 = vdwg.mxu0
    %v2128 = vmax.f32 %v2089, 0.0
    %v2129 = vmax.f32 %v2091, 0.0
    %v2130 = vmax.f32 %v2094, 0.0
    %v2131 = vmax.f32 %v2096, 0.0
    %v2132 = vmax.f32 %v2099, 0.0
    %v2133 = vmax.f32 %v2101, 0.0
    %v2134 = vmax.f32 %v2104, 0.0
    %v2135 = vmax.f32 %v2106, 0.0
    %v2136 = vmax.f32 %v2109, 0.0
    %v2137 = vmax.f32 %v2111, 0.0
    %v2138 = vmax.f32 %v2114, 0.0
    %v2139 = vmax.f32 %v2116, 0.0
    %v2140 = vmax.f32 %v2119, 0.0
    %v2141 = vmax.f32 %v2121, 0.0
    %v2142 = vmax.f32 %v2124, 0.0
    %v2143 = vmax.f32 %v2126, 0.0
    %v2144 = vmul.f32 %v820, %v2128
    %v2145 = vmul.f32 %v821, %v2129
    %v2146 = vmul.f32 %v822, %v2130
    %v2147 = vmul.f32 %v823, %v2131
    %v2148 = vmul.f32 %v824, %v2132
    %v2149 = vmul.f32 %v825, %v2133
    %v2150 = vmul.f32 %v826, %v2134
    %v2151 = vmul.f32 %v827, %v2135
    %v2152 = vmul.f32 %v828, %v2136
    %v2153 = vmul.f32 %v829, %v2137
    %v2154 = vmul.f32 %v830, %v2138
    %v2155 = vmul.f32 %v831, %v2139
    %v2156 = vmul.f32 %v832, %v2140
    %v2157 = vmul.f32 %v833, %v2141
    %v2158 = vmul.f32 %v834, %v2142
    %v2159 = vmul.f32 %v835, %v2143
    %v2160 = vrot.slane %v2144, 4
    %v2161 = vadd.f32 %v2144, %v2160
    %v2162 = vrot.slane %v2161, 2
    %v2163 = vadd.f32 %v2161, %v2162
    %v2164 = vrot.slane %v2163, 1
    %v2165 = vadd.f32 %v2163, %v2164
    %v2166 = vrot.slane %v2145, 4
    %v2167 = vadd.f32 %v2145, %v2166
    %v2168 = vrot.slane %v2167, 2
    %v2169 = vadd.f32 %v2167, %v2168
    %v2170 = vrot.slane %v2169, 1
    %v2171 = vadd.f32 %v2169, %v2170
    %v2172 = vrot.slane %v2146, 4
    %v2173 = vadd.f32 %v2146, %v2172
    %v2174 = vrot.slane %v2173, 2
    %v2175 = vadd.f32 %v2173, %v2174
    %v2176 = vrot.slane %v2175, 1
    %v2177 = vadd.f32 %v2175, %v2176
    %v2178 = vrot.slane %v2147, 4
    %v2179 = vadd.f32 %v2147, %v2178
    %v2180 = vrot.slane %v2179, 2
    %v2181 = vadd.f32 %v2179, %v2180
    %v2182 = vrot.slane %v2181, 1
    %v2183 = vadd.f32 %v2181, %v2182
    %v2184 = vrot.slane %v2148, 4
    %v2185 = vadd.f32 %v2148, %v2184
    %v2186 = vrot.slane %v2185, 2
    %v2187 = vadd.f32 %v2185, %v2186
    %v2188 = vrot.slane %v2187, 1
    %v2189 = vadd.f32 %v2187, %v2188
    %v2190 = vrot.slane %v2149, 4
    %v2191 = vadd.f32 %v2149, %v2190
    %v2192 = vrot.slane %v2191, 2
    %v2193 = vadd.f32 %v2191, %v2192
    %v2194 = vrot.slane %v2193, 1
    %v2195 = vadd.f32 %v2193, %v2194
    %v2196 = vrot.slane %v2150, 4
    %v2197 = vadd.f32 %v2150, %v2196
    %v2198 = vrot.slane %v2197, 2
    %v2199 = vadd.f32 %v2197, %v2198
    %v2200 = vrot.slane %v2199, 1
    %v2201 = vadd.f32 %v2199, %v2200
    %v2202 = vrot.slane %v2151, 4
    %v2203 = vadd.f32 %v2151, %v2202
    %v2204 = vrot.slane %v2203, 2
    %v2205 = vadd.f32 %v2203, %v2204
    %v2206 = vrot.slane %v2205, 1
    %v2207 = vadd.f32 %v2205, %v2206
    %v2208 = vrot.slane %v2152, 4
    %v2209 = vadd.f32 %v2152, %v2208
    %v2210 = vrot.slane %v2209, 2
    %v2211 = vadd.f32 %v2209, %v2210
    %v2212 = vrot.slane %v2211, 1
    %v2213 = vadd.f32 %v2211, %v2212
    %v2214 = vrot.slane %v2153, 4
    %v2215 = vadd.f32 %v2153, %v2214
    %v2216 = vrot.slane %v2215, 2
    %v2217 = vadd.f32 %v2215, %v2216
    %v2218 = vrot.slane %v2217, 1
    %v2219 = vadd.f32 %v2217, %v2218
    %v2220 = vrot.slane %v2154, 4
    %v2221 = vadd.f32 %v2154, %v2220
    %v2222 = vrot.slane %v2221, 2
    %v2223 = vadd.f32 %v2221, %v2222
    %v2224 = vrot.slane %v2223, 1
    %v2225 = vadd.f32 %v2223, %v2224
    %v2226 = vrot.slane %v2155, 4
    %v2227 = vadd.f32 %v2155, %v2226
    %v2228 = vrot.slane %v2227, 2
    %v2229 = vadd.f32 %v2227, %v2228
    %v2230 = vrot.slane %v2229, 1
    %v2231 = vadd.f32 %v2229, %v2230
    %v2232 = vrot.slane %v2156, 4
    %v2233 = vadd.f32 %v2156, %v2232
    %v2234 = vrot.slane %v2233, 2
    %v2235 = vadd.f32 %v2233, %v2234
    %v2236 = vrot.slane %v2235, 1
    %v2237 = vadd.f32 %v2235, %v2236
    %v2238 = vrot.slane %v2157, 4
    %v2239 = vadd.f32 %v2157, %v2238
    %v2240 = vrot.slane %v2239, 2
    %v2241 = vadd.f32 %v2239, %v2240
    %v2242 = vrot.slane %v2241, 1
    %v2243 = vadd.f32 %v2241, %v2242
    %v2244 = vrot.slane %v2158, 4
    %v2245 = vadd.f32 %v2158, %v2244
    %v2246 = vrot.slane %v2245, 2
    %v2247 = vadd.f32 %v2245, %v2246
    %v2248 = vrot.slane %v2247, 1
    %v2249 = vadd.f32 %v2247, %v2248
    %v2250 = vrot.slane %v2159, 4
    %v2251 = vadd.f32 %v2159, %v2250
    %v2252 = vrot.slane %v2251, 2
    %v2253 = vadd.f32 %v2251, %v2252
    %v2254 = vrot.slane %v2253, 1
    %v2255 = vadd.f32 %v2253, %v2254
    %2258 = vrot.lane.b32.xlu0 %v1933, 96
    %v2259 = vpop.permute.xlu0 %2258
    %2260 = vrot.lane.b32.xlu0 %v1934, 96
    %v2261 = vpop.permute.xlu0 %2260
    %v2262 = vsel %vm901, %v2259, 0
    %v2264 = vsel %vm901, %v2261, 0
    %2266 = vmatpush.msra.mxu0 0.0
    %2267 = vmatpush.msra.mxu0 0.0
    %2268 = vmatpush.msra.mxu0 0.0
    %2269 = vmatpush.msra.mxu0 0.0
    %2270 = vmatpush.msra.mxu0 0.0
    %2271 = vmatpush.msra.mxu0 0.0
    %2272 = vmatpush.msra.mxu0 0.0
    %2273 = vmatpush.msra.mxu0 0.0
    %2274 = vmatpush.msra.mxu0 0.0
    %2275 = vmatpush.msra.mxu0 0.0
    %2276 = vmatpush.msra.mxu0 0.0
    %2277 = vmatpush.msra.mxu0 0.0
    %2278 = vmatpush.msra.mxu0 %v880
    %2279 = vmatpush.msra.mxu0 %v879
    %2280 = vmatpush.msra.mxu0 %v878
    %2281 = vmatpush.msra.mxu0 %v877
    %2282 = vmatmul.f32.gmra.mxu0 %v2262
    %v2283 = vpop.f32.mrf.mxu0
    %v2284 = vadd.f32 0.0, %v2283
    %2285 = vmatmul.f32.gmra.mxu0 %v2264
    %v2286 = vpop.f32.mrf.mxu0
    %v2287 = vadd.f32 0.0, %v2286
    %2288 = vdwg.mxu0
    %v2305 = vsel %vm1324, %v2171, %v2165
    %v2306 = vsel %vm1326, %v2177, %v2305
    %v2307 = vsel %vm1328, %v2183, %v2306
    %v2308 = vsel %vm1330, %v2189, %v2307
    %v2309 = vsel %vm1332, %v2195, %v2308
    %v2310 = vsel %vm1334, %v2201, %v2309
    %v2311 = vsel %vm1336, %v2207, %v2310
    %v2312 = vsel %vm1324, %v2219, %v2213
    %v2313 = vsel %vm1326, %v2225, %v2312
    %v2314 = vsel %vm1328, %v2231, %v2313
    %v2315 = vsel %vm1330, %v2237, %v2314
    %v2316 = vsel %vm1332, %v2243, %v2315
    %v2317 = vsel %vm1334, %v2249, %v2316
    %v2318 = vsel %vm1336, %v2255, %v2317
    %2321 = vmatpush.msra.mxu0 %v876
    %2322 = vmatpush.msra.mxu0 %v875
    %2323 = vmatpush.msra.mxu0 %v874
    %2324 = vmatpush.msra.mxu0 %v873
    %2325 = vmatpush.msra.mxu0 %v872
    %2326 = vmatpush.msra.mxu0 %v871
    %2327 = vmatpush.msra.mxu0 %v870
    %2328 = vmatpush.msra.mxu0 %v869
    %2329 = vmatpush.msra.mxu0 %v868
    %2330 = vmatpush.msra.mxu0 %v867
    %2331 = vmatpush.msra.mxu0 %v866
    %2332 = vmatpush.msra.mxu0 %v865
    %2333 = vmatpush.msra.mxu0 %v864
    %2334 = vmatpush.msra.mxu0 %v863
    %2335 = vmatpush.msra.mxu0 %v862
    %2336 = vmatpush.msra.mxu0 %v861
    %2337 = vmatmul.f32.gmra.mxu0 %v2311
    %v2338 = vpop.f32.mrf.mxu0
    %v2339 = vadd.f32 %v2284, %v2338
    %2340 = vmatmul.f32.gmra.mxu0 %v2318
    %v2341 = vpop.f32.mrf.mxu0
    %v2342 = vadd.f32 %v2287, %v2341
    %2343 = vdwg.mxu0
    %v2344 = vadd.f32 %v2339, %v887
    %v2345 = vadd.f32 %v2342, %v888
    %v2346 = vxor.u32 %v2344, 2147483648
    %v2347 = vxor.u32 %v2345, 2147483648
    %v2348 = vmul.f32 %v2346, 1.442695
    %v2349 = vpow.pop %v2348
    %v2350 = vmul.f32 %v2347, 1.442695
    %v2351 = vpow.pop %v2350
    %v2352 = vadd.f32 %v2349, 1.0
    %v2353 = vadd.f32 %v2351, 1.0
    %v2354 = vrcp.pop %v2352
    %v2355 = vmul.f32 %v2352, %v2354
    %v2356 = vsub.f32 1.0, %v2355
    %v2357 = vmul.f32 %v2354, %v2356
    %v2358 = vadd.f32 %v2354, %v2357
    %vm2359 = vweird.f32 %v2352
    %vm2360 = vweird.f32 %v2354
    %vm2361 = vmor %vm2359, %vm2360
    %v2362 = vsel %vm2361, %v2354, %v2358
    %v2363 = vand.u32 2147483647, %v2352
    %vm2364 = vcmp.eq.f32.partialorder %v2363, 8.507059e+37
    %v2365 = vand.u32 %v2352, 2147483648
    %v2366 = vor.u32 1.1754944e-38, %v2365
    %v2367 = vsel %vm2364, %v2366, %v2362
    %v2368 = vmul.f32 1.0, %v2367
    %v2369 = vrcp.pop %v2353
    %v2370 = vmul.f32 %v2353, %v2369
    %v2371 = vsub.f32 1.0, %v2370
    %v2372 = vmul.f32 %v2369, %v2371
    %v2373 = vadd.f32 %v2369, %v2372
    %vm2374 = vweird.f32 %v2353
    %vm2375 = vweird.f32 %v2369
    %vm2376 = vmor %vm2374, %vm2375
    %v2377 = vsel %vm2376, %v2369, %v2373
    %v2378 = vand.u32 2147483647, %v2353
    %vm2379 = vcmp.eq.f32.partialorder %v2378, 8.507059e+37
    %v2380 = vand.u32 %v2353, 2147483648
    %v2381 = vor.u32 1.1754944e-38, %v2380
    %v2382 = vsel %vm2379, %v2381, %v2377
    %v2383 = vmul.f32 1.0, %v2382
    %2386 = vrot.lane.b32.xlu0 %v2344, 32
    %v2387 = vpop.permute.xlu0 %2386
    %2388 = vrot.lane.b32.xlu0 %v2345, 32
    %v2389 = vpop.permute.xlu0 %2388
    %v2392 = vmul.f32 %v2368, %v2387
    %v2393 = vmul.f32 %v2383, %v2389
    %2396 = vrot.lane.b32.xlu0 %v2392, 64
    %v2397 = vpop.permute.xlu0 %2396
    %2398 = vrot.lane.b32.xlu0 %v2393, 64
    %v2399 = vpop.permute.xlu0 %2398
    %v2402 = vadd.f32 %v2344, %v2397
    %v2403 = vadd.f32 %v2345, %v2399
    %v2404 = vtanh.pop %v2402
    %v2405 = vtanh.pop %v2403
    %v2406 = vsub.f32 1.0, %v2368
    %v2407 = vsub.f32 1.0, %v2383
    %2410 = vrot.lane.b32.xlu0 %v2404, 96
    %v2411 = vpop.permute.xlu0 %2410
    %2412 = vrot.lane.b32.xlu0 %v2405, 96
    %v2413 = vpop.permute.xlu0 %2412
    %v2416 = vmul.f32 %v2406, %v2411
    %v2417 = vmul.f32 %v2407, %v2413
    %v2418 = vmul.f32 %v2368, %v1933
    %v2419 = vmul.f32 %v2383, %v1934
    %v2420 = vadd.f32 %v2416, %v2418
    %v2421 = vadd.f32 %v2417, %v2419
    %v2422 = vpack.c.bf16 %v2421, %v2420
    %2424 = vrot.lane.b32.xlu0 %v2422, 96
    %v2425 = vpop.permute.xlu0 %2424
    %v2427 = vsel %vm901, %v2425, 0
    %2429 = vmatpush.bf16.msra.mxu0 0
    %2430 = vmatpush.bf16.msra.mxu0 0
    %2431 = vmatpush.bf16.msra.mxu0 0
    %2432 = vmatpush.bf16.msra.mxu0 0
    %2433 = vmatpush.bf16.msra.mxu0 0
    %2434 = vmatpush.bf16.msra.mxu0 0
    %2435 = vmatpush.bf16.msra.mxu0 %v898
    %2436 = vmatpush.bf16.msra.mxu0 %v897
    %2437 = vmatmul.bf16.gmra.mxu0 %v2427
    %v2438 = vpop.f32.mrf.mxu0
    %v2439 = vadd.f32 0.0, %v2438
    %v2440 = vpop.f32.mrf.mxu0
    %v2441 = vadd.f32 0.0, %v2440
    %2442 = vdwg.mxu0
    %2443 = vmatpush.bf16.msra.mxu0 0
    %2444 = vmatpush.bf16.msra.mxu0 0
    %2445 = vmatpush.bf16.msra.mxu0 0
    %2446 = vmatpush.bf16.msra.mxu0 0
    %2447 = vmatpush.bf16.msra.mxu0 0
    %2448 = vmatpush.bf16.msra.mxu0 0
    %2449 = vmatpush.bf16.msra.mxu0 %v928
    %2450 = vmatpush.bf16.msra.mxu0 %v927
    %2451 = vmatmul.bf16.gmra.mxu0 %v2427
    %v2452 = vpop.f32.mrf.mxu0
    %v2453 = vadd.f32 0.0, %v2452
    %v2454 = vpop.f32.mrf.mxu0
    %v2455 = vadd.f32 0.0, %v2454
    %2456 = vdwg.mxu0
    %2458 = vrot.lane.b32.xlu0 %v2455, 64
    %v2459 = vpop.permute.xlu0 %2458
    %v2461 = vsel %vm595, %v2453, %v2459
    %v2464 = vrot.slane %v2439, 1
    %v2465 = vrot.slane %v2439, 2
    %v2466 = vrot.slane %v2439, 3
    %v2467 = vrot.slane %v2439, 4
    %v2468 = vrot.slane %v2439, 5
    %v2469 = vrot.slane %v2439, 6
    %v2470 = vrot.slane %v2439, 7
    %v2471 = vrot.slane %v2441, 1
    %v2472 = vrot.slane %v2441, 2
    %v2473 = vrot.slane %v2441, 3
    %v2474 = vrot.slane %v2441, 4
    %v2475 = vrot.slane %v2441, 5
    %v2476 = vrot.slane %v2441, 6
    %v2477 = vrot.slane %v2441, 7
    %v2478 = vperm.slane %v2439, 0
    %v2479 = vperm.slane %v2464, 0
    %v2480 = vperm.slane %v2465, 0
    %v2481 = vperm.slane %v2466, 0
    %v2482 = vperm.slane %v2467, 0
    %v2483 = vperm.slane %v2468, 0
    %v2484 = vperm.slane %v2469, 0
    %v2485 = vperm.slane %v2470, 0
    %v2486 = vperm.slane %v2441, 0
    %v2487 = vperm.slane %v2471, 0
    %v2488 = vperm.slane %v2472, 0
    %v2489 = vperm.slane %v2473, 0
    %v2490 = vperm.slane %v2474, 0
    %v2491 = vperm.slane %v2475, 0
    %v2492 = vperm.slane %v2476, 0
    %v2493 = vperm.slane %v2477, 0
    %v2510 = vadd.f32 %v2478, %v2461
    %v2511 = vadd.f32 %v2479, %v2461
    %v2512 = vadd.f32 %v2480, %v2461
    %v2513 = vadd.f32 %v2481, %v2461
    %v2514 = vadd.f32 %v2482, %v2461
    %v2515 = vadd.f32 %v2483, %v2461
    %v2516 = vadd.f32 %v2484, %v2461
    %v2517 = vadd.f32 %v2485, %v2461
    %v2518 = vadd.f32 %v2486, %v2461
    %v2519 = vadd.f32 %v2487, %v2461
    %v2520 = vadd.f32 %v2488, %v2461
    %v2521 = vadd.f32 %v2489, %v2461
    %v2522 = vadd.f32 %v2490, %v2461
    %v2523 = vadd.f32 %v2491, %v2461
    %v2524 = vadd.f32 %v2492, %v2461
    %v2525 = vadd.f32 %v2493, %v2461
    %v2526 = vadd.f32 %v2510, %v596
    %v2527 = vadd.f32 %v2511, %v597
    %v2528 = vadd.f32 %v2512, %v598
    %v2529 = vadd.f32 %v2513, %v599
    %v2530 = vadd.f32 %v2514, %v600
    %v2531 = vadd.f32 %v2515, %v601
    %v2532 = vadd.f32 %v2516, %v602
    %v2533 = vadd.f32 %v2517, %v603
    %v2534 = vadd.f32 %v2518, %v604
    %v2535 = vadd.f32 %v2519, %v605
    %v2536 = vadd.f32 %v2520, %v606
    %v2537 = vadd.f32 %v2521, %v607
    %v2538 = vadd.f32 %v2522, %v608
    %v2539 = vadd.f32 %v2523, %v609
    %v2540 = vadd.f32 %v2524, %v610
    %v2541 = vadd.f32 %v2525, %v611
    %v2542 = vmax.f32 %v2526, 0.0
    %v2543 = vmax.f32 %v2527, 0.0
    %v2544 = vmax.f32 %v2528, 0.0
    %v2545 = vmax.f32 %v2529, 0.0
    %v2546 = vmax.f32 %v2530, 0.0
    %v2547 = vmax.f32 %v2531, 0.0
    %v2548 = vmax.f32 %v2532, 0.0
    %v2549 = vmax.f32 %v2533, 0.0
    %v2550 = vmax.f32 %v2534, 0.0
    %v2551 = vmax.f32 %v2535, 0.0
    %v2552 = vmax.f32 %v2536, 0.0
    %v2553 = vmax.f32 %v2537, 0.0
    %v2554 = vmax.f32 %v2538, 0.0
    %v2555 = vmax.f32 %v2539, 0.0
    %v2556 = vmax.f32 %v2540, 0.0
    %v2557 = vmax.f32 %v2541, 0.0
    %v2558 = vpack.c.bf16 %v2543, %v2542
    %v2559 = vpack.c.bf16 %v2545, %v2544
    %v2560 = vpack.c.bf16 %v2547, %v2546
    %v2561 = vpack.c.bf16 %v2549, %v2548
    %v2562 = vpack.c.bf16 %v2551, %v2550
    %v2563 = vpack.c.bf16 %v2553, %v2552
    %v2564 = vpack.c.bf16 %v2555, %v2554
    %v2565 = vpack.c.bf16 %v2557, %v2556
    %2566 = vmatpush.bf16.msra.mxu0 %v1096
    %2567 = vmatpush.bf16.msra.mxu0 %v1095
    %2568 = vmatpush.bf16.msra.mxu0 %v1094
    %2569 = vmatpush.bf16.msra.mxu0 %v1093
    %2570 = vmatpush.bf16.msra.mxu0 %v1092
    %2571 = vmatpush.bf16.msra.mxu0 %v1091
    %2572 = vmatpush.bf16.msra.mxu0 %v1090
    %2573 = vmatpush.bf16.msra.mxu0 %v1089
    %2574 = vmatmul.bf16.gmra.mxu0 %v2558
    %v2575 = vpop.f32.mrf.mxu0
    %v2576 = vadd.f32 %v1055, %v2575
    %v2577 = vpop.f32.mrf.mxu0
    %v2578 = vadd.f32 %v1055, %v2577
    %2579 = vmatmul.bf16.gmra.mxu0 %v2559
    %v2580 = vpop.f32.mrf.mxu0
    %v2581 = vadd.f32 %v1055, %v2580
    %v2582 = vpop.f32.mrf.mxu0
    %v2583 = vadd.f32 %v1055, %v2582
    %2584 = vmatmul.bf16.gmra.mxu0 %v2560
    %v2585 = vpop.f32.mrf.mxu0
    %v2586 = vadd.f32 %v1055, %v2585
    %v2587 = vpop.f32.mrf.mxu0
    %v2588 = vadd.f32 %v1055, %v2587
    %2589 = vmatmul.bf16.gmra.mxu0 %v2561
    %v2590 = vpop.f32.mrf.mxu0
    %v2591 = vadd.f32 %v1055, %v2590
    %v2592 = vpop.f32.mrf.mxu0
    %v2593 = vadd.f32 %v1055, %v2592
    %2594 = vmatmul.bf16.gmra.mxu0 %v2562
    %v2595 = vpop.f32.mrf.mxu0
    %v2596 = vadd.f32 %v1055, %v2595
    %v2597 = vpop.f32.mrf.mxu0
    %v2598 = vadd.f32 %v1055, %v2597
    %2599 = vmatmul.bf16.gmra.mxu0 %v2563
    %v2600 = vpop.f32.mrf.mxu0
    %v2601 = vadd.f32 %v1055, %v2600
    %v2602 = vpop.f32.mrf.mxu0
    %v2603 = vadd.f32 %v1055, %v2602
    %2604 = vmatmul.bf16.gmra.mxu0 %v2564
    %v2605 = vpop.f32.mrf.mxu0
    %v2606 = vadd.f32 %v1055, %v2605
    %v2607 = vpop.f32.mrf.mxu0
    %v2608 = vadd.f32 %v1055, %v2607
    %2609 = vmatmul.bf16.gmra.mxu0 %v2565
    %v2610 = vpop.f32.mrf.mxu0
    %v2611 = vadd.f32 %v1055, %v2610
    %v2612 = vpop.f32.mrf.mxu0
    %v2613 = vadd.f32 %v1055, %v2612
    %2614 = vdwg.mxu0
    %v2615 = vmax.f32 %v2576, 0.0
    %v2616 = vmax.f32 %v2578, 0.0
    %v2617 = vmax.f32 %v2581, 0.0
    %v2618 = vmax.f32 %v2583, 0.0
    %v2619 = vmax.f32 %v2586, 0.0
    %v2620 = vmax.f32 %v2588, 0.0
    %v2621 = vmax.f32 %v2591, 0.0
    %v2622 = vmax.f32 %v2593, 0.0
    %v2623 = vmax.f32 %v2596, 0.0
    %v2624 = vmax.f32 %v2598, 0.0
    %v2625 = vmax.f32 %v2601, 0.0
    %v2626 = vmax.f32 %v2603, 0.0
    %v2627 = vmax.f32 %v2606, 0.0
    %v2628 = vmax.f32 %v2608, 0.0
    %v2629 = vmax.f32 %v2611, 0.0
    %v2630 = vmax.f32 %v2613, 0.0
    %v2631 = vmul.f32 %v820, %v2615
    %v2632 = vmul.f32 %v821, %v2616
    %v2633 = vmul.f32 %v822, %v2617
    %v2634 = vmul.f32 %v823, %v2618
    %v2635 = vmul.f32 %v824, %v2619
    %v2636 = vmul.f32 %v825, %v2620
    %v2637 = vmul.f32 %v826, %v2621
    %v2638 = vmul.f32 %v827, %v2622
    %v2639 = vmul.f32 %v828, %v2623
    %v2640 = vmul.f32 %v829, %v2624
    %v2641 = vmul.f32 %v830, %v2625
    %v2642 = vmul.f32 %v831, %v2626
    %v2643 = vmul.f32 %v832, %v2627
    %v2644 = vmul.f32 %v833, %v2628
    %v2645 = vmul.f32 %v834, %v2629
    %v2646 = vmul.f32 %v835, %v2630
    %v2647 = vrot.slane %v2631, 4
    %v2648 = vadd.f32 %v2631, %v2647
    %v2649 = vrot.slane %v2648, 2
    %v2650 = vadd.f32 %v2648, %v2649
    %v2651 = vrot.slane %v2650, 1
    %v2652 = vadd.f32 %v2650, %v2651
    %v2653 = vrot.slane %v2632, 4
    %v2654 = vadd.f32 %v2632, %v2653
    %v2655 = vrot.slane %v2654, 2
    %v2656 = vadd.f32 %v2654, %v2655
    %v2657 = vrot.slane %v2656, 1
    %v2658 = vadd.f32 %v2656, %v2657
    %v2659 = vrot.slane %v2633, 4
    %v2660 = vadd.f32 %v2633, %v2659
    %v2661 = vrot.slane %v2660, 2
    %v2662 = vadd.f32 %v2660, %v2661
    %v2663 = vrot.slane %v2662, 1
    %v2664 = vadd.f32 %v2662, %v2663
    %v2665 = vrot.slane %v2634, 4
    %v2666 = vadd.f32 %v2634, %v2665
    %v2667 = vrot.slane %v2666, 2
    %v2668 = vadd.f32 %v2666, %v2667
    %v2669 = vrot.slane %v2668, 1
    %v2670 = vadd.f32 %v2668, %v2669
    %v2671 = vrot.slane %v2635, 4
    %v2672 = vadd.f32 %v2635, %v2671
    %v2673 = vrot.slane %v2672, 2
    %v2674 = vadd.f32 %v2672, %v2673
    %v2675 = vrot.slane %v2674, 1
    %v2676 = vadd.f32 %v2674, %v2675
    %v2677 = vrot.slane %v2636, 4
    %v2678 = vadd.f32 %v2636, %v2677
    %v2679 = vrot.slane %v2678, 2
    %v2680 = vadd.f32 %v2678, %v2679
    %v2681 = vrot.slane %v2680, 1
    %v2682 = vadd.f32 %v2680, %v2681
    %v2683 = vrot.slane %v2637, 4
    %v2684 = vadd.f32 %v2637, %v2683
    %v2685 = vrot.slane %v2684, 2
    %v2686 = vadd.f32 %v2684, %v2685
    %v2687 = vrot.slane %v2686, 1
    %v2688 = vadd.f32 %v2686, %v2687
    %v2689 = vrot.slane %v2638, 4
    %v2690 = vadd.f32 %v2638, %v2689
    %v2691 = vrot.slane %v2690, 2
    %v2692 = vadd.f32 %v2690, %v2691
    %v2693 = vrot.slane %v2692, 1
    %v2694 = vadd.f32 %v2692, %v2693
    %v2695 = vrot.slane %v2639, 4
    %v2696 = vadd.f32 %v2639, %v2695
    %v2697 = vrot.slane %v2696, 2
    %v2698 = vadd.f32 %v2696, %v2697
    %v2699 = vrot.slane %v2698, 1
    %v2700 = vadd.f32 %v2698, %v2699
    %v2701 = vrot.slane %v2640, 4
    %v2702 = vadd.f32 %v2640, %v2701
    %v2703 = vrot.slane %v2702, 2
    %v2704 = vadd.f32 %v2702, %v2703
    %v2705 = vrot.slane %v2704, 1
    %v2706 = vadd.f32 %v2704, %v2705
    %v2707 = vrot.slane %v2641, 4
    %v2708 = vadd.f32 %v2641, %v2707
    %v2709 = vrot.slane %v2708, 2
    %v2710 = vadd.f32 %v2708, %v2709
    %v2711 = vrot.slane %v2710, 1
    %v2712 = vadd.f32 %v2710, %v2711
    %v2713 = vrot.slane %v2642, 4
    %v2714 = vadd.f32 %v2642, %v2713
    %v2715 = vrot.slane %v2714, 2
    %v2716 = vadd.f32 %v2714, %v2715
    %v2717 = vrot.slane %v2716, 1
    %v2718 = vadd.f32 %v2716, %v2717
    %v2719 = vrot.slane %v2643, 4
    %v2720 = vadd.f32 %v2643, %v2719
    %v2721 = vrot.slane %v2720, 2
    %v2722 = vadd.f32 %v2720, %v2721
    %v2723 = vrot.slane %v2722, 1
    %v2724 = vadd.f32 %v2722, %v2723
    %v2725 = vrot.slane %v2644, 4
    %v2726 = vadd.f32 %v2644, %v2725
    %v2727 = vrot.slane %v2726, 2
    %v2728 = vadd.f32 %v2726, %v2727
    %v2729 = vrot.slane %v2728, 1
    %v2730 = vadd.f32 %v2728, %v2729
    %v2731 = vrot.slane %v2645, 4
    %v2732 = vadd.f32 %v2645, %v2731
    %v2733 = vrot.slane %v2732, 2
    %v2734 = vadd.f32 %v2732, %v2733
    %v2735 = vrot.slane %v2734, 1
    %v2736 = vadd.f32 %v2734, %v2735
    %v2737 = vrot.slane %v2646, 4
    %v2738 = vadd.f32 %v2646, %v2737
    %v2739 = vrot.slane %v2738, 2
    %v2740 = vadd.f32 %v2738, %v2739
    %v2741 = vrot.slane %v2740, 1
    %v2742 = vadd.f32 %v2740, %v2741
    %2745 = vrot.lane.b32.xlu0 %v2420, 96
    %v2746 = vpop.permute.xlu0 %2745
    %2747 = vrot.lane.b32.xlu0 %v2421, 96
    %v2748 = vpop.permute.xlu0 %2747
    %v2749 = vsel %vm901, %v2746, 0
    %v2751 = vsel %vm901, %v2748, 0
    %2753 = vmatpush.msra.mxu0 0.0
    %2754 = vmatpush.msra.mxu0 0.0
    %2755 = vmatpush.msra.mxu0 0.0
    %2756 = vmatpush.msra.mxu0 0.0
    %2757 = vmatpush.msra.mxu0 0.0
    %2758 = vmatpush.msra.mxu0 0.0
    %2759 = vmatpush.msra.mxu0 0.0
    %2760 = vmatpush.msra.mxu0 0.0
    %2761 = vmatpush.msra.mxu0 0.0
    %2762 = vmatpush.msra.mxu0 0.0
    %2763 = vmatpush.msra.mxu0 0.0
    %2764 = vmatpush.msra.mxu0 0.0
    %2765 = vmatpush.msra.mxu0 %v880
    %2766 = vmatpush.msra.mxu0 %v879
    %2767 = vmatpush.msra.mxu0 %v878
    %2768 = vmatpush.msra.mxu0 %v877
    %2769 = vmatmul.f32.gmra.mxu0 %v2749
    %v2770 = vpop.f32.mrf.mxu0
    %v2771 = vadd.f32 0.0, %v2770
    %2772 = vmatmul.f32.gmra.mxu0 %v2751
    %v2773 = vpop.f32.mrf.mxu0
    %v2774 = vadd.f32 0.0, %v2773
    %2775 = vdwg.mxu0
    %v2792 = vsel %vm1324, %v2658, %v2652
    %v2793 = vsel %vm1326, %v2664, %v2792
    %v2794 = vsel %vm1328, %v2670, %v2793
    %v2795 = vsel %vm1330, %v2676, %v2794
    %v2796 = vsel %vm1332, %v2682, %v2795
    %v2797 = vsel %vm1334, %v2688, %v2796
    %v2798 = vsel %vm1336, %v2694, %v2797
    %v2799 = vsel %vm1324, %v2706, %v2700
    %v2800 = vsel %vm1326, %v2712, %v2799
    %v2801 = vsel %vm1328, %v2718, %v2800
    %v2802 = vsel %vm1330, %v2724, %v2801
    %v2803 = vsel %vm1332, %v2730, %v2802
    %v2804 = vsel %vm1334, %v2736, %v2803
    %v2805 = vsel %vm1336, %v2742, %v2804
    %2808 = vmatpush.msra.mxu0 %v876
    %2809 = vmatpush.msra.mxu0 %v875
    %2810 = vmatpush.msra.mxu0 %v874
    %2811 = vmatpush.msra.mxu0 %v873
    %2812 = vmatpush.msra.mxu0 %v872
    %2813 = vmatpush.msra.mxu0 %v871
    %2814 = vmatpush.msra.mxu0 %v870
    %2815 = vmatpush.msra.mxu0 %v869
    %2816 = vmatpush.msra.mxu0 %v868
    %2817 = vmatpush.msra.mxu0 %v867
    %2818 = vmatpush.msra.mxu0 %v866
    %2819 = vmatpush.msra.mxu0 %v865
    %2820 = vmatpush.msra.mxu0 %v864
    %2821 = vmatpush.msra.mxu0 %v863
    %2822 = vmatpush.msra.mxu0 %v862
    %2823 = vmatpush.msra.mxu0 %v861
    %2824 = vmatmul.f32.gmra.mxu0 %v2798
    %v2825 = vpop.f32.mrf.mxu0
    %v2826 = vadd.f32 %v2771, %v2825
    %2827 = vmatmul.f32.gmra.mxu0 %v2805
    %v2828 = vpop.f32.mrf.mxu0
    %v2829 = vadd.f32 %v2774, %v2828
    %2830 = vdwg.mxu0
    %v2831 = vadd.f32 %v2826, %v887
    %v2832 = vadd.f32 %v2829, %v888
    %v2833 = vxor.u32 %v2831, 2147483648
    %v2834 = vxor.u32 %v2832, 2147483648
    %v2835 = vmul.f32 %v2833, 1.442695
    %v2836 = vpow.pop %v2835
    %v2837 = vmul.f32 %v2834, 1.442695
    %v2838 = vpow.pop %v2837
    %v2839 = vadd.f32 %v2836, 1.0
    %v2840 = vadd.f32 %v2838, 1.0
    %v2841 = vrcp.pop %v2839
    %v2842 = vmul.f32 %v2839, %v2841
    %v2843 = vsub.f32 1.0, %v2842
    %v2844 = vmul.f32 %v2841, %v2843
    %v2845 = vadd.f32 %v2841, %v2844
    %vm2846 = vweird.f32 %v2839
    %vm2847 = vweird.f32 %v2841
    %vm2848 = vmor %vm2846, %vm2847
    %v2849 = vsel %vm2848, %v2841, %v2845
    %v2850 = vand.u32 2147483647, %v2839
    %vm2851 = vcmp.eq.f32.partialorder %v2850, 8.507059e+37
    %v2852 = vand.u32 %v2839, 2147483648
    %v2853 = vor.u32 1.1754944e-38, %v2852
    %v2854 = vsel %vm2851, %v2853, %v2849
    %v2855 = vmul.f32 1.0, %v2854
    %v2856 = vrcp.pop %v2840
    %v2857 = vmul.f32 %v2840, %v2856
    %v2858 = vsub.f32 1.0, %v2857
    %v2859 = vmul.f32 %v2856, %v2858
    %v2860 = vadd.f32 %v2856, %v2859
    %vm2861 = vweird.f32 %v2840
    %vm2862 = vweird.f32 %v2856
    %vm2863 = vmor %vm2861, %vm2862
    %v2864 = vsel %vm2863, %v2856, %v2860
    %v2865 = vand.u32 2147483647, %v2840
    %vm2866 = vcmp.eq.f32.partialorder %v2865, 8.507059e+37
    %v2867 = vand.u32 %v2840, 2147483648
    %v2868 = vor.u32 1.1754944e-38, %v2867
    %v2869 = vsel %vm2866, %v2868, %v2864
    %v2870 = vmul.f32 1.0, %v2869
    %2873 = vrot.lane.b32.xlu0 %v2831, 32
    %v2874 = vpop.permute.xlu0 %2873
    %2875 = vrot.lane.b32.xlu0 %v2832, 32
    %v2876 = vpop.permute.xlu0 %2875
    %v2879 = vmul.f32 %v2855, %v2874
    %v2880 = vmul.f32 %v2870, %v2876
    %2883 = vrot.lane.b32.xlu0 %v2879, 64
    %v2884 = vpop.permute.xlu0 %2883
    %2885 = vrot.lane.b32.xlu0 %v2880, 64
    %v2886 = vpop.permute.xlu0 %2885
    %v2889 = vadd.f32 %v2831, %v2884
    %v2890 = vadd.f32 %v2832, %v2886
    %v2891 = vtanh.pop %v2889
    %v2892 = vtanh.pop %v2890
    %v2893 = vsub.f32 1.0, %v2855
    %v2894 = vsub.f32 1.0, %v2870
    %2897 = vrot.lane.b32.xlu0 %v2891, 96
    %v2898 = vpop.permute.xlu0 %2897
    %2899 = vrot.lane.b32.xlu0 %v2892, 96
    %v2900 = vpop.permute.xlu0 %2899
    %v2903 = vmul.f32 %v2893, %v2898
    %v2904 = vmul.f32 %v2894, %v2900
    %v2905 = vmul.f32 %v2855, %v2420
    %v2906 = vmul.f32 %v2870, %v2421
    %v2907 = vadd.f32 %v2903, %v2905
    %v2908 = vadd.f32 %v2904, %v2906
    %v2909 = vpack.c.bf16 %v2908, %v2907
    %2911 = vrot.lane.b32.xlu0 %v2909, 96
    %v2912 = vpop.permute.xlu0 %2911
    %v2914 = vsel %vm901, %v2912, 0
    %2916 = vmatpush.bf16.msra.mxu0 0
    %2917 = vmatpush.bf16.msra.mxu0 0
    %2918 = vmatpush.bf16.msra.mxu0 0
    %2919 = vmatpush.bf16.msra.mxu0 0
    %2920 = vmatpush.bf16.msra.mxu0 0
    %2921 = vmatpush.bf16.msra.mxu0 0
    %2922 = vmatpush.bf16.msra.mxu0 %v898
    %2923 = vmatpush.bf16.msra.mxu0 %v897
    %2924 = vmatmul.bf16.gmra.mxu0 %v2914
    %v2925 = vpop.f32.mrf.mxu0
    %v2926 = vadd.f32 0.0, %v2925
    %v2927 = vpop.f32.mrf.mxu0
    %v2928 = vadd.f32 0.0, %v2927
    %2929 = vdwg.mxu0
    %2930 = vmatpush.bf16.msra.mxu0 0
    %2931 = vmatpush.bf16.msra.mxu0 0
    %2932 = vmatpush.bf16.msra.mxu0 0
    %2933 = vmatpush.bf16.msra.mxu0 0
    %2934 = vmatpush.bf16.msra.mxu0 0
    %2935 = vmatpush.bf16.msra.mxu0 0
    %2936 = vmatpush.bf16.msra.mxu0 %v928
    %2937 = vmatpush.bf16.msra.mxu0 %v927
    %2938 = vmatmul.bf16.gmra.mxu0 %v2914
    %v2939 = vpop.f32.mrf.mxu0
    %v2940 = vadd.f32 0.0, %v2939
    %v2941 = vpop.f32.mrf.mxu0
    %v2942 = vadd.f32 0.0, %v2941
    %2943 = vdwg.mxu0
    %2945 = vrot.lane.b32.xlu0 %v2942, 64
    %v2946 = vpop.permute.xlu0 %2945
    %v2948 = vsel %vm595, %v2940, %v2946
    %v2951 = vrot.slane %v2926, 1
    %v2952 = vrot.slane %v2926, 2
    %v2953 = vrot.slane %v2926, 3
    %v2954 = vrot.slane %v2926, 4
    %v2955 = vrot.slane %v2926, 5
    %v2956 = vrot.slane %v2926, 6
    %v2957 = vrot.slane %v2926, 7
    %v2958 = vrot.slane %v2928, 1
    %v2959 = vrot.slane %v2928, 2
    %v2960 = vrot.slane %v2928, 3
    %v2961 = vrot.slane %v2928, 4
    %v2962 = vrot.slane %v2928, 5
    %v2963 = vrot.slane %v2928, 6
    %v2964 = vrot.slane %v2928, 7
    %v2965 = vperm.slane %v2926, 0
    %v2966 = vperm.slane %v2951, 0
    %v2967 = vperm.slane %v2952, 0
    %v2968 = vperm.slane %v2953, 0
    %v2969 = vperm.slane %v2954, 0
    %v2970 = vperm.slane %v2955, 0
    %v2971 = vperm.slane %v2956, 0
    %v2972 = vperm.slane %v2957, 0
    %v2973 = vperm.slane %v2928, 0
    %v2974 = vperm.slane %v2958, 0
    %v2975 = vperm.slane %v2959, 0
    %v2976 = vperm.slane %v2960, 0
    %v2977 = vperm.slane %v2961, 0
    %v2978 = vperm.slane %v2962, 0
    %v2979 = vperm.slane %v2963, 0
    %v2980 = vperm.slane %v2964, 0
    %v2997 = vadd.f32 %v2965, %v2948
    %v2998 = vadd.f32 %v2966, %v2948
    %v2999 = vadd.f32 %v2967, %v2948
    %v3000 = vadd.f32 %v2968, %v2948
    %v3001 = vadd.f32 %v2969, %v2948
    %v3002 = vadd.f32 %v2970, %v2948
    %v3003 = vadd.f32 %v2971, %v2948
    %v3004 = vadd.f32 %v2972, %v2948
    %v3005 = vadd.f32 %v2973, %v2948
    %v3006 = vadd.f32 %v2974, %v2948
    %v3007 = vadd.f32 %v2975, %v2948
    %v3008 = vadd.f32 %v2976, %v2948
    %v3009 = vadd.f32 %v2977, %v2948
    %v3010 = vadd.f32 %v2978, %v2948
    %v3011 = vadd.f32 %v2979, %v2948
    %v3012 = vadd.f32 %v2980, %v2948
    %v3013 = vadd.f32 %v2997, %v596
    %v3014 = vadd.f32 %v2998, %v597
    %v3015 = vadd.f32 %v2999, %v598
    %v3016 = vadd.f32 %v3000, %v599
    %v3017 = vadd.f32 %v3001, %v600
    %v3018 = vadd.f32 %v3002, %v601
    %v3019 = vadd.f32 %v3003, %v602
    %v3020 = vadd.f32 %v3004, %v603
    %v3021 = vadd.f32 %v3005, %v604
    %v3022 = vadd.f32 %v3006, %v605
    %v3023 = vadd.f32 %v3007, %v606
    %v3024 = vadd.f32 %v3008, %v607
    %v3025 = vadd.f32 %v3009, %v608
    %v3026 = vadd.f32 %v3010, %v609
    %v3027 = vadd.f32 %v3011, %v610
    %v3028 = vadd.f32 %v3012, %v611
    %v3029 = vmax.f32 %v3013, 0.0
    %v3030 = vmax.f32 %v3014, 0.0
    %v3031 = vmax.f32 %v3015, 0.0
    %v3032 = vmax.f32 %v3016, 0.0
    %v3033 = vmax.f32 %v3017, 0.0
    %v3034 = vmax.f32 %v3018, 0.0
    %v3035 = vmax.f32 %v3019, 0.0
    %v3036 = vmax.f32 %v3020, 0.0
    %v3037 = vmax.f32 %v3021, 0.0
    %v3038 = vmax.f32 %v3022, 0.0
    %v3039 = vmax.f32 %v3023, 0.0
    %v3040 = vmax.f32 %v3024, 0.0
    %v3041 = vmax.f32 %v3025, 0.0
    %v3042 = vmax.f32 %v3026, 0.0
    %v3043 = vmax.f32 %v3027, 0.0
    %v3044 = vmax.f32 %v3028, 0.0
    %v3045 = vpack.c.bf16 %v3030, %v3029
    %v3046 = vpack.c.bf16 %v3032, %v3031
    %v3047 = vpack.c.bf16 %v3034, %v3033
    %v3048 = vpack.c.bf16 %v3036, %v3035
    %v3049 = vpack.c.bf16 %v3038, %v3037
    %v3050 = vpack.c.bf16 %v3040, %v3039
    %v3051 = vpack.c.bf16 %v3042, %v3041
    %v3052 = vpack.c.bf16 %v3044, %v3043
    %3053 = vmatpush.bf16.msra.mxu0 %v1096
    %3054 = vmatpush.bf16.msra.mxu0 %v1095
    %3055 = vmatpush.bf16.msra.mxu0 %v1094
    %3056 = vmatpush.bf16.msra.mxu0 %v1093
    %3057 = vmatpush.bf16.msra.mxu0 %v1092
    %3058 = vmatpush.bf16.msra.mxu0 %v1091
    %3059 = vmatpush.bf16.msra.mxu0 %v1090
    %3060 = vmatpush.bf16.msra.mxu0 %v1089
    %3061 = vmatmul.bf16.gmra.mxu0 %v3045
    %v3062 = vpop.f32.mrf.mxu0
    %v3063 = vadd.f32 %v1055, %v3062
    %v3064 = vpop.f32.mrf.mxu0
    %v3065 = vadd.f32 %v1055, %v3064
    %3066 = vmatmul.bf16.gmra.mxu0 %v3046
    %v3067 = vpop.f32.mrf.mxu0
    %v3068 = vadd.f32 %v1055, %v3067
    %v3069 = vpop.f32.mrf.mxu0
    %v3070 = vadd.f32 %v1055, %v3069
    %3071 = vmatmul.bf16.gmra.mxu0 %v3047
    %v3072 = vpop.f32.mrf.mxu0
    %v3073 = vadd.f32 %v1055, %v3072
    %v3074 = vpop.f32.mrf.mxu0
    %v3075 = vadd.f32 %v1055, %v3074
    %3076 = vmatmul.bf16.gmra.mxu0 %v3048
    %v3077 = vpop.f32.mrf.mxu0
    %v3078 = vadd.f32 %v1055, %v3077
    %v3079 = vpop.f32.mrf.mxu0
    %v3080 = vadd.f32 %v1055, %v3079
    %3081 = vmatmul.bf16.gmra.mxu0 %v3049
    %v3082 = vpop.f32.mrf.mxu0
    %v3083 = vadd.f32 %v1055, %v3082
    %v3084 = vpop.f32.mrf.mxu0
    %v3085 = vadd.f32 %v1055, %v3084
    %3086 = vmatmul.bf16.gmra.mxu0 %v3050
    %v3087 = vpop.f32.mrf.mxu0
    %v3088 = vadd.f32 %v1055, %v3087
    %v3089 = vpop.f32.mrf.mxu0
    %v3090 = vadd.f32 %v1055, %v3089
    %3091 = vmatmul.bf16.gmra.mxu0 %v3051
    %v3092 = vpop.f32.mrf.mxu0
    %v3093 = vadd.f32 %v1055, %v3092
    %v3094 = vpop.f32.mrf.mxu0
    %v3095 = vadd.f32 %v1055, %v3094
    %3096 = vmatmul.bf16.gmra.mxu0 %v3052
    %v3097 = vpop.f32.mrf.mxu0
    %v3098 = vadd.f32 %v1055, %v3097
    %v3099 = vpop.f32.mrf.mxu0
    %v3100 = vadd.f32 %v1055, %v3099
    %3101 = vdwg.mxu0
    %v3102 = vmax.f32 %v3063, 0.0
    %v3103 = vmax.f32 %v3065, 0.0
    %v3104 = vmax.f32 %v3068, 0.0
    %v3105 = vmax.f32 %v3070, 0.0
    %v3106 = vmax.f32 %v3073, 0.0
    %v3107 = vmax.f32 %v3075, 0.0
    %v3108 = vmax.f32 %v3078, 0.0
    %v3109 = vmax.f32 %v3080, 0.0
    %v3110 = vmax.f32 %v3083, 0.0
    %v3111 = vmax.f32 %v3085, 0.0
    %v3112 = vmax.f32 %v3088, 0.0
    %v3113 = vmax.f32 %v3090, 0.0
    %v3114 = vmax.f32 %v3093, 0.0
    %v3115 = vmax.f32 %v3095, 0.0
    %v3116 = vmax.f32 %v3098, 0.0
    %v3117 = vmax.f32 %v3100, 0.0
    %v3118 = vmul.f32 %v820, %v3102
    %v3119 = vmul.f32 %v821, %v3103
    %v3120 = vmul.f32 %v822, %v3104
    %v3121 = vmul.f32 %v823, %v3105
    %v3122 = vmul.f32 %v824, %v3106
    %v3123 = vmul.f32 %v825, %v3107
    %v3124 = vmul.f32 %v826, %v3108
    %v3125 = vmul.f32 %v827, %v3109
    %v3126 = vmul.f32 %v828, %v3110
    %v3127 = vmul.f32 %v829, %v3111
    %v3128 = vmul.f32 %v830, %v3112
    %v3129 = vmul.f32 %v831, %v3113
    %v3130 = vmul.f32 %v832, %v3114
    %v3131 = vmul.f32 %v833, %v3115
    %v3132 = vmul.f32 %v834, %v3116
    %v3133 = vmul.f32 %v835, %v3117
    %v3134 = vrot.slane %v3118, 4
    %v3135 = vadd.f32 %v3118, %v3134
    %v3136 = vrot.slane %v3135, 2
    %v3137 = vadd.f32 %v3135, %v3136
    %v3138 = vrot.slane %v3137, 1
    %v3139 = vadd.f32 %v3137, %v3138
    %v3140 = vrot.slane %v3119, 4
    %v3141 = vadd.f32 %v3119, %v3140
    %v3142 = vrot.slane %v3141, 2
    %v3143 = vadd.f32 %v3141, %v3142
    %v3144 = vrot.slane %v3143, 1
    %v3145 = vadd.f32 %v3143, %v3144
    %v3146 = vrot.slane %v3120, 4
    %v3147 = vadd.f32 %v3120, %v3146
    %v3148 = vrot.slane %v3147, 2
    %v3149 = vadd.f32 %v3147, %v3148
    %v3150 = vrot.slane %v3149, 1
    %v3151 = vadd.f32 %v3149, %v3150
    %v3152 = vrot.slane %v3121, 4
    %v3153 = vadd.f32 %v3121, %v3152
    %v3154 = vrot.slane %v3153, 2
    %v3155 = vadd.f32 %v3153, %v3154
    %v3156 = vrot.slane %v3155, 1
    %v3157 = vadd.f32 %v3155, %v3156
    %v3158 = vrot.slane %v3122, 4
    %v3159 = vadd.f32 %v3122, %v3158
    %v3160 = vrot.slane %v3159, 2
    %v3161 = vadd.f32 %v3159, %v3160
    %v3162 = vrot.slane %v3161, 1
    %v3163 = vadd.f32 %v3161, %v3162
    %v3164 = vrot.slane %v3123, 4
    %v3165 = vadd.f32 %v3123, %v3164
    %v3166 = vrot.slane %v3165, 2
    %v3167 = vadd.f32 %v3165, %v3166
    %v3168 = vrot.slane %v3167, 1
    %v3169 = vadd.f32 %v3167, %v3168
    %v3170 = vrot.slane %v3124, 4
    %v3171 = vadd.f32 %v3124, %v3170
    %v3172 = vrot.slane %v3171, 2
    %v3173 = vadd.f32 %v3171, %v3172
    %v3174 = vrot.slane %v3173, 1
    %v3175 = vadd.f32 %v3173, %v3174
    %v3176 = vrot.slane %v3125, 4
    %v3177 = vadd.f32 %v3125, %v3176
    %v3178 = vrot.slane %v3177, 2
    %v3179 = vadd.f32 %v3177, %v3178
    %v3180 = vrot.slane %v3179, 1
    %v3181 = vadd.f32 %v3179, %v3180
    %v3182 = vrot.slane %v3126, 4
    %v3183 = vadd.f32 %v3126, %v3182
    %v3184 = vrot.slane %v3183, 2
    %v3185 = vadd.f32 %v3183, %v3184
    %v3186 = vrot.slane %v3185, 1
    %v3187 = vadd.f32 %v3185, %v3186
    %v3188 = vrot.slane %v3127, 4
    %v3189 = vadd.f32 %v3127, %v3188
    %v3190 = vrot.slane %v3189, 2
    %v3191 = vadd.f32 %v3189, %v3190
    %v3192 = vrot.slane %v3191, 1
    %v3193 = vadd.f32 %v3191, %v3192
    %v3194 = vrot.slane %v3128, 4
    %v3195 = vadd.f32 %v3128, %v3194
    %v3196 = vrot.slane %v3195, 2
    %v3197 = vadd.f32 %v3195, %v3196
    %v3198 = vrot.slane %v3197, 1
    %v3199 = vadd.f32 %v3197, %v3198
    %v3200 = vrot.slane %v3129, 4
    %v3201 = vadd.f32 %v3129, %v3200
    %v3202 = vrot.slane %v3201, 2
    %v3203 = vadd.f32 %v3201, %v3202
    %v3204 = vrot.slane %v3203, 1
    %v3205 = vadd.f32 %v3203, %v3204
    %v3206 = vrot.slane %v3130, 4
    %v3207 = vadd.f32 %v3130, %v3206
    %v3208 = vrot.slane %v3207, 2
    %v3209 = vadd.f32 %v3207, %v3208
    %v3210 = vrot.slane %v3209, 1
    %v3211 = vadd.f32 %v3209, %v3210
    %v3212 = vrot.slane %v3131, 4
    %v3213 = vadd.f32 %v3131, %v3212
    %v3214 = vrot.slane %v3213, 2
    %v3215 = vadd.f32 %v3213, %v3214
    %v3216 = vrot.slane %v3215, 1
    %v3217 = vadd.f32 %v3215, %v3216
    %v3218 = vrot.slane %v3132, 4
    %v3219 = vadd.f32 %v3132, %v3218
    %v3220 = vrot.slane %v3219, 2
    %v3221 = vadd.f32 %v3219, %v3220
    %v3222 = vrot.slane %v3221, 1
    %v3223 = vadd.f32 %v3221, %v3222
    %v3224 = vrot.slane %v3133, 4
    %v3225 = vadd.f32 %v3133, %v3224
    %v3226 = vrot.slane %v3225, 2
    %v3227 = vadd.f32 %v3225, %v3226
    %v3228 = vrot.slane %v3227, 1
    %v3229 = vadd.f32 %v3227, %v3228
    %3232 = vrot.lane.b32.xlu0 %v2907, 96
    %v3233 = vpop.permute.xlu0 %3232
    %3234 = vrot.lane.b32.xlu0 %v2908, 96
    %v3235 = vpop.permute.xlu0 %3234
    %v3236 = vsel %vm901, %v3233, 0
    %v3238 = vsel %vm901, %v3235, 0
    %3240 = vmatpush.msra.mxu0 0.0
    %3241 = vmatpush.msra.mxu0 0.0
    %3242 = vmatpush.msra.mxu0 0.0
    %3243 = vmatpush.msra.mxu0 0.0
    %3244 = vmatpush.msra.mxu0 0.0
    %3245 = vmatpush.msra.mxu0 0.0
    %3246 = vmatpush.msra.mxu0 0.0
    %3247 = vmatpush.msra.mxu0 0.0
    %3248 = vmatpush.msra.mxu0 0.0
    %3249 = vmatpush.msra.mxu0 0.0
    %3250 = vmatpush.msra.mxu0 0.0
    %3251 = vmatpush.msra.mxu0 0.0
    %3252 = vmatpush.msra.mxu0 %v880
    %3253 = vmatpush.msra.mxu0 %v879
    %3254 = vmatpush.msra.mxu0 %v878
    %3255 = vmatpush.msra.mxu0 %v877
    %3256 = vmatmul.f32.gmra.mxu0 %v3236
    %v3257 = vpop.f32.mrf.mxu0
    %v3258 = vadd.f32 0.0, %v3257
    %3259 = vmatmul.f32.gmra.mxu0 %v3238
    %v3260 = vpop.f32.mrf.mxu0
    %v3261 = vadd.f32 0.0, %v3260
    %3262 = vdwg.mxu0
    %v3279 = vsel %vm1324, %v3145, %v3139
    %v3280 = vsel %vm1326, %v3151, %v3279
    %v3281 = vsel %vm1328, %v3157, %v3280
    %v3282 = vsel %vm1330, %v3163, %v3281
    %v3283 = vsel %vm1332, %v3169, %v3282
    %v3284 = vsel %vm1334, %v3175, %v3283
    %v3285 = vsel %vm1336, %v3181, %v3284
    %v3286 = vsel %vm1324, %v3193, %v3187
    %v3287 = vsel %vm1326, %v3199, %v3286
    %v3288 = vsel %vm1328, %v3205, %v3287
    %v3289 = vsel %vm1330, %v3211, %v3288
    %v3290 = vsel %vm1332, %v3217, %v3289
    %v3291 = vsel %vm1334, %v3223, %v3290
    %v3292 = vsel %vm1336, %v3229, %v3291
    %3295 = vmatpush.msra.mxu0 %v876
    %3296 = vmatpush.msra.mxu0 %v875
    %3297 = vmatpush.msra.mxu0 %v874
    %3298 = vmatpush.msra.mxu0 %v873
    %3299 = vmatpush.msra.mxu0 %v872
    %3300 = vmatpush.msra.mxu0 %v871
    %3301 = vmatpush.msra.mxu0 %v870
    %3302 = vmatpush.msra.mxu0 %v869
    %3303 = vmatpush.msra.mxu0 %v868
    %3304 = vmatpush.msra.mxu0 %v867
    %3305 = vmatpush.msra.mxu0 %v866
    %3306 = vmatpush.msra.mxu0 %v865
    %3307 = vmatpush.msra.mxu0 %v864
    %3308 = vmatpush.msra.mxu0 %v863
    %3309 = vmatpush.msra.mxu0 %v862
    %3310 = vmatpush.msra.mxu0 %v861
    %3311 = vmatmul.f32.gmra.mxu0 %v3285
    %v3312 = vpop.f32.mrf.mxu0
    %v3313 = vadd.f32 %v3258, %v3312
    %3314 = vmatmul.f32.gmra.mxu0 %v3292
    %v3315 = vpop.f32.mrf.mxu0
    %v3316 = vadd.f32 %v3261, %v3315
    %3317 = vdwg.mxu0
    %v3318 = vadd.f32 %v3313, %v887
    %v3319 = vadd.f32 %v3316, %v888
    %v3320 = vxor.u32 %v3318, 2147483648
    %v3321 = vxor.u32 %v3319, 2147483648
    %v3322 = vmul.f32 %v3320, 1.442695
    %v3323 = vpow.pop %v3322
    %v3324 = vmul.f32 %v3321, 1.442695
    %v3325 = vpow.pop %v3324
    %v3326 = vadd.f32 %v3323, 1.0
    %v3327 = vadd.f32 %v3325, 1.0
    %v3328 = vrcp.pop %v3326
    %v3329 = vmul.f32 %v3326, %v3328
    %v3330 = vsub.f32 1.0, %v3329
    %v3331 = vmul.f32 %v3328, %v3330
    %v3332 = vadd.f32 %v3328, %v3331
    %vm3333 = vweird.f32 %v3326
    %vm3334 = vweird.f32 %v3328
    %vm3335 = vmor %vm3333, %vm3334
    %v3336 = vsel %vm3335, %v3328, %v3332
    %v3337 = vand.u32 2147483647, %v3326
    %vm3338 = vcmp.eq.f32.partialorder %v3337, 8.507059e+37
    %v3339 = vand.u32 %v3326, 2147483648
    %v3340 = vor.u32 1.1754944e-38, %v3339
    %v3341 = vsel %vm3338, %v3340, %v3336
    %v3342 = vmul.f32 1.0, %v3341
    %v3343 = vrcp.pop %v3327
    %v3344 = vmul.f32 %v3327, %v3343
    %v3345 = vsub.f32 1.0, %v3344
    %v3346 = vmul.f32 %v3343, %v3345
    %v3347 = vadd.f32 %v3343, %v3346
    %vm3348 = vweird.f32 %v3327
    %vm3349 = vweird.f32 %v3343
    %vm3350 = vmor %vm3348, %vm3349
    %v3351 = vsel %vm3350, %v3343, %v3347
    %v3352 = vand.u32 2147483647, %v3327
    %vm3353 = vcmp.eq.f32.partialorder %v3352, 8.507059e+37
    %v3354 = vand.u32 %v3327, 2147483648
    %v3355 = vor.u32 1.1754944e-38, %v3354
    %v3356 = vsel %vm3353, %v3355, %v3351
    %v3357 = vmul.f32 1.0, %v3356
    %3360 = vrot.lane.b32.xlu0 %v3318, 32
    %v3361 = vpop.permute.xlu0 %3360
    %3362 = vrot.lane.b32.xlu0 %v3319, 32
    %v3363 = vpop.permute.xlu0 %3362
    %v3366 = vmul.f32 %v3342, %v3361
    %v3367 = vmul.f32 %v3357, %v3363
    %3370 = vrot.lane.b32.xlu0 %v3366, 64
    %v3371 = vpop.permute.xlu0 %3370
    %3372 = vrot.lane.b32.xlu0 %v3367, 64
    %v3373 = vpop.permute.xlu0 %3372
    %v3376 = vadd.f32 %v3318, %v3371
    %v3377 = vadd.f32 %v3319, %v3373
    %v3378 = vtanh.pop %v3376
    %v3379 = vtanh.pop %v3377
    %v3380 = vsub.f32 1.0, %v3342
    %v3381 = vsub.f32 1.0, %v3357
    %3384 = vrot.lane.b32.xlu0 %v3378, 96
    %v3385 = vpop.permute.xlu0 %3384
    %3386 = vrot.lane.b32.xlu0 %v3379, 96
    %v3387 = vpop.permute.xlu0 %3386
    %v3390 = vmul.f32 %v3380, %v3385
    %v3391 = vmul.f32 %v3381, %v3387
    %v3392 = vmul.f32 %v3342, %v2907
    %v3393 = vmul.f32 %v3357, %v2908
    %v3394 = vadd.f32 %v3390, %v3392
    %v3395 = vadd.f32 %v3391, %v3393
    %v3396 = vld [vmem:[#allocation7] sm:$0xff]
    %v3397 = vld [vmem:[#allocation7 + $0x8] sm:$0xff]
    %v3398 = vld [vmem:[#allocation7 + $0x10] sm:$0xff]
    %v3399 = vld [vmem:[#allocation7 + $0x18] sm:$0xff]
    %v3400 = vld [vmem:[#allocation7 + $0x20] sm:$0x1]
    %v3401 = vld [vmem:[%s11] sm:$0xff]
    %v3402 = vld [vmem:[%s11 + $0x8] sm:$0xff]
    %v3403 = vld [vmem:[%s11 + $0x10] sm:$0xff]
    %v3404 = vld [vmem:[%s11 + $0x18] sm:$0xff]
    %v3405 = vld [vmem:[%s11 + $0x20] sm:$0xff]
    %v3406 = vld [vmem:[%s11 + $0x28] sm:$0xff]
    %v3407 = vld [vmem:[%s11 + $0x30] sm:$0xff]
    %v3408 = vld [vmem:[%s11 + $0x38] sm:$0xff]
    %v3409 = vld [vmem:[%s11 + $0x40] sm:$0x1]
    %v3410 = vld [vmem:[%s12] sm:$0xff]
    %v3411 = vld [vmem:[%s12 + $0x8] sm:$0xff]
    %v3412 = vld [vmem:[%s12 + $0x10] sm:$0xff]
    %v3413 = vld [vmem:[%s12 + $0x18] sm:$0xff]
    %v3414 = vld [vmem:[%s12 + $0x20] sm:$0xff]
    %v3415 = vld [vmem:[%s12 + $0x28] sm:$0xff]
    %v3416 = vld [vmem:[%s12 + $0x30] sm:$0xff]
    %v3417 = vld [vmem:[%s12 + $0x38] sm:$0xff]
    %v3418 = vld [vmem:[%s12 + $0x40] sm:$0x1]
    %v3419 = vperm.slane %v3400, 0
    %3422 = vrot.lane.b32.xlu0 %v3394, 96
    %v3423 = vpop.permute.xlu0 %3422
    %3424 = vrot.lane.b32.xlu0 %v3395, 96
    %v3425 = vpop.permute.xlu0 %3424
    %v3426 = vsel %vm901, %v3423, 0
    %v3428 = vsel %vm901, %v3425, 0
    %3430 = vmatpush.msra.mxu0 0.0
    %3431 = vmatpush.msra.mxu0 0.0
    %3432 = vmatpush.msra.mxu0 0.0
    %3433 = vmatpush.msra.mxu0 0.0
    %3434 = vmatpush.msra.mxu0 0.0
    %3435 = vmatpush.msra.mxu0 0.0
    %3436 = vmatpush.msra.mxu0 0.0
    %3437 = vmatpush.msra.mxu0 0.0
    %3438 = vmatpush.msra.mxu0 0.0
    %3439 = vmatpush.msra.mxu0 0.0
    %3440 = vmatpush.msra.mxu0 0.0
    %3441 = vmatpush.msra.mxu0 0.0
    %3442 = vmatpush.msra.mxu0 %v3399
    %3443 = vmatpush.msra.mxu0 %v3398
    %3444 = vmatpush.msra.mxu0 %v3397
    %3445 = vmatpush.msra.mxu0 %v3396
    %3446 = vmatmul.f32.gmra.mxu0 %v3426
    %v3447 = vpop.f32.mrf.mxu0
    %v3448 = vadd.f32 %v3419, %v3447
    %3449 = vmatmul.f32.gmra.mxu0 %v3428
    %v3450 = vpop.f32.mrf.mxu0
    %v3451 = vadd.f32 %v3419, %v3450
    %3452 = vdwg.mxu0
    %v3453 = vmax.f32 %v3448, 0.0
    %v3454 = vmax.f32 %v3451, 0.0
    %v3455 = vperm.slane %v3409, 0
    %v3457 = vsel %vm595, %v3453, 0
    %v3460 = vsel %vm595, %v3454, 0
    %3462 = vmatpush.msra.mxu0 0.0
    %3463 = vmatpush.msra.mxu0 0.0
    %3464 = vmatpush.msra.mxu0 0.0
    %3465 = vmatpush.msra.mxu0 0.0
    %3466 = vmatpush.msra.mxu0 0.0
    %3467 = vmatpush.msra.mxu0 0.0
    %3468 = vmatpush.msra.mxu0 0.0
    %3469 = vmatpush.msra.mxu0 0.0
    %3470 = vmatpush.msra.mxu0 %v3408
    %3471 = vmatpush.msra.mxu0 %v3407
    %3472 = vmatpush.msra.mxu0 %v3406
    %3473 = vmatpush.msra.mxu0 %v3405
    %3474 = vmatpush.msra.mxu0 %v3404
    %3475 = vmatpush.msra.mxu0 %v3403
    %3476 = vmatpush.msra.mxu0 %v3402
    %3477 = vmatpush.msra.mxu0 %v3401
    %3478 = vmatmul.f32.gmra.mxu0 %v3457
    %v3479 = vpop.f32.mrf.mxu0
    %v3480 = vadd.f32 %v3455, %v3479
    %3481 = vmatmul.f32.gmra.mxu0 %v3460
    %v3482 = vpop.f32.mrf.mxu0
    %v3483 = vadd.f32 %v3455, %v3482
    %3484 = vdwg.mxu0
    %v3485 = vmax.f32 %v3480, 0.0
    %v3486 = vmax.f32 %v3483, 0.0
    %v3487 = vperm.slane %v3418, 0
    %v3489 = vsel %vm595, %v3485, 0
    %v3492 = vsel %vm595, %v3486, 0
    %3494 = vmatpush.msra.mxu0 0.0
    %3495 = vmatpush.msra.mxu0 0.0
    %3496 = vmatpush.msra.mxu0 0.0
    %3497 = vmatpush.msra.mxu0 0.0
    %3498 = vmatpush.msra.mxu0 0.0
    %3499 = vmatpush.msra.mxu0 0.0
    %3500 = vmatpush.msra.mxu0 0.0
    %3501 = vmatpush.msra.mxu0 0.0
    %3502 = vmatpush.msra.mxu0 %v3417
    %3503 = vmatpush.msra.mxu0 %v3416
    %3504 = vmatpush.msra.mxu0 %v3415
    %3505 = vmatpush.msra.mxu0 %v3414
    %3506 = vmatpush.msra.mxu0 %v3413
    %3507 = vmatpush.msra.mxu0 %v3412
    %3508 = vmatpush.msra.mxu0 %v3411
    %3509 = vmatpush.msra.mxu0 %v3410
    %3510 = vmatmul.f32.gmra.mxu0 %v3489
    %v3511 = vpop.f32.mrf.mxu0
    %v3512 = vadd.f32 %v3487, %v3511
    %3513 = vmatmul.f32.gmra.mxu0 %v3492
    %v3514 = vpop.f32.mrf.mxu0
    %v3515 = vadd.f32 %v3487, %v3514
    %3516 = vdwg.mxu0
    %vm3517 = vcmask 15360
    %3518 = vst.msk [vmem:[%s13] sm:$0xff] %vm3517, %v3512
    %3519 = vst.msk [vmem:[%s13 + $0x8] sm:$0xff] %vm3517, %v3515
    // Predicated region
    $region70: #{tpu_custom_call.1} parent=1 // pred_check
      _
    $region71: #{tpu_custom_call.1} parent=1 // pred_check_branch
      %3521 = sbr.rel (0) target = $region73
    $region72: #{tpu_custom_call.1} parent=1 // pred_region
      _
    $region73: #{tpu_custom_call.1} parent=1 // pred_fallthru
      _
    // Predicated region
    $region74: #{tpu_custom_call.1} parent=1 // pred_check
      _
    $region75: #{tpu_custom_call.1} parent=1 // pred_check_branch
      %3523 = sbr.rel (0) target = $region77
    $region76: #{tpu_custom_call.1} parent=1 // pred_region
      _
    $region77: #{tpu_custom_call.1} parent=1 // pred_fallthru
      _
    %3524 = vsyncpa [#allocation3], 1
    %3525 = vsyncpa [#allocation5], 1
    %3526 = vsyncpa [#allocation8], 1

</llo_original>
